<compile_context>
chip_gen: v7x
topology: tpu7x:2x2x1
jax: 0.10.0
libtpu: 0.0.40
codegen_flags: <defaults>
</compile_context>

<pallas_src>
import functools
import math

import jax
import jax.numpy as jnp
from jax.experimental import pallas as pl
from jax.experimental.pallas import tpu as pltpu

# ---- scaled-down BERT config (structure matches BertModel; sizes kept small) ----
HIDDEN = 128          # hidden_dim (768 in the reference, scaled down)
N_HEADS = 4
HEAD_DIM = HIDDEN // N_HEADS
FFN_DIM = 4 * HIDDEN  # 512
N_LAYERS = 2
VOCAB = 64
MAX_POS = 32
NUM_CLASSES = 2
LN_EPS = 1e-12


# ----------------------------- in-kernel helpers ---------------------------------
def _layernorm(x, g, b):
    """x: (R, H) f32; g, b: (1, H) f32."""
    mu = jnp.mean(x, axis=-1, keepdims=True)
    xc = x - mu
    var = jnp.mean(xc * xc, axis=-1, keepdims=True)
    return xc * jax.lax.rsqrt(var + LN_EPS) * g + b


def _gelu(x):
    c = 0.7978845608028654  # sqrt(2/pi)
    return 0.5 * x * (1.0 + jnp.tanh(c * (x + 0.044715 * x * x * x)))


# --------------------------------- fused kernel ----------------------------------
def bert_fused_kernel(ids_ref, wemb_ref, pte_ref, eg_ref, eb_ref,
                      wqkv_ref, bqkv_ref, wo_ref, bo_ref, g1_ref, b1_ref,
                      wi_ref, bi_ref, wf_ref, bf_ref, g2_ref, b2_ref,
                      fcw_ref, fcb_ref,
                      logits_ref, hid_ref, *, batch, seq_len):
    """grid=(N_LAYERS,). hid_ref (VMEM scratch) carries the residual stream."""
    layer = pl.program_id(0)
    n_tok = batch * seq_len

    # ---- layer 0 prologue: embedding lookup (one-hot matmul) + sum + LayerNorm ----
    @pl.when(layer == 0)
    def _():
        ids = ids_ref[...]                                              # (n_tok, 1) i32
        onehot = (ids == jax.lax.broadcasted_iota(jnp.int32, (n_tok, VOCAB), 1))
        word = jnp.dot(onehot.astype(jnp.bfloat16), wemb_ref[...],
                       preferred_element_type=jnp.float32)              # (n_tok, H)
        emb = word + pte_ref[...]                                       # + pos + type
        hid_ref[...] = _layernorm(emb, eg_ref[...], eb_ref[...])

    # ---- transformer layer `layer` on the whole (B*L, H) slab ----
    x = hid_ref[...]                                                    # (n_tok, H) f32
    xb = x.astype(jnp.bfloat16)

    # Fused QKV: one (H, 3H) MXU matmul, f32 accumulation.
    qkv = jnp.dot(xb, wqkv_ref[0], preferred_element_type=jnp.float32) + bqkv_ref[0]
    scale = 1.0 / math.sqrt(HEAD_DIM)
    q = (qkv[:, :HIDDEN] * scale).astype(jnp.bfloat16).reshape(batch, seq_len, HIDDEN)
    k = qkv[:, HIDDEN:2 * HIDDEN].astype(jnp.bfloat16).reshape(batch, seq_len, HIDDEN)
    v = qkv[:, 2 * HIDDEN:].astype(jnp.bfloat16).reshape(batch, seq_len, HIDDEN)

    # Attention: batched over B per head (flash-style 'bld,bmd->blm' batched dots).
    ctx_heads = []
    for h in range(N_HEADS):                                            # static unroll
        sl = slice(h * HEAD_DIM, (h + 1) * HEAD_DIM)
        s = jnp.einsum("bld,bmd->blm", q[:, :, sl], k[:, :, sl],
                       preferred_element_type=jnp.float32)              # (B, L, L)
        s = s - jnp.max(s, axis=-1, keepdims=True)
        p = jnp.exp(s)
        p = p * pl.reciprocal(jnp.sum(p, axis=-1, keepdims=True), approx=True)
        ctx_heads.append(
            jnp.einsum("blm,bmd->bld", p.astype(jnp.bfloat16), v[:, :, sl],
                       preferred_element_type=jnp.float32))             # (B, L, HD)
    ctx = jnp.concatenate(ctx_heads, axis=-1).reshape(n_tok, HIDDEN)    # (n_tok, H) f32

    attn = jnp.dot(ctx.astype(jnp.bfloat16), wo_ref[0],
                   preferred_element_type=jnp.float32) + bo_ref[0]
    h1 = _layernorm(x + attn, g1_ref[0], b1_ref[0])                     # (n_tok, H) f32

    ff = jnp.dot(h1.astype(jnp.bfloat16), wi_ref[0],
                 preferred_element_type=jnp.float32) + bi_ref[0]        # (n_tok, FFN)
    ff = _gelu(ff)
    ff = jnp.dot(ff.astype(jnp.bfloat16), wf_ref[0],
                 preferred_element_type=jnp.float32) + bf_ref[0]        # (n_tok, H)
    out = _layernorm(h1 + ff, g2_ref[0], b2_ref[0])
    hid_ref[...] = out

    # ---- last-layer epilogue: pred = fc(hidden[:, 0]) ----
    @pl.when(layer == pl.num_programs(0) - 1)
    def _():
        cls = out.reshape(batch, seq_len, HIDDEN)[:, 0:1, :].reshape(batch, HIDDEN)
        logits_ref[...] = (jnp.dot(cls.astype(jnp.bfloat16), fcw_ref[...],
                                   preferred_element_type=jnp.float32)
                           + fcb_ref[...])


# ------------------------------- wrapper / params --------------------------------
def _const_spec(arr):
    """Full-extent block, constant index map (loaded once, stays VMEM-resident)."""
    return pl.BlockSpec(arr.shape, lambda l, _nd=arr.ndim: (0,) * _nd)


def _layer_spec(arr):
    """Per-layer block of a layer-stacked weight: block (1, ...), index (l, 0, ...)."""
    return pl.BlockSpec((1,) + arr.shape[1:],
                        lambda l, _nd=arr.ndim: (l,) + (0,) * (_nd - 1))


def init_params(key):
    std = 0.02
    ks = iter(jax.random.split(key, 16))
    p = {
        "word_emb": (std * jax.random.normal(next(ks), (VOCAB, HIDDEN))).astype(jnp.bfloat16),
        "pos_emb": std * jax.random.normal(next(ks), (MAX_POS, HIDDEN), jnp.float32),
        "type_emb": std * jax.random.normal(next(ks), (2, HIDDEN), jnp.float32),
        "emb_ln_g": jnp.ones((1, HIDDEN), jnp.float32),
        "emb_ln_b": jnp.zeros((1, HIDDEN), jnp.float32),
        # per-layer weights stacked along a leading layer axis, QKV pre-fused:
        "wqkv": (std * jax.random.normal(next(ks), (N_LAYERS, HIDDEN, 3 * HIDDEN))).astype(jnp.bfloat16),
        "bqkv": std * jax.random.normal(next(ks), (N_LAYERS, 1, 3 * HIDDEN), jnp.float32),
        "wo": (std * jax.random.normal(next(ks), (N_LAYERS, HIDDEN, HIDDEN))).astype(jnp.bfloat16),
        "bo": std * jax.random.normal(next(ks), (N_LAYERS, 1, HIDDEN), jnp.float32),
        "ln1_g": jnp.ones((N_LAYERS, 1, HIDDEN), jnp.float32),
        "ln1_b": jnp.zeros((N_LAYERS, 1, HIDDEN), jnp.float32),
        "wi": (std * jax.random.normal(next(ks), (N_LAYERS, HIDDEN, FFN_DIM))).astype(jnp.bfloat16),
        "bi": std * jax.random.normal(next(ks), (N_LAYERS, 1, FFN_DIM), jnp.float32),
        "wf": (std * jax.random.normal(next(ks), (N_LAYERS, FFN_DIM, HIDDEN))).astype(jnp.bfloat16),
        "bf": std * jax.random.normal(next(ks), (N_LAYERS, 1, HIDDEN), jnp.float32),
        "ln2_g": jnp.ones((N_LAYERS, 1, HIDDEN), jnp.float32),
        "ln2_b": jnp.zeros((N_LAYERS, 1, HIDDEN), jnp.float32),
        "fc_w": (std * jax.random.normal(next(ks), (HIDDEN, NUM_CLASSES))).astype(jnp.bfloat16),
        "fc_b": std * jax.random.normal(next(ks), (1, NUM_CLASSES), jnp.float32),
    }
    return p


@jax.jit
def bert_forward(text, text_lengths, params):
    # Reference forward calls self.model(text) with no attention mask and ignores
    # text_lengths, so padding positions participate in attention — matched here.
    del text_lengths
    B, L = text.shape
    n_tok = B * L

    ids2d = text.reshape(n_tok, 1).astype(jnp.int32)
    # position + token-type embeddings pre-summed and tiled over batch (tiny constant).
    pos_type = jnp.tile(params["pos_emb"][:L] + params["type_emb"][0:1], (B, 1))

    operands = (
        ids2d, params["word_emb"], pos_type, params["emb_ln_g"], params["emb_ln_b"],
        params["wqkv"], params["bqkv"], params["wo"], params["bo"],
        params["ln1_g"], params["ln1_b"],
        params["wi"], params["bi"], params["wf"], params["bf"],
        params["ln2_g"], params["ln2_b"],
        params["fc_w"], params["fc_b"],
    )
    in_specs = [
        _const_spec(ids2d), _const_spec(params["word_emb"]), _const_spec(pos_type),
        _const_spec(params["emb_ln_g"]), _const_spec(params["emb_ln_b"]),
        _layer_spec(params["wqkv"]), _layer_spec(params["bqkv"]),
        _layer_spec(params["wo"]), _layer_spec(params["bo"]),
        _layer_spec(params["ln1_g"]), _layer_spec(params["ln1_b"]),
        _layer_spec(params["wi"]), _layer_spec(params["bi"]),
        _layer_spec(params["wf"]), _layer_spec(params["bf"]),
        _layer_spec(params["ln2_g"]), _layer_spec(params["ln2_b"]),
        _const_spec(params["fc_w"]), _const_spec(params["fc_b"]),
    ]

    logits = pl.pallas_call(
        functools.partial(bert_fused_kernel, batch=B, seq_len=L),
        grid=(N_LAYERS,),
        in_specs=in_specs,
        out_specs=pl.BlockSpec((B, NUM_CLASSES), lambda l: (0, 0)),
        out_shape=jax.ShapeDtypeStruct((B, NUM_CLASSES), jnp.float32),
        scratch_shapes=[pltpu.VMEM((n_tok, HIDDEN), jnp.float32)],
        compiler_params=pltpu.CompilerParams(
            dimension_semantics=("arbitrary",)),   # layer axis is a carried dependence
    )(*operands)
    return logits


if __name__ == "__main__":
    key = jax.random.PRNGKey(0)
    k_param, k_text = jax.random.split(key, 2)

    BATCH = 2
    SEQ_LEN = 16

    params = init_params(k_param)
    text = jax.random.randint(k_text, (BATCH, SEQ_LEN), 0, VOCAB, dtype=jnp.int32)
    text_lengths = jnp.full((BATCH,), SEQ_LEN, dtype=jnp.int32)

    pred = bert_forward(text, text_lengths, params)
    pred = jax.block_until_ready(pred)
    assert pred.shape == (BATCH, NUM_CLASSES) and pred.dtype == jnp.float32
    assert bool(jnp.all(jnp.isfinite(pred)))
    print("KERNEL_OK")
</pallas_src>

<mosaic_0001>
module attributes {stable_mosaic.version = 11 : i64} {
  func.func @bert_fused_kernel(%arg0: i32, %arg1: memref<32x1xi32, #tpu.memory_space<vmem>>, %arg2: memref<64x128xbf16, #tpu.memory_space<vmem>>, %arg3: memref<32x128xf32, #tpu.memory_space<vmem>>, %arg4: memref<1x128xf32, #tpu.memory_space<vmem>>, %arg5: memref<1x128xf32, #tpu.memory_space<vmem>>, %arg6: memref<1x128x384xbf16, #tpu.memory_space<vmem>>, %arg7: memref<1x1x384xf32, #tpu.memory_space<vmem>>, %arg8: memref<1x128x128xbf16, #tpu.memory_space<vmem>>, %arg9: memref<1x1x128xf32, #tpu.memory_space<vmem>>, %arg10: memref<1x1x128xf32, #tpu.memory_space<vmem>>, %arg11: memref<1x1x128xf32, #tpu.memory_space<vmem>>, %arg12: memref<1x128x512xbf16, #tpu.memory_space<vmem>>, %arg13: memref<1x1x512xf32, #tpu.memory_space<vmem>>, %arg14: memref<1x512x128xbf16, #tpu.memory_space<vmem>>, %arg15: memref<1x1x128xf32, #tpu.memory_space<vmem>>, %arg16: memref<1x1x128xf32, #tpu.memory_space<vmem>>, %arg17: memref<1x1x128xf32, #tpu.memory_space<vmem>>, %arg18: memref<128x2xbf16, #tpu.memory_space<vmem>>, %arg19: memref<1x2xf32, #tpu.memory_space<vmem>>, %arg20: memref<2x2xf32, #tpu.memory_space<vmem>>, %arg21: memref<32x128xf32, #tpu.memory_space<vmem>>) attributes {dimension_semantics = [#tpu.dimension_semantics<arbitrary>], iteration_bounds = array<i64: 2>, scalar_prefetch = 0 : i64, scratch_operands = 1 : i64, tpu.core_type = #tpu.core_type<tc>, window_params = [{pipeline_mode = #tpu.pipeline_mode<synchronous>, transform_indices = @transform_0, window_bounds = array<i64: 32, 1>}, {pipeline_mode = #tpu.pipeline_mode<synchronous>, transform_indices = @transform_1, window_bounds = array<i64: 64, 128>}, {pipeline_mode = #tpu.pipeline_mode<synchronous>, transform_indices = @transform_2, window_bounds = array<i64: 32, 128>}, {pipeline_mode = #tpu.pipeline_mode<synchronous>, transform_indices = @transform_3, window_bounds = array<i64: 1, 128>}, {pipeline_mode = #tpu.pipeline_mode<synchronous>, transform_indices = @transform_4, window_bounds = array<i64: 1, 128>}, {transform_indices = @transform_5, window_bounds = array<i64: 1, 128, 384>}, {transform_indices = @transform_6, window_bounds = array<i64: 1, 1, 384>}, {transform_indices = @transform_7, window_bounds = array<i64: 1, 128, 128>}, {transform_indices = @transform_8, window_bounds = array<i64: 1, 1, 128>}, {transform_indices = @transform_9, window_bounds = array<i64: 1, 1, 128>}, {transform_indices = @transform_10, window_bounds = array<i64: 1, 1, 128>}, {transform_indices = @transform_11, window_bounds = array<i64: 1, 128, 512>}, {transform_indices = @transform_12, window_bounds = array<i64: 1, 1, 512>}, {transform_indices = @transform_13, window_bounds = array<i64: 1, 512, 128>}, {transform_indices = @transform_14, window_bounds = array<i64: 1, 1, 128>}, {transform_indices = @transform_15, window_bounds = array<i64: 1, 1, 128>}, {transform_indices = @transform_16, window_bounds = array<i64: 1, 1, 128>}, {pipeline_mode = #tpu.pipeline_mode<synchronous>, transform_indices = @transform_17, window_bounds = array<i64: 128, 2>}, {pipeline_mode = #tpu.pipeline_mode<synchronous>, transform_indices = @transform_18, window_bounds = array<i64: 1, 2>}, {pipeline_mode = #tpu.pipeline_mode<synchronous>, transform_indices = @transform_19, window_bounds = array<i64: 2, 2>}]} {
    %c0_i32 = arith.constant 0 : i32
    %0 = arith.cmpi eq, %arg0, %c0_i32 : i32
    %1 = arith.extui %0 : i1 to i32
    %c0_i32_0 = arith.constant 0 : i32
    %2 = arith.cmpi ne, %1, %c0_i32_0 : i32
    scf.if %2 {
      %c0_75 = arith.constant 0 : index
      %c0_76 = arith.constant 0 : index
      %180 = vector.load %arg1[%c0_75, %c0_76] : memref<32x1xi32, #tpu.memory_space<vmem>>, vector<32x1xi32>
      %181 = tpu.iota {dimensions = array<i32: 1>} : vector<32x64xi32>
      %182 = vector.broadcast %180 : vector<32x1xi32> to vector<32x64xi32>
      %183 = arith.cmpi eq, %182, %181 : vector<32x64xi32>
      %184 = arith.extui %183 : vector<32x64xi1> to vector<32x64xi32>
      %185 = arith.sitofp %184 : vector<32x64xi32> to vector<32x64xf32>
      %186 = arith.truncf %185 : vector<32x64xf32> to vector<32x64xbf16>
      %c0_77 = arith.constant 0 : index
      %c0_78 = arith.constant 0 : index
      %187 = vector.load %arg2[%c0_77, %c0_78] : memref<64x128xbf16, #tpu.memory_space<vmem>>, vector<64x128xbf16>
      %cst_79 = arith.constant dense<0.000000e+00> : vector<32x128xf32>
      %188 = tpu.matmul %186, %187, %cst_79 {dimension_numbers = #tpu.dot_dimension_numbers<[1], [0], [0], [1], [0, 0, 1, 1], [], []>} : vector<32x64xbf16>, vector<64x128xbf16>, vector<32x128xf32> -> vector<32x128xf32>
      %c0_80 = arith.constant 0 : index
      %c0_81 = arith.constant 0 : index
      %189 = vector.load %arg3[%c0_80, %c0_81] : memref<32x128xf32, #tpu.memory_space<vmem>>, vector<32x128xf32>
      %190 = arith.addf %188, %189 : vector<32x128xf32>
      %c0_82 = arith.constant 0 : index
      %c0_83 = arith.constant 0 : index
      %191 = vector.load %arg4[%c0_82, %c0_83] : memref<1x128xf32, #tpu.memory_space<vmem>>, vector<1x128xf32>
      %c0_84 = arith.constant 0 : index
      %c0_85 = arith.constant 0 : index
      %192 = vector.load %arg5[%c0_84, %c0_85] : memref<1x128xf32, #tpu.memory_space<vmem>>, vector<1x128xf32>
      %cst_86 = arith.constant dense<0.000000e+00> : vector<32xf32>
      %193 = vector.multi_reduction <add>, %190, %cst_86 [1] : vector<32x128xf32> to vector<32xf32>
      %194 = vector.shape_cast %193 : vector<32xf32> to vector<32x1xf32>
      %cst_87 = arith.constant 1.280000e+02 : f32
      %195 = vector.broadcast %cst_87 : f32 to vector<32x1xf32>
      %196 = arith.divf %194, %195 : vector<32x1xf32>
      %197 = vector.broadcast %196 : vector<32x1xf32> to vector<32x128xf32>
      %198 = arith.subf %190, %197 : vector<32x128xf32>
      %199 = arith.mulf %198, %198 : vector<32x128xf32>
      %cst_88 = arith.constant dense<0.000000e+00> : vector<32xf32>
      %200 = vector.multi_reduction <add>, %199, %cst_88 [1] : vector<32x128xf32> to vector<32xf32>
      %201 = vector.shape_cast %200 : vector<32xf32> to vector<32x1xf32>
      %cst_89 = arith.constant 1.280000e+02 : f32
      %202 = vector.broadcast %cst_89 : f32 to vector<32x1xf32>
      %203 = arith.divf %201, %202 : vector<32x1xf32>
      %cst_90 = arith.constant 9.99999996E-13 : f32
      %204 = vector.broadcast %cst_90 : f32 to vector<32x1xf32>
      %205 = arith.addf %203, %204 : vector<32x1xf32>
      %206 = math.rsqrt %205 : vector<32x1xf32>
      %207 = vector.broadcast %206 : vector<32x1xf32> to vector<32x128xf32>
      %208 = arith.mulf %198, %207 : vector<32x128xf32>
      %209 = vector.broadcast %191 : vector<1x128xf32> to vector<32x128xf32>
      %210 = arith.mulf %208, %209 : vector<32x128xf32>
      %211 = vector.broadcast %192 : vector<1x128xf32> to vector<32x128xf32>
      %212 = arith.addf %210, %211 : vector<32x128xf32>
      %c0_91 = arith.constant 0 : index
      %c0_92 = arith.constant 0 : index
      %213 = vector.load %arg21[%c0_91, %c0_92] : memref<32x128xf32, #tpu.memory_space<vmem>>, vector<32x128xf32>
      tpu.vector_store %arg21[%c0_91, %c0_92], %212 {strides = array<i32>} : memref<32x128xf32, #tpu.memory_space<vmem>>, vector<32x128xf32>,
    } else {
    }
    %c0 = arith.constant 0 : index
    %c0_1 = arith.constant 0 : index
    %3 = vector.load %arg21[%c0, %c0_1] : memref<32x128xf32, #tpu.memory_space<vmem>>, vector<32x128xf32>
    %4 = arith.truncf %3 : vector<32x128xf32> to vector<32x128xbf16>
    %c0_2 = arith.constant 0 : index
    %c0_3 = arith.constant 0 : index
    %c0_4 = arith.constant 0 : index
    %5 = vector.load %arg6[%c0_2, %c0_3, %c0_4] : memref<1x128x384xbf16, #tpu.memory_space<vmem>>, vector<1x128x384xbf16>
    %6 = vector.shape_cast %5 : vector<1x128x384xbf16> to vector<128x384xbf16>
    %cst = arith.constant dense<0.000000e+00> : vector<32x384xf32>
    %7 = tpu.matmul %4, %6, %cst {dimension_numbers = #tpu.dot_dimension_numbers<[1], [0], [0], [1], [0, 0, 1, 1], [], []>} : vector<32x128xbf16>, vector<128x384xbf16>, vector<32x384xf32> -> vector<32x384xf32>
    %c0_5 = arith.constant 0 : index
    %c0_6 = arith.constant 0 : index
    %c0_7 = arith.constant 0 : index
    %8 = vector.load %arg7[%c0_5, %c0_6, %c0_7] : memref<1x1x384xf32, #tpu.memory_space<vmem>>, vector<1x1x384xf32>
    %9 = vector.shape_cast %8 : vector<1x1x384xf32> to vector<1x384xf32>
    %10 = vector.broadcast %9 : vector<1x384xf32> to vector<32x384xf32>
    %11 = arith.addf %7, %10 : vector<32x384xf32>
    %12 = vector.extract_strided_slice %11 {offsets = [0, 0], sizes = [32, 128], strides = [1, 1]} : vector<32x384xf32> to vector<32x128xf32>
    %cst_8 = arith.constant 0.176776692 : f32
    %13 = vector.broadcast %cst_8 : f32 to vector<32x128xf32>
    %14 = arith.mulf %12, %13 : vector<32x128xf32>
    %15 = arith.truncf %14 : vector<32x128xf32> to vector<32x128xbf16>
    %16 = vector.shape_cast %15 : vector<32x128xbf16> to vector<2x16x128xbf16>
    %17 = vector.extract_strided_slice %11 {offsets = [0, 128], sizes = [32, 128], strides = [1, 1]} : vector<32x384xf32> to vector<32x128xf32>
    %18 = arith.truncf %17 : vector<32x128xf32> to vector<32x128xbf16>
    %19 = vector.shape_cast %18 : vector<32x128xbf16> to vector<2x16x128xbf16>
    %20 = vector.extract_strided_slice %11 {offsets = [0, 256], sizes = [32, 128], strides = [1, 1]} : vector<32x384xf32> to vector<32x128xf32>
    %21 = arith.truncf %20 : vector<32x128xf32> to vector<32x128xbf16>
    %22 = vector.shape_cast %21 : vector<32x128xbf16> to vector<2x16x128xbf16>
    %23 = vector.extract_strided_slice %16 {offsets = [0, 0, 0], sizes = [2, 16, 32], strides = [1, 1, 1]} : vector<2x16x128xbf16> to vector<2x16x32xbf16>
    %24 = vector.extract_strided_slice %19 {offsets = [0, 0, 0], sizes = [2, 16, 32], strides = [1, 1, 1]} : vector<2x16x128xbf16> to vector<2x16x32xbf16>
    "tpu.trace_start"() <{level = 10 : i32, message = "bld,bmd->blm"}> : () -> ()
    %cst_9 = arith.constant dense<0.000000e+00> : vector<2x16x16xf32>
    %25 = tpu.matmul %23, %24, %cst_9 {dimension_numbers = #tpu.dot_dimension_numbers<[2], [2], [1], [1], [0, 0, 0, 1, 1, 1], [0], [0]>} : vector<2x16x32xbf16>, vector<2x16x32xbf16>, vector<2x16x16xf32> -> vector<2x16x16xf32>
    "tpu.trace_stop"() : () -> ()
    %cst_10 = arith.constant dense<0xFF800000> : vector<2x16xf32>
    %26 = vector.multi_reduction <maximumf>, %25, %cst_10 [2] : vector<2x16x16xf32> to vector<2x16xf32>
    %27 = vector.shape_cast %26 : vector<2x16xf32> to vector<2x16x1xf32>
    %28 = vector.broadcast %27 : vector<2x16x1xf32> to vector<2x16x16xf32>
    %29 = arith.subf %25, %28 : vector<2x16x16xf32>
    %30 = math.exp %29 : vector<2x16x16xf32>
    %cst_11 = arith.constant dense<0.000000e+00> : vector<2x16xf32>
    %31 = vector.multi_reduction <add>, %30, %cst_11 [2] : vector<2x16x16xf32> to vector<2x16xf32>
    %32 = vector.shape_cast %31 : vector<2x16xf32> to vector<2x16x1xf32>
    %33 = tpu.reciprocal %32 {approx = true} : vector<2x16x1xf32> -> vector<2x16x1xf32>
    %34 = vector.broadcast %33 : vector<2x16x1xf32> to vector<2x16x16xf32>
    %35 = arith.mulf %30, %34 : vector<2x16x16xf32>
    %36 = arith.truncf %35 : vector<2x16x16xf32> to vector<2x16x16xbf16>
    %37 = vector.extract_strided_slice %22 {offsets = [0, 0, 0], sizes = [2, 16, 32], strides = [1, 1, 1]} : vector<2x16x128xbf16> to vector<2x16x32xbf16>
    "tpu.trace_start"() <{level = 10 : i32, message = "blm,bmd->bld"}> : () -> ()
    %cst_12 = arith.constant dense<0.000000e+00> : vector<2x16x32xf32>
    %38 = tpu.matmul %36, %37, %cst_12 {dimension_numbers = #tpu.dot_dimension_numbers<[2], [1], [1], [2], [0, 0, 0, 1, 1, 2], [0], [0]>} : vector<2x16x16xbf16>, vector<2x16x32xbf16>, vector<2x16x32xf32> -> vector<2x16x32xf32>
    "tpu.trace_stop"() : () -> ()
    %39 = vector.extract_strided_slice %16 {offsets = [0, 0, 32], sizes = [2, 16, 32], strides = [1, 1, 1]} : vector<2x16x128xbf16> to vector<2x16x32xbf16>
    %40 = vector.extract_strided_slice %19 {offsets = [0, 0, 32], sizes = [2, 16, 32], strides = [1, 1, 1]} : vector<2x16x128xbf16> to vector<2x16x32xbf16>
    "tpu.trace_start"() <{level = 10 : i32, message = "bld,bmd->blm"}> : () -> ()
    %cst_13 = arith.constant dense<0.000000e+00> : vector<2x16x16xf32>
    %41 = tpu.matmul %39, %40, %cst_13 {dimension_numbers = #tpu.dot_dimension_numbers<[2], [2], [1], [1], [0, 0, 0, 1, 1, 1], [0], [0]>} : vector<2x16x32xbf16>, vector<2x16x32xbf16>, vector<2x16x16xf32> -> vector<2x16x16xf32>
    "tpu.trace_stop"() : () -> ()
    %cst_14 = arith.constant dense<0xFF800000> : vector<2x16xf32>
    %42 = vector.multi_reduction <maximumf>, %41, %cst_14 [2] : vector<2x16x16xf32> to vector<2x16xf32>
    %43 = vector.shape_cast %42 : vector<2x16xf32> to vector<2x16x1xf32>
    %44 = vector.broadcast %43 : vector<2x16x1xf32> to vector<2x16x16xf32>
    %45 = arith.subf %41, %44 : vector<2x16x16xf32>
    %46 = math.exp %45 : vector<2x16x16xf32>
    %cst_15 = arith.constant dense<0.000000e+00> : vector<2x16xf32>
    %47 = vector.multi_reduction <add>, %46, %cst_15 [2] : vector<2x16x16xf32> to vector<2x16xf32>
    %48 = vector.shape_cast %47 : vector<2x16xf32> to vector<2x16x1xf32>
    %49 = tpu.reciprocal %48 {approx = true} : vector<2x16x1xf32> -> vector<2x16x1xf32>
    %50 = vector.broadcast %49 : vector<2x16x1xf32> to vector<2x16x16xf32>
    %51 = arith.mulf %46, %50 : vector<2x16x16xf32>
    %52 = arith.truncf %51 : vector<2x16x16xf32> to vector<2x16x16xbf16>
    %53 = vector.extract_strided_slice %22 {offsets = [0, 0, 32], sizes = [2, 16, 32], strides = [1, 1, 1]} : vector<2x16x128xbf16> to vector<2x16x32xbf16>
    "tpu.trace_start"() <{level = 10 : i32, message = "blm,bmd->bld"}> : () -> ()
    %cst_16 = arith.constant dense<0.000000e+00> : vector<2x16x32xf32>
    %54 = tpu.matmul %52, %53, %cst_16 {dimension_numbers = #tpu.dot_dimension_numbers<[2], [1], [1], [2], [0, 0, 0, 1, 1, 2], [0], [0]>} : vector<2x16x16xbf16>, vector<2x16x32xbf16>, vector<2x16x32xf32> -> vector<2x16x32xf32>
    "tpu.trace_stop"() : () -> ()
    %55 = vector.extract_strided_slice %16 {offsets = [0, 0, 64], sizes = [2, 16, 32], strides = [1, 1, 1]} : vector<2x16x128xbf16> to vector<2x16x32xbf16>
    %56 = vector.extract_strided_slice %19 {offsets = [0, 0, 64], sizes = [2, 16, 32], strides = [1, 1, 1]} : vector<2x16x128xbf16> to vector<2x16x32xbf16>
    "tpu.trace_start"() <{level = 10 : i32, message = "bld,bmd->blm"}> : () -> ()
    %cst_17 = arith.constant dense<0.000000e+00> : vector<2x16x16xf32>
    %57 = tpu.matmul %55, %56, %cst_17 {dimension_numbers = #tpu.dot_dimension_numbers<[2], [2], [1], [1], [0, 0, 0, 1, 1, 1], [0], [0]>} : vector<2x16x32xbf16>, vector<2x16x32xbf16>, vector<2x16x16xf32> -> vector<2x16x16xf32>
    "tpu.trace_stop"() : () -> ()
    %cst_18 = arith.constant dense<0xFF800000> : vector<2x16xf32>
    %58 = vector.multi_reduction <maximumf>, %57, %cst_18 [2] : vector<2x16x16xf32> to vector<2x16xf32>
    %59 = vector.shape_cast %58 : vector<2x16xf32> to vector<2x16x1xf32>
    %60 = vector.broadcast %59 : vector<2x16x1xf32> to vector<2x16x16xf32>
    %61 = arith.subf %57, %60 : vector<2x16x16xf32>
    %62 = math.exp %61 : vector<2x16x16xf32>
    %cst_19 = arith.constant dense<0.000000e+00> : vector<2x16xf32>
    %63 = vector.multi_reduction <add>, %62, %cst_19 [2] : vector<2x16x16xf32> to vector<2x16xf32>
    %64 = vector.shape_cast %63 : vector<2x16xf32> to vector<2x16x1xf32>
    %65 = tpu.reciprocal %64 {approx = true} : vector<2x16x1xf32> -> vector<2x16x1xf32>
    %66 = vector.broadcast %65 : vector<2x16x1xf32> to vector<2x16x16xf32>
    %67 = arith.mulf %62, %66 : vector<2x16x16xf32>
    %68 = arith.truncf %67 : vector<2x16x16xf32> to vector<2x16x16xbf16>
    %69 = vector.extract_strided_slice %22 {offsets = [0, 0, 64], sizes = [2, 16, 32], strides = [1, 1, 1]} : vector<2x16x128xbf16> to vector<2x16x32xbf16>
    "tpu.trace_start"() <{level = 10 : i32, message = "blm,bmd->bld"}> : () -> ()
    %cst_20 = arith.constant dense<0.000000e+00> : vector<2x16x32xf32>
    %70 = tpu.matmul %68, %69, %cst_20 {dimension_numbers = #tpu.dot_dimension_numbers<[2], [1], [1], [2], [0, 0, 0, 1, 1, 2], [0], [0]>} : vector<2x16x16xbf16>, vector<2x16x32xbf16>, vector<2x16x32xf32> -> vector<2x16x32xf32>
    "tpu.trace_stop"() : () -> ()
    %71 = vector.extract_strided_slice %16 {offsets = [0, 0, 96], sizes = [2, 16, 32], strides = [1, 1, 1]} : vector<2x16x128xbf16> to vector<2x16x32xbf16>
    %72 = vector.extract_strided_slice %19 {offsets = [0, 0, 96], sizes = [2, 16, 32], strides = [1, 1, 1]} : vector<2x16x128xbf16> to vector<2x16x32xbf16>
    "tpu.trace_start"() <{level = 10 : i32, message = "bld,bmd->blm"}> : () -> ()
    %cst_21 = arith.constant dense<0.000000e+00> : vector<2x16x16xf32>
    %73 = tpu.matmul %71, %72, %cst_21 {dimension_numbers = #tpu.dot_dimension_numbers<[2], [2], [1], [1], [0, 0, 0, 1, 1, 1], [0], [0]>} : vector<2x16x32xbf16>, vector<2x16x32xbf16>, vector<2x16x16xf32> -> vector<2x16x16xf32>
    "tpu.trace_stop"() : () -> ()
    %cst_22 = arith.constant dense<0xFF800000> : vector<2x16xf32>
    %74 = vector.multi_reduction <maximumf>, %73, %cst_22 [2] : vector<2x16x16xf32> to vector<2x16xf32>
    %75 = vector.shape_cast %74 : vector<2x16xf32> to vector<2x16x1xf32>
    %76 = vector.broadcast %75 : vector<2x16x1xf32> to vector<2x16x16xf32>
    %77 = arith.subf %73, %76 : vector<2x16x16xf32>
    %78 = math.exp %77 : vector<2x16x16xf32>
    %cst_23 = arith.constant dense<0.000000e+00> : vector<2x16xf32>
    %79 = vector.multi_reduction <add>, %78, %cst_23 [2] : vector<2x16x16xf32> to vector<2x16xf32>
    %80 = vector.shape_cast %79 : vector<2x16xf32> to vector<2x16x1xf32>
    %81 = tpu.reciprocal %80 {approx = true} : vector<2x16x1xf32> -> vector<2x16x1xf32>
    %82 = vector.broadcast %81 : vector<2x16x1xf32> to vector<2x16x16xf32>
    %83 = arith.mulf %78, %82 : vector<2x16x16xf32>
    %84 = arith.truncf %83 : vector<2x16x16xf32> to vector<2x16x16xbf16>
    %85 = vector.extract_strided_slice %22 {offsets = [0, 0, 96], sizes = [2, 16, 32], strides = [1, 1, 1]} : vector<2x16x128xbf16> to vector<2x16x32xbf16>
    "tpu.trace_start"() <{level = 10 : i32, message = "blm,bmd->bld"}> : () -> ()
    %cst_24 = arith.constant dense<0.000000e+00> : vector<2x16x32xf32>
    %86 = tpu.matmul %84, %85, %cst_24 {dimension_numbers = #tpu.dot_dimension_numbers<[2], [1], [1], [2], [0, 0, 0, 1, 1, 2], [0], [0]>} : vector<2x16x16xbf16>, vector<2x16x32xbf16>, vector<2x16x32xf32> -> vector<2x16x32xf32>
    "tpu.trace_stop"() : () -> ()
    %87 = tpu.concatenate %38, %54, %70, %86 in 2 : vector<2x16x32xf32>, vector<2x16x32xf32>, vector<2x16x32xf32>, vector<2x16x32xf32> -> vector<2x16x128xf32>
    %88 = vector.shape_cast %87 : vector<2x16x128xf32> to vector<32x128xf32>
    %89 = arith.truncf %88 : vector<32x128xf32> to vector<32x128xbf16>
    %c0_25 = arith.constant 0 : index
    %c0_26 = arith.constant 0 : index
    %c0_27 = arith.constant 0 : index
    %90 = vector.load %arg8[%c0_25, %c0_26, %c0_27] : memref<1x128x128xbf16, #tpu.memory_space<vmem>>, vector<1x128x128xbf16>
    %91 = vector.shape_cast %90 : vector<1x128x128xbf16> to vector<128x128xbf16>
    %cst_28 = arith.constant dense<0.000000e+00> : vector<32x128xf32>
    %92 = tpu.matmul %89, %91, %cst_28 {dimension_numbers = #tpu.dot_dimension_numbers<[1], [0], [0], [1], [0, 0, 1, 1], [], []>} : vector<32x128xbf16>, vector<128x128xbf16>, vector<32x128xf32> -> vector<32x128xf32>
    %c0_29 = arith.constant 0 : index
    %c0_30 = arith.constant 0 : index
    %c0_31 = arith.constant 0 : index
    %93 = vector.load %arg9[%c0_29, %c0_30, %c0_31] : memref<1x1x128xf32, #tpu.memory_space<vmem>>, vector<1x1x128xf32>
    %94 = vector.shape_cast %93 : vector<1x1x128xf32> to vector<1x128xf32>
    %95 = vector.broadcast %94 : vector<1x128xf32> to vector<32x128xf32>
    %96 = arith.addf %92, %95 : vector<32x128xf32>
    %97 = arith.addf %3, %96 : vector<32x128xf32>
    %c0_32 = arith.constant 0 : index
    %c0_33 = arith.constant 0 : index
    %c0_34 = arith.constant 0 : index
    %98 = vector.load %arg10[%c0_32, %c0_33, %c0_34] : memref<1x1x128xf32, #tpu.memory_space<vmem>>, vector<1x1x128xf32>
    %99 = vector.shape_cast %98 : vector<1x1x128xf32> to vector<1x128xf32>
    %c0_35 = arith.constant 0 : index
    %c0_36 = arith.constant 0 : index
    %c0_37 = arith.constant 0 : index
    %100 = vector.load %arg11[%c0_35, %c0_36, %c0_37] : memref<1x1x128xf32, #tpu.memory_space<vmem>>, vector<1x1x128xf32>
    %101 = vector.shape_cast %100 : vector<1x1x128xf32> to vector<1x128xf32>
    %cst_38 = arith.constant dense<0.000000e+00> : vector<32xf32>
    %102 = vector.multi_reduction <add>, %97, %cst_38 [1] : vector<32x128xf32> to vector<32xf32>
    %103 = vector.shape_cast %102 : vector<32xf32> to vector<32x1xf32>
    %cst_39 = arith.constant 1.280000e+02 : f32
    %104 = vector.broadcast %cst_39 : f32 to vector<32x1xf32>
    %105 = arith.divf %103, %104 : vector<32x1xf32>
    %106 = vector.broadcast %105 : vector<32x1xf32> to vector<32x128xf32>
    %107 = arith.subf %97, %106 : vector<32x128xf32>
    %108 = arith.mulf %107, %107 : vector<32x128xf32>
    %cst_40 = arith.constant dense<0.000000e+00> : vector<32xf32>
    %109 = vector.multi_reduction <add>, %108, %cst_40 [1] : vector<32x128xf32> to vector<32xf32>
    %110 = vector.shape_cast %109 : vector<32xf32> to vector<32x1xf32>
    %cst_41 = arith.constant 1.280000e+02 : f32
    %111 = vector.broadcast %cst_41 : f32 to vector<32x1xf32>
    %112 = arith.divf %110, %111 : vector<32x1xf32>
    %cst_42 = arith.constant 9.99999996E-13 : f32
    %113 = vector.broadcast %cst_42 : f32 to vector<32x1xf32>
    %114 = arith.addf %112, %113 : vector<32x1xf32>
    %115 = math.rsqrt %114 : vector<32x1xf32>
    %116 = vector.broadcast %115 : vector<32x1xf32> to vector<32x128xf32>
    %117 = arith.mulf %107, %116 : vector<32x128xf32>
    %118 = vector.broadcast %99 : vector<1x128xf32> to vector<32x128xf32>
    %119 = arith.mulf %117, %118 : vector<32x128xf32>
    %120 = vector.broadcast %101 : vector<1x128xf32> to vector<32x128xf32>
    %121 = arith.addf %119, %120 : vector<32x128xf32>
    %122 = arith.truncf %121 : vector<32x128xf32> to vector<32x128xbf16>
    %c0_43 = arith.constant 0 : index
    %c0_44 = arith.constant 0 : index
    %c0_45 = arith.constant 0 : index
    %123 = vector.load %arg12[%c0_43, %c0_44, %c0_45] : memref<1x128x512xbf16, #tpu.memory_space<vmem>>, vector<1x128x512xbf16>
    %124 = vector.shape_cast %123 : vector<1x128x512xbf16> to vector<128x512xbf16>
    %cst_46 = arith.constant dense<0.000000e+00> : vector<32x512xf32>
    %125 = tpu.matmul %122, %124, %cst_46 {dimension_numbers = #tpu.dot_dimension_numbers<[1], [0], [0], [1], [0, 0, 1, 1], [], []>} : vector<32x128xbf16>, vector<128x512xbf16>, vector<32x512xf32> -> vector<32x512xf32>
    %c0_47 = arith.constant 0 : index
    %c0_48 = arith.constant 0 : index
    %c0_49 = arith.constant 0 : index
    %126 = vector.load %arg13[%c0_47, %c0_48, %c0_49] : memref<1x1x512xf32, #tpu.memory_space<vmem>>, vector<1x1x512xf32>
    %127 = vector.shape_cast %126 : vector<1x1x512xf32> to vector<1x512xf32>
    %128 = vector.broadcast %127 : vector<1x512xf32> to vector<32x512xf32>
    %129 = arith.addf %125, %128 : vector<32x512xf32>
    %cst_50 = arith.constant 5.000000e-01 : f32
    %130 = vector.broadcast %cst_50 : f32 to vector<32x512xf32>
    %131 = arith.mulf %130, %129 : vector<32x512xf32>
    %cst_51 = arith.constant 4.471500e-02 : f32
    %132 = vector.broadcast %cst_51 : f32 to vector<32x512xf32>
    %133 = arith.mulf %132, %129 : vector<32x512xf32>
    %134 = arith.mulf %133, %129 : vector<32x512xf32>
    %135 = arith.mulf %134, %129 : vector<32x512xf32>
    %136 = arith.addf %129, %135 : vector<32x512xf32>
    %cst_52 = arith.constant 0.797884583 : f32
    %137 = vector.broadcast %cst_52 : f32 to vector<32x512xf32>
    %138 = arith.mulf %137, %136 : vector<32x512xf32>
    %139 = math.tanh %138 : vector<32x512xf32>
    %cst_53 = arith.constant 1.000000e+00 : f32
    %140 = vector.broadcast %cst_53 : f32 to vector<32x512xf32>
    %141 = arith.addf %140, %139 : vector<32x512xf32>
    %142 = arith.mulf %131, %141 : vector<32x512xf32>
    %143 = arith.truncf %142 : vector<32x512xf32> to vector<32x512xbf16>
    %c0_54 = arith.constant 0 : index
    %c0_55 = arith.constant 0 : index
    %c0_56 = arith.constant 0 : index
    %144 = vector.load %arg14[%c0_54, %c0_55, %c0_56] : memref<1x512x128xbf16, #tpu.memory_space<vmem>>, vector<1x512x128xbf16>
    %145 = vector.shape_cast %144 : vector<1x512x128xbf16> to vector<512x128xbf16>
    %cst_57 = arith.constant dense<0.000000e+00> : vector<32x128xf32>
    %146 = tpu.matmul %143, %145, %cst_57 {dimension_numbers = #tpu.dot_dimension_numbers<[1], [0], [0], [1], [0, 0, 1, 1], [], []>} : vector<32x512xbf16>, vector<512x128xbf16>, vector<32x128xf32> -> vector<32x128xf32>
    %c0_58 = arith.constant 0 : index
    %c0_59 = arith.constant 0 : index
    %c0_60 = arith.constant 0 : index
    %147 = vector.load %arg15[%c0_58, %c0_59, %c0_60] : memref<1x1x128xf32, #tpu.memory_space<vmem>>, vector<1x1x128xf32>
    %148 = vector.shape_cast %147 : vector<1x1x128xf32> to vector<1x128xf32>
    %149 = vector.broadcast %148 : vector<1x128xf32> to vector<32x128xf32>
    %150 = arith.addf %146, %149 : vector<32x128xf32>
    %151 = arith.addf %121, %150 : vector<32x128xf32>
    %c0_61 = arith.constant 0 : index
    %c0_62 = arith.constant 0 : index
    %c0_63 = arith.constant 0 : index
    %152 = vector.load %arg16[%c0_61, %c0_62, %c0_63] : memref<1x1x128xf32, #tpu.memory_space<vmem>>, vector<1x1x128xf32>
    %153 = vector.shape_cast %152 : vector<1x1x128xf32> to vector<1x128xf32>
    %c0_64 = arith.constant 0 : index
    %c0_65 = arith.constant 0 : index
    %c0_66 = arith.constant 0 : index
    %154 = vector.load %arg17[%c0_64, %c0_65, %c0_66] : memref<1x1x128xf32, #tpu.memory_space<vmem>>, vector<1x1x128xf32>
    %155 = vector.shape_cast %154 : vector<1x1x128xf32> to vector<1x128xf32>
    %cst_67 = arith.constant dense<0.000000e+00> : vector<32xf32>
    %156 = vector.multi_reduction <add>, %151, %cst_67 [1] : vector<32x128xf32> to vector<32xf32>
    %157 = vector.shape_cast %156 : vector<32xf32> to vector<32x1xf32>
    %cst_68 = arith.constant 1.280000e+02 : f32
    %158 = vector.broadcast %cst_68 : f32 to vector<32x1xf32>
    %159 = arith.divf %157, %158 : vector<32x1xf32>
    %160 = vector.broadcast %159 : vector<32x1xf32> to vector<32x128xf32>
    %161 = arith.subf %151, %160 : vector<32x128xf32>
    %162 = arith.mulf %161, %161 : vector<32x128xf32>
    %cst_69 = arith.constant dense<0.000000e+00> : vector<32xf32>
    %163 = vector.multi_reduction <add>, %162, %cst_69 [1] : vector<32x128xf32> to vector<32xf32>
    %164 = vector.shape_cast %163 : vector<32xf32> to vector<32x1xf32>
    %cst_70 = arith.constant 1.280000e+02 : f32
    %165 = vector.broadcast %cst_70 : f32 to vector<32x1xf32>
    %166 = arith.divf %164, %165 : vector<32x1xf32>
    %cst_71 = arith.constant 9.99999996E-13 : f32
    %167 = vector.broadcast %cst_71 : f32 to vector<32x1xf32>
    %168 = arith.addf %166, %167 : vector<32x1xf32>
    %169 = math.rsqrt %168 : vector<32x1xf32>
    %170 = vector.broadcast %169 : vector<32x1xf32> to vector<32x128xf32>
    %171 = arith.mulf %161, %170 : vector<32x128xf32>
    %172 = vector.broadcast %153 : vector<1x128xf32> to vector<32x128xf32>
    %173 = arith.mulf %171, %172 : vector<32x128xf32>
    %174 = vector.broadcast %155 : vector<1x128xf32> to vector<32x128xf32>
    %175 = arith.addf %173, %174 : vector<32x128xf32>
    %c0_72 = arith.constant 0 : index
    %c0_73 = arith.constant 0 : index
    %176 = vector.load %arg21[%c0_72, %c0_73] : memref<32x128xf32, #tpu.memory_space<vmem>>, vector<32x128xf32>
    tpu.vector_store %arg21[%c0_72, %c0_73], %175 {strides = array<i32>} : memref<32x128xf32, #tpu.memory_space<vmem>>, vector<32x128xf32>,
    %c1_i32 = arith.constant 1 : i32
    %177 = arith.cmpi eq, %arg0, %c1_i32 : i32
    %178 = arith.extui %177 : i1 to i32
    %c0_i32_74 = arith.constant 0 : i32
    %179 = arith.cmpi ne, %178, %c0_i32_74 : i32
    scf.if %179 {
      %180 = vector.shape_cast %175 : vector<32x128xf32> to vector<2x16x128xf32>
      %181 = vector.extract_strided_slice %180 {offsets = [0, 0, 0], sizes = [2, 1, 128], strides = [1, 1, 1]} : vector<2x16x128xf32> to vector<2x1x128xf32>
      %182 = vector.shape_cast %181 : vector<2x1x128xf32> to vector<2x128xf32>
      %183 = arith.truncf %182 : vector<2x128xf32> to vector<2x128xbf16>
      %c0_75 = arith.constant 0 : index
      %c0_76 = arith.constant 0 : index
      %184 = vector.load %arg18[%c0_75, %c0_76] : memref<128x2xbf16, #tpu.memory_space<vmem>>, vector<128x2xbf16>
      %cst_77 = arith.constant dense<0.000000e+00> : vector<2x2xf32>
      %185 = tpu.matmul %183, %184, %cst_77 {dimension_numbers = #tpu.dot_dimension_numbers<[1], [0], [0], [1], [0, 0, 1, 1], [], []>} : vector<2x128xbf16>, vector<128x2xbf16>, vector<2x2xf32> -> vector<2x2xf32>
      %c0_78 = arith.constant 0 : index
      %c0_79 = arith.constant 0 : index
      %186 = vector.load %arg19[%c0_78, %c0_79] : memref<1x2xf32, #tpu.memory_space<vmem>>, vector<1x2xf32>
      %187 = vector.broadcast %186 : vector<1x2xf32> to vector<2x2xf32>
      %188 = arith.addf %185, %187 : vector<2x2xf32>
      %c0_80 = arith.constant 0 : index
      %c0_81 = arith.constant 0 : index
      %189 = vector.load %arg20[%c0_80, %c0_81] : memref<2x2xf32, #tpu.memory_space<vmem>>, vector<2x2xf32>
      tpu.vector_store %arg20[%c0_80, %c0_81], %188 {strides = array<i32>} : memref<2x2xf32, #tpu.memory_space<vmem>>, vector<2x2xf32>,
    } else {
    }
    return
  }
  func.func @transform_0(%arg0: i32) -> (i32, i32) {
    %c0_i32 = arith.constant 0 : i32
    %c0_i32_0 = arith.constant 0 : i32
    %c0_i32_1 = arith.constant 0 : i32
    return %c0_i32, %c0_i32_0 : i32, i32
  }
  func.func @transform_1(%arg0: i32) -> (i32, i32) {
    %c0_i32 = arith.constant 0 : i32
    %c0_i32_0 = arith.constant 0 : i32
    %c0_i32_1 = arith.constant 0 : i32
    return %c0_i32, %c0_i32_0 : i32, i32
  }
  func.func @transform_2(%arg0: i32) -> (i32, i32) {
    %c0_i32 = arith.constant 0 : i32
    %c0_i32_0 = arith.constant 0 : i32
    %c0_i32_1 = arith.constant 0 : i32
    return %c0_i32, %c0_i32_0 : i32, i32
  }
  func.func @transform_3(%arg0: i32) -> (i32, i32) {
    %c0_i32 = arith.constant 0 : i32
    %c0_i32_0 = arith.constant 0 : i32
    %c0_i32_1 = arith.constant 0 : i32
    return %c0_i32, %c0_i32_0 : i32, i32
  }
  func.func @transform_4(%arg0: i32) -> (i32, i32) {
    %c0_i32 = arith.constant 0 : i32
    %c0_i32_0 = arith.constant 0 : i32
    %c0_i32_1 = arith.constant 0 : i32
    return %c0_i32, %c0_i32_0 : i32, i32
  }
  func.func @transform_5(%arg0: i32) -> (i32, i32, i32) {
    %c0_i32 = arith.constant 0 : i32
    %c0_i32_0 = arith.constant 0 : i32
    %c0_i32_1 = arith.constant 0 : i32
    return %arg0, %c0_i32, %c0_i32_0 : i32, i32, i32
  }
  func.func @transform_6(%arg0: i32) -> (i32, i32, i32) {
    %c0_i32 = arith.constant 0 : i32
    %c0_i32_0 = arith.constant 0 : i32
    %c0_i32_1 = arith.constant 0 : i32
    return %arg0, %c0_i32, %c0_i32_0 : i32, i32, i32
  }
  func.func @transform_7(%arg0: i32) -> (i32, i32, i32) {
    %c0_i32 = arith.constant 0 : i32
    %c0_i32_0 = arith.constant 0 : i32
    %c0_i32_1 = arith.constant 0 : i32
    return %arg0, %c0_i32, %c0_i32_0 : i32, i32, i32
  }
  func.func @transform_8(%arg0: i32) -> (i32, i32, i32) {
    %c0_i32 = arith.constant 0 : i32
    %c0_i32_0 = arith.constant 0 : i32
    %c0_i32_1 = arith.constant 0 : i32
    return %arg0, %c0_i32, %c0_i32_0 : i32, i32, i32
  }
  func.func @transform_9(%arg0: i32) -> (i32, i32, i32) {
    %c0_i32 = arith.constant 0 : i32
    %c0_i32_0 = arith.constant 0 : i32
    %c0_i32_1 = arith.constant 0 : i32
    return %arg0, %c0_i32, %c0_i32_0 : i32, i32, i32
  }
  func.func @transform_10(%arg0: i32) -> (i32, i32, i32) {
    %c0_i32 = arith.constant 0 : i32
    %c0_i32_0 = arith.constant 0 : i32
    %c0_i32_1 = arith.constant 0 : i32
    return %arg0, %c0_i32, %c0_i32_0 : i32, i32, i32
  }
  func.func @transform_11(%arg0: i32) -> (i32, i32, i32) {
    %c0_i32 = arith.constant 0 : i32
    %c0_i32_0 = arith.constant 0 : i32
    %c0_i32_1 = arith.constant 0 : i32
    return %arg0, %c0_i32, %c0_i32_0 : i32, i32, i32
  }
  func.func @transform_12(%arg0: i32) -> (i32, i32, i32) {
    %c0_i32 = arith.constant 0 : i32
    %c0_i32_0 = arith.constant 0 : i32
    %c0_i32_1 = arith.constant 0 : i32
    return %arg0, %c0_i32, %c0_i32_0 : i32, i32, i32
  }
  func.func @transform_13(%arg0: i32) -> (i32, i32, i32) {
    %c0_i32 = arith.constant 0 : i32
    %c0_i32_0 = arith.constant 0 : i32
    %c0_i32_1 = arith.constant 0 : i32
    return %arg0, %c0_i32, %c0_i32_0 : i32, i32, i32
  }
  func.func @transform_14(%arg0: i32) -> (i32, i32, i32) {
    %c0_i32 = arith.constant 0 : i32
    %c0_i32_0 = arith.constant 0 : i32
    %c0_i32_1 = arith.constant 0 : i32
    return %arg0, %c0_i32, %c0_i32_0 : i32, i32, i32
  }
  func.func @transform_15(%arg0: i32) -> (i32, i32, i32) {
    %c0_i32 = arith.constant 0 : i32
    %c0_i32_0 = arith.constant 0 : i32
    %c0_i32_1 = arith.constant 0 : i32
    return %arg0, %c0_i32, %c0_i32_0 : i32, i32, i32
  }
  func.func @transform_16(%arg0: i32) -> (i32, i32, i32) {
    %c0_i32 = arith.constant 0 : i32
    %c0_i32_0 = arith.constant 0 : i32
    %c0_i32_1 = arith.constant 0 : i32
    return %arg0, %c0_i32, %c0_i32_0 : i32, i32, i32
  }
  func.func @transform_17(%arg0: i32) -> (i32, i32) {
    %c0_i32 = arith.constant 0 : i32
    %c0_i32_0 = arith.constant 0 : i32
    %c0_i32_1 = arith.constant 0 : i32
    return %c0_i32, %c0_i32_0 : i32, i32
  }
  func.func @transform_18(%arg0: i32) -> (i32, i32) {
    %c0_i32 = arith.constant 0 : i32
    %c0_i32_0 = arith.constant 0 : i32
    %c0_i32_1 = arith.constant 0 : i32
    return %c0_i32, %c0_i32_0 : i32, i32
  }
  func.func @transform_19(%arg0: i32) -> (i32, i32) {
    %c0_i32 = arith.constant 0 : i32
    %c0_i32_0 = arith.constant 0 : i32
    %c0_i32_1 = arith.constant 0 : i32
    return %c0_i32, %c0_i32_0 : i32, i32
  }
}

</mosaic_0001>

<llo_original>
// kernel: bert_forward.1
$region0: #{bert_forward.1}
  #allocation0 [shape = 'u32[]', space=smem, size = 0x4, offset = 0x4, fixed_abs, tag = 'smem constant byte address 0x4 - core index']
  #allocation1 [shape = 'u32[144,128]{1,0:T(1,128)}', space=vmem, size = 0x12000, scoped, tag = 'internal scratch']
  #allocation2 [shape = 'f32[32,128]{1,0:T(8,128)}', space=vmem, size = 0x4000, scoped, tag = 'scratch operand']
  %s0 = inlined_call_operand.vmem [shape: s32[32,1], index: 0, kind: input, shape index: {}]
  %s1 = inlined_call_operand.vmem [shape: bf16[64,128], index: 1, kind: input, shape index: {}]
  %s2 = inlined_call_operand.vmem [shape: f32[32,128], index: 2, kind: input, shape index: {}]
  %s3 = inlined_call_operand.vmem [shape: f32[1,128], index: 3, kind: input, shape index: {}]
  %s4 = inlined_call_operand.vmem [shape: f32[1,128], index: 4, kind: input, shape index: {}]
  %s5 = inlined_call_operand.hbm [shape: bf16[2,128,384], index: 5, kind: input, shape index: {}]
  %s6 = inlined_call_operand.vmem [shape: f32[2,1,384], index: 6, kind: input, shape index: {}]
  %s7 = inlined_call_operand.vmem [shape: bf16[2,128,128], index: 7, kind: input, shape index: {}]
  %s8 = inlined_call_operand.vmem [shape: f32[2,1,128], index: 8, kind: input, shape index: {}]
  %s9 = inlined_call_operand.vmem [shape: f32[2,1,128], index: 9, kind: input, shape index: {}]
  %s10 = inlined_call_operand.vmem [shape: f32[2,1,128], index: 10, kind: input, shape index: {}]
  %s11 = inlined_call_operand.hbm [shape: bf16[2,128,512], index: 11, kind: input, shape index: {}]
  %s12 = inlined_call_operand.vmem [shape: f32[2,1,512], index: 12, kind: input, shape index: {}]
  %s13 = inlined_call_operand.hbm [shape: bf16[2,512,128], index: 13, kind: input, shape index: {}]
  %s14 = inlined_call_operand.vmem [shape: f32[2,1,128], index: 14, kind: input, shape index: {}]
  %s15 = inlined_call_operand.vmem [shape: f32[2,1,128], index: 15, kind: input, shape index: {}]
  %s16 = inlined_call_operand.vmem [shape: f32[2,1,128], index: 16, kind: input, shape index: {}]
  %s17 = inlined_call_operand.vmem [shape: bf16[128,2], index: 17, kind: input, shape index: {}]
  %s18 = inlined_call_operand.vmem [shape: f32[1,2], index: 18, kind: input, shape index: {}]
  %s19 = inlined_call_operand.hbm [shape: f32[2,2], index: 19, kind: output, shape index: {}]
  %s20 = sld [smem:[#allocation0]]
  $region129: #{bert_forward.1} parent=0
    _
  %s22 = ssub.s32 1, %s20
  %s23 = scalar_select 0, %s22, %s20
  $region1: #{bert_forward.1} parent=0
    #allocation3 [shape = 'u8[196608]{0}', space=vmem, size = 0x30000, scoped, tag = 'input window, operand 5']
    #allocation4 [shape = 's32[2]{0}', space=sflag, size = 0x8, scoped, tag = 'scoped memory for bert_forward.1']
    #allocation5 [shape = 's32[2]{0}', space=sflag, size = 0x8, scoped, tag = 'scoped memory for bert_forward.1']
    #allocation6 [shape = 'u8[262144]{0}', space=vmem, size = 0x40000, scoped, tag = 'input window, operand 11']
    #allocation7 [shape = 's32[2]{0}', space=sflag, size = 0x8, scoped, tag = 'scoped memory for bert_forward.1']
    #allocation8 [shape = 'u8[262144]{0}', space=vmem, size = 0x40000, scoped, tag = 'input window, operand 13']
    #allocation9 [shape = 'u8[1024]{0}', space=vmem, size = 0x400, scoped, tag = 'output window, operand 0, single buffered']
    %24 = vsyncpa [#allocation4], 0
    %s25 = scalar_lea.sflag [#allocation4], 1
    %26 = vsyncpa %s25, 0
    %27 = vsyncpa [#allocation7], 0
    %s28 = scalar_lea.sflag [#allocation7], 1
    %29 = vsyncpa %s28, 0
    %30 = vsyncpa [#allocation5], 0
    loop: start=0, step=1, limit=4
    $region2: #{bert_forward.1} parent=1 // loop_pre_header
      _
    $region3: #{bert_forward.1} parent=1 // loop_header
      %s32 = sphi 0, %s36
      %p33 = scmp.ge.s32.totalorder %s32, 4
      %s40 = sphi 0, %s40
      %s42 = sphi 0, %s40
      %s43 = sphi 0, %s42
      %s57 = sphi 0, %s43
      %s61 = sphi 0, %s61
      %s63 = sphi 0, %s61
      %s64 = sphi 0, %s63
      %s78 = sphi 0, %s64
      %s82 = sphi 0, %s82
      %s84 = sphi 0, %s82
      %s85 = sphi 0, %s84
      %s99 = sphi 0, %s85
      %s103 = sphi 0, %s103
      %s105 = sphi 0, %s103
      %s106 = sphi 0, %s105
      %s120 = sphi 0, %s106
      %s124 = sphi 0, %s124
      %s126 = sphi 0, %s124
      %s127 = sphi 0, %s126
      %s141 = sphi 0, %s127
      %s147 = sphi 0, %s149
      %s150 = sphi 0, %s147
      %s151 = sphi 0, %s150
      %s167 = sphi 0, %s151
      %s173 = sphi 0, %s175
      %s176 = sphi 0, %s173
      %s177 = sphi 0, %s176
      %s193 = sphi 0, %s177
      %s199 = sphi 0, %s201
      %s202 = sphi 0, %s199
      %s203 = sphi 0, %s202
      %s219 = sphi 0, %s203
      %s225 = sphi 0, %s227
      %s228 = sphi 0, %s225
      %s229 = sphi 0, %s228
      %s245 = sphi 0, %s229
      %s251 = sphi 0, %s253
      %s254 = sphi 0, %s251
      %s255 = sphi 0, %s254
      %s271 = sphi 0, %s255
      %s277 = sphi 0, %s279
      %s280 = sphi 0, %s277
      %s281 = sphi 0, %s280
      %s297 = sphi 0, %s281
      %s303 = sphi 0, %s305
      %s306 = sphi 0, %s303
      %s307 = sphi 0, %s306
      %s323 = sphi 0, %s307
      %s329 = sphi 0, %s331
      %s332 = sphi 0, %s329
      %s333 = sphi 0, %s332
      %s349 = sphi 0, %s333
      %s355 = sphi 0, %s357
      %s358 = sphi 0, %s355
      %s359 = sphi 0, %s358
      %s375 = sphi 0, %s359
      %s381 = sphi 0, %s383
      %s384 = sphi 0, %s381
      %s385 = sphi 0, %s384
      %s401 = sphi 0, %s385
      %s407 = sphi 0, %s409
      %s410 = sphi 0, %s407
      %s411 = sphi 0, %s410
      %s427 = sphi 0, %s411
      %s433 = sphi 0, %s435
      %s436 = sphi 0, %s433
      %s437 = sphi 0, %s436
      %s453 = sphi 0, %s437
      %s457 = sphi 0, %s457
      %s459 = sphi 0, %s457
      %s460 = sphi 0, %s459
      %s474 = sphi 0, %s460
      %s478 = sphi 0, %s478
      %s480 = sphi 0, %s478
      %s481 = sphi 0, %s480
      %s495 = sphi 0, %s481
      %s499 = sphi 0, %s499
      %s501 = sphi 0, %s499
      %s502 = sphi 0, %s501
      %s516 = sphi 0, %s502
    $region4: #{bert_forward.1} parent=1 // loop_header_branch
      %35 = sbr.rel (%p33) target = $region8
    $region5: #{bert_forward.1} parent=1 // loop_body
      %s37 = ssub.s32 %s32, 1
      %s38 = ssub.s32 %s32, 2
      %s39 = sadd.s32 %s32, 1
      %s41 = sadd.s32 %s40, 1
      %p44 = scmp.eq.s32.totalorder %s32, 1
      %p45 = scmp.ne.s32.totalorder %s40, %s42
      %p46 = scmp.eq.s32.totalorder %s32, 0
      %p47 = por %p45, %p46
      %p48 = scmp.ne.s32.totalorder %s40, %s42
      %p49 = scmp.eq.s32.totalorder %s37, 1
      %p50 = por %p48, %p49
      %p51 = scmp.ne.s32.totalorder %s42, %s43
      %p52 = scmp.eq.s32.totalorder %s37, 0
      %p53 = por %p51, %p52
      %p54 = scmp.ne.s32.totalorder %s42, %s43
      %p55 = scmp.eq.s32.totalorder %s38, 1
      %p56 = por %p54, %p55
      %p58 = scmp.ne.s32.totalorder %s43, %s57
      %p59 = scmp.eq.s32.totalorder %s38, 0
      %p60 = por %p58, %p59
      %s62 = sadd.s32 %s61, 1
      %p65 = scmp.eq.s32.totalorder %s32, 1
      %p66 = scmp.ne.s32.totalorder %s61, %s63
      %p67 = scmp.eq.s32.totalorder %s32, 0
      %p68 = por %p66, %p67
      %p69 = scmp.ne.s32.totalorder %s61, %s63
      %p70 = scmp.eq.s32.totalorder %s37, 1
      %p71 = por %p69, %p70
      %p72 = scmp.ne.s32.totalorder %s63, %s64
      %p73 = scmp.eq.s32.totalorder %s37, 0
      %p74 = por %p72, %p73
      %p75 = scmp.ne.s32.totalorder %s63, %s64
      %p76 = scmp.eq.s32.totalorder %s38, 1
      %p77 = por %p75, %p76
      %p79 = scmp.ne.s32.totalorder %s64, %s78
      %p80 = scmp.eq.s32.totalorder %s38, 0
      %p81 = por %p79, %p80
      %s83 = sadd.s32 %s82, 1
      %p86 = scmp.eq.s32.totalorder %s32, 1
      %p87 = scmp.ne.s32.totalorder %s82, %s84
      %p88 = scmp.eq.s32.totalorder %s32, 0
      %p89 = por %p87, %p88
      %p90 = scmp.ne.s32.totalorder %s82, %s84
      %p91 = scmp.eq.s32.totalorder %s37, 1
      %p92 = por %p90, %p91
      %p93 = scmp.ne.s32.totalorder %s84, %s85
      %p94 = scmp.eq.s32.totalorder %s37, 0
      %p95 = por %p93, %p94
      %p96 = scmp.ne.s32.totalorder %s84, %s85
      %p97 = scmp.eq.s32.totalorder %s38, 1
      %p98 = por %p96, %p97
      %p100 = scmp.ne.s32.totalorder %s85, %s99
      %p101 = scmp.eq.s32.totalorder %s38, 0
      %p102 = por %p100, %p101
      %s104 = sadd.s32 %s103, 1
      %p107 = scmp.eq.s32.totalorder %s32, 1
      %p108 = scmp.ne.s32.totalorder %s103, %s105
      %p109 = scmp.eq.s32.totalorder %s32, 0
      %p110 = por %p108, %p109
      %p111 = scmp.ne.s32.totalorder %s103, %s105
      %p112 = scmp.eq.s32.totalorder %s37, 1
      %p113 = por %p111, %p112
      %p114 = scmp.ne.s32.totalorder %s105, %s106
      %p115 = scmp.eq.s32.totalorder %s37, 0
      %p116 = por %p114, %p115
      %p117 = scmp.ne.s32.totalorder %s105, %s106
      %p118 = scmp.eq.s32.totalorder %s38, 1
      %p119 = por %p117, %p118
      %p121 = scmp.ne.s32.totalorder %s106, %s120
      %p122 = scmp.eq.s32.totalorder %s38, 0
      %p123 = por %p121, %p122
      %s125 = sadd.s32 %s124, 1
      %p128 = scmp.eq.s32.totalorder %s32, 1
      %p129 = scmp.ne.s32.totalorder %s124, %s126
      %p130 = scmp.eq.s32.totalorder %s32, 0
      %p131 = por %p129, %p130
      %p132 = scmp.ne.s32.totalorder %s124, %s126
      %p133 = scmp.eq.s32.totalorder %s37, 1
      %p134 = por %p132, %p133
      %p135 = scmp.ne.s32.totalorder %s126, %s127
      %p136 = scmp.eq.s32.totalorder %s37, 0
      %p137 = por %p135, %p136
      %p138 = scmp.ne.s32.totalorder %s126, %s127
      %p139 = scmp.eq.s32.totalorder %s38, 1
      %p140 = por %p138, %p139
      %p142 = scmp.ne.s32.totalorder %s127, %s141
      %p143 = scmp.eq.s32.totalorder %s38, 0
      %p144 = por %p142, %p143
      %s145 = ssub.s32 %s32, %s39
      %p146 = scmp.eq.s32.totalorder %s145, 0
      %s148 = sadd.s32 %s147, 1
      %s149 = scalar_select %p146, %s147, %s148
      %p152 = pneg %p146
      %p153 = scmp.eq.s32.totalorder %s32, 1
      %p154 = por %p152, %p153
      %p155 = scmp.ne.s32.totalorder %s147, %s150
      %p156 = scmp.eq.s32.totalorder %s32, 0
      %p157 = por %p155, %p156
      %p158 = scmp.ne.s32.totalorder %s147, %s150
      %p159 = scmp.eq.s32.totalorder %s37, 1
      %p160 = por %p158, %p159
      %p161 = scmp.ne.s32.totalorder %s150, %s151
      %p162 = scmp.eq.s32.totalorder %s37, 0
      %p163 = por %p161, %p162
      %p164 = scmp.ne.s32.totalorder %s150, %s151
      %p165 = scmp.eq.s32.totalorder %s38, 1
      %p166 = por %p164, %p165
      %p168 = scmp.ne.s32.totalorder %s151, %s167
      %p169 = scmp.eq.s32.totalorder %s38, 0
      %p170 = por %p168, %p169
      %s171 = ssub.s32 %s32, %s39
      %p172 = scmp.eq.s32.totalorder %s171, 0
      %s174 = sadd.s32 %s173, 1
      %s175 = scalar_select %p172, %s173, %s174
      %p178 = pneg %p172
      %p179 = scmp.eq.s32.totalorder %s32, 1
      %p180 = por %p178, %p179
      %p181 = scmp.ne.s32.totalorder %s173, %s176
      %p182 = scmp.eq.s32.totalorder %s32, 0
      %p183 = por %p181, %p182
      %p184 = scmp.ne.s32.totalorder %s173, %s176
      %p185 = scmp.eq.s32.totalorder %s37, 1
      %p186 = por %p184, %p185
      %p187 = scmp.ne.s32.totalorder %s176, %s177
      %p188 = scmp.eq.s32.totalorder %s37, 0
      %p189 = por %p187, %p188
      %p190 = scmp.ne.s32.totalorder %s176, %s177
      %p191 = scmp.eq.s32.totalorder %s38, 1
      %p192 = por %p190, %p191
      %p194 = scmp.ne.s32.totalorder %s177, %s193
      %p195 = scmp.eq.s32.totalorder %s38, 0
      %p196 = por %p194, %p195
      %s197 = ssub.s32 %s32, %s39
      %p198 = scmp.eq.s32.totalorder %s197, 0
      %s200 = sadd.s32 %s199, 1
      %s201 = scalar_select %p198, %s199, %s200
      %p204 = pneg %p198
      %p205 = scmp.eq.s32.totalorder %s32, 1
      %p206 = por %p204, %p205
      %p207 = scmp.ne.s32.totalorder %s199, %s202
      %p208 = scmp.eq.s32.totalorder %s32, 0
      %p209 = por %p207, %p208
      %p210 = scmp.ne.s32.totalorder %s199, %s202
      %p211 = scmp.eq.s32.totalorder %s37, 1
      %p212 = por %p210, %p211
      %p213 = scmp.ne.s32.totalorder %s202, %s203
      %p214 = scmp.eq.s32.totalorder %s37, 0
      %p215 = por %p213, %p214
      %p216 = scmp.ne.s32.totalorder %s202, %s203
      %p217 = scmp.eq.s32.totalorder %s38, 1
      %p218 = por %p216, %p217
      %p220 = scmp.ne.s32.totalorder %s203, %s219
      %p221 = scmp.eq.s32.totalorder %s38, 0
      %p222 = por %p220, %p221
      %s223 = ssub.s32 %s32, %s39
      %p224 = scmp.eq.s32.totalorder %s223, 0
      %s226 = sadd.s32 %s225, 1
      %s227 = scalar_select %p224, %s225, %s226
      %p230 = pneg %p224
      %p231 = scmp.eq.s32.totalorder %s32, 1
      %p232 = por %p230, %p231
      %p233 = scmp.ne.s32.totalorder %s225, %s228
      %p234 = scmp.eq.s32.totalorder %s32, 0
      %p235 = por %p233, %p234
      %p236 = scmp.ne.s32.totalorder %s225, %s228
      %p237 = scmp.eq.s32.totalorder %s37, 1
      %p238 = por %p236, %p237
      %p239 = scmp.ne.s32.totalorder %s228, %s229
      %p240 = scmp.eq.s32.totalorder %s37, 0
      %p241 = por %p239, %p240
      %p242 = scmp.ne.s32.totalorder %s228, %s229
      %p243 = scmp.eq.s32.totalorder %s38, 1
      %p244 = por %p242, %p243
      %p246 = scmp.ne.s32.totalorder %s229, %s245
      %p247 = scmp.eq.s32.totalorder %s38, 0
      %p248 = por %p246, %p247
      %s249 = ssub.s32 %s32, %s39
      %p250 = scmp.eq.s32.totalorder %s249, 0
      %s252 = sadd.s32 %s251, 1
      %s253 = scalar_select %p250, %s251, %s252
      %p256 = pneg %p250
      %p257 = scmp.eq.s32.totalorder %s32, 1
      %p258 = por %p256, %p257
      %p259 = scmp.ne.s32.totalorder %s251, %s254
      %p260 = scmp.eq.s32.totalorder %s32, 0
      %p261 = por %p259, %p260
      %p262 = scmp.ne.s32.totalorder %s251, %s254
      %p263 = scmp.eq.s32.totalorder %s37, 1
      %p264 = por %p262, %p263
      %p265 = scmp.ne.s32.totalorder %s254, %s255
      %p266 = scmp.eq.s32.totalorder %s37, 0
      %p267 = por %p265, %p266
      %p268 = scmp.ne.s32.totalorder %s254, %s255
      %p269 = scmp.eq.s32.totalorder %s38, 1
      %p270 = por %p268, %p269
      %p272 = scmp.ne.s32.totalorder %s255, %s271
      %p273 = scmp.eq.s32.totalorder %s38, 0
      %p274 = por %p272, %p273
      %s275 = ssub.s32 %s32, %s39
      %p276 = scmp.eq.s32.totalorder %s275, 0
      %s278 = sadd.s32 %s277, 1
      %s279 = scalar_select %p276, %s277, %s278
      %p282 = pneg %p276
      %p283 = scmp.eq.s32.totalorder %s32, 1
      %p284 = por %p282, %p283
      %p285 = scmp.ne.s32.totalorder %s277, %s280
      %p286 = scmp.eq.s32.totalorder %s32, 0
      %p287 = por %p285, %p286
      %p288 = scmp.ne.s32.totalorder %s277, %s280
      %p289 = scmp.eq.s32.totalorder %s37, 1
      %p290 = por %p288, %p289
      %p291 = scmp.ne.s32.totalorder %s280, %s281
      %p292 = scmp.eq.s32.totalorder %s37, 0
      %p293 = por %p291, %p292
      %p294 = scmp.ne.s32.totalorder %s280, %s281
      %p295 = scmp.eq.s32.totalorder %s38, 1
      %p296 = por %p294, %p295
      %p298 = scmp.ne.s32.totalorder %s281, %s297
      %p299 = scmp.eq.s32.totalorder %s38, 0
      %p300 = por %p298, %p299
      %s301 = ssub.s32 %s32, %s39
      %p302 = scmp.eq.s32.totalorder %s301, 0
      %s304 = sadd.s32 %s303, 1
      %s305 = scalar_select %p302, %s303, %s304
      %p308 = pneg %p302
      %p309 = scmp.eq.s32.totalorder %s32, 1
      %p310 = por %p308, %p309
      %p311 = scmp.ne.s32.totalorder %s303, %s306
      %p312 = scmp.eq.s32.totalorder %s32, 0
      %p313 = por %p311, %p312
      %p314 = scmp.ne.s32.totalorder %s303, %s306
      %p315 = scmp.eq.s32.totalorder %s37, 1
      %p316 = por %p314, %p315
      %p317 = scmp.ne.s32.totalorder %s306, %s307
      %p318 = scmp.eq.s32.totalorder %s37, 0
      %p319 = por %p317, %p318
      %p320 = scmp.ne.s32.totalorder %s306, %s307
      %p321 = scmp.eq.s32.totalorder %s38, 1
      %p322 = por %p320, %p321
      %p324 = scmp.ne.s32.totalorder %s307, %s323
      %p325 = scmp.eq.s32.totalorder %s38, 0
      %p326 = por %p324, %p325
      %s327 = ssub.s32 %s32, %s39
      %p328 = scmp.eq.s32.totalorder %s327, 0
      %s330 = sadd.s32 %s329, 1
      %s331 = scalar_select %p328, %s329, %s330
      %p334 = pneg %p328
      %p335 = scmp.eq.s32.totalorder %s32, 1
      %p336 = por %p334, %p335
      %p337 = scmp.ne.s32.totalorder %s329, %s332
      %p338 = scmp.eq.s32.totalorder %s32, 0
      %p339 = por %p337, %p338
      %p340 = scmp.ne.s32.totalorder %s329, %s332
      %p341 = scmp.eq.s32.totalorder %s37, 1
      %p342 = por %p340, %p341
      %p343 = scmp.ne.s32.totalorder %s332, %s333
      %p344 = scmp.eq.s32.totalorder %s37, 0
      %p345 = por %p343, %p344
      %p346 = scmp.ne.s32.totalorder %s332, %s333
      %p347 = scmp.eq.s32.totalorder %s38, 1
      %p348 = por %p346, %p347
      %p350 = scmp.ne.s32.totalorder %s333, %s349
      %p351 = scmp.eq.s32.totalorder %s38, 0
      %p352 = por %p350, %p351
      %s353 = ssub.s32 %s32, %s39
      %p354 = scmp.eq.s32.totalorder %s353, 0
      %s356 = sadd.s32 %s355, 1
      %s357 = scalar_select %p354, %s355, %s356
      %p360 = pneg %p354
      %p361 = scmp.eq.s32.totalorder %s32, 1
      %p362 = por %p360, %p361
      %p363 = scmp.ne.s32.totalorder %s355, %s358
      %p364 = scmp.eq.s32.totalorder %s32, 0
      %p365 = por %p363, %p364
      %p366 = scmp.ne.s32.totalorder %s355, %s358
      %p367 = scmp.eq.s32.totalorder %s37, 1
      %p368 = por %p366, %p367
      %p369 = scmp.ne.s32.totalorder %s358, %s359
      %p370 = scmp.eq.s32.totalorder %s37, 0
      %p371 = por %p369, %p370
      %p372 = scmp.ne.s32.totalorder %s358, %s359
      %p373 = scmp.eq.s32.totalorder %s38, 1
      %p374 = por %p372, %p373
      %p376 = scmp.ne.s32.totalorder %s359, %s375
      %p377 = scmp.eq.s32.totalorder %s38, 0
      %p378 = por %p376, %p377
      %s379 = ssub.s32 %s32, %s39
      %p380 = scmp.eq.s32.totalorder %s379, 0
      %s382 = sadd.s32 %s381, 1
      %s383 = scalar_select %p380, %s381, %s382
      %p386 = pneg %p380
      %p387 = scmp.eq.s32.totalorder %s32, 1
      %p388 = por %p386, %p387
      %p389 = scmp.ne.s32.totalorder %s381, %s384
      %p390 = scmp.eq.s32.totalorder %s32, 0
      %p391 = por %p389, %p390
      %p392 = scmp.ne.s32.totalorder %s381, %s384
      %p393 = scmp.eq.s32.totalorder %s37, 1
      %p394 = por %p392, %p393
      %p395 = scmp.ne.s32.totalorder %s384, %s385
      %p396 = scmp.eq.s32.totalorder %s37, 0
      %p397 = por %p395, %p396
      %p398 = scmp.ne.s32.totalorder %s384, %s385
      %p399 = scmp.eq.s32.totalorder %s38, 1
      %p400 = por %p398, %p399
      %p402 = scmp.ne.s32.totalorder %s385, %s401
      %p403 = scmp.eq.s32.totalorder %s38, 0
      %p404 = por %p402, %p403
      %s405 = ssub.s32 %s32, %s39
      %p406 = scmp.eq.s32.totalorder %s405, 0
      %s408 = sadd.s32 %s407, 1
      %s409 = scalar_select %p406, %s407, %s408
      %p412 = pneg %p406
      %p413 = scmp.eq.s32.totalorder %s32, 1
      %p414 = por %p412, %p413
      %p415 = scmp.ne.s32.totalorder %s407, %s410
      %p416 = scmp.eq.s32.totalorder %s32, 0
      %p417 = por %p415, %p416
      %p418 = scmp.ne.s32.totalorder %s407, %s410
      %p419 = scmp.eq.s32.totalorder %s37, 1
      %p420 = por %p418, %p419
      %p421 = scmp.ne.s32.totalorder %s410, %s411
      %p422 = scmp.eq.s32.totalorder %s37, 0
      %p423 = por %p421, %p422
      %p424 = scmp.ne.s32.totalorder %s410, %s411
      %p425 = scmp.eq.s32.totalorder %s38, 1
      %p426 = por %p424, %p425
      %p428 = scmp.ne.s32.totalorder %s411, %s427
      %p429 = scmp.eq.s32.totalorder %s38, 0
      %p430 = por %p428, %p429
      %s431 = ssub.s32 %s32, %s39
      %p432 = scmp.eq.s32.totalorder %s431, 0
      %s434 = sadd.s32 %s433, 1
      %s435 = scalar_select %p432, %s433, %s434
      %p438 = pneg %p432
      %p439 = scmp.eq.s32.totalorder %s32, 1
      %p440 = por %p438, %p439
      %p441 = scmp.ne.s32.totalorder %s433, %s436
      %p442 = scmp.eq.s32.totalorder %s32, 0
      %p443 = por %p441, %p442
      %p444 = scmp.ne.s32.totalorder %s433, %s436
      %p445 = scmp.eq.s32.totalorder %s37, 1
      %p446 = por %p444, %p445
      %p447 = scmp.ne.s32.totalorder %s436, %s437
      %p448 = scmp.eq.s32.totalorder %s37, 0
      %p449 = por %p447, %p448
      %p450 = scmp.ne.s32.totalorder %s436, %s437
      %p451 = scmp.eq.s32.totalorder %s38, 1
      %p452 = por %p450, %p451
      %p454 = scmp.ne.s32.totalorder %s437, %s453
      %p455 = scmp.eq.s32.totalorder %s38, 0
      %p456 = por %p454, %p455
      %s458 = sadd.s32 %s457, 1
      %p461 = scmp.eq.s32.totalorder %s32, 1
      %p462 = scmp.ne.s32.totalorder %s457, %s459
      %p463 = scmp.eq.s32.totalorder %s32, 0
      %p464 = por %p462, %p463
      %p465 = scmp.ne.s32.totalorder %s457, %s459
      %p466 = scmp.eq.s32.totalorder %s37, 1
      %p467 = por %p465, %p466
      %p468 = scmp.ne.s32.totalorder %s459, %s460
      %p469 = scmp.eq.s32.totalorder %s37, 0
      %p470 = por %p468, %p469
      %p471 = scmp.ne.s32.totalorder %s459, %s460
      %p472 = scmp.eq.s32.totalorder %s38, 1
      %p473 = por %p471, %p472
      %p475 = scmp.ne.s32.totalorder %s460, %s474
      %p476 = scmp.eq.s32.totalorder %s38, 0
      %p477 = por %p475, %p476
      %s479 = sadd.s32 %s478, 1
      %p482 = scmp.eq.s32.totalorder %s32, 1
      %p483 = scmp.ne.s32.totalorder %s478, %s480
      %p484 = scmp.eq.s32.totalorder %s32, 0
      %p485 = por %p483, %p484
      %p486 = scmp.ne.s32.totalorder %s478, %s480
      %p487 = scmp.eq.s32.totalorder %s37, 1
      %p488 = por %p486, %p487
      %p489 = scmp.ne.s32.totalorder %s480, %s481
      %p490 = scmp.eq.s32.totalorder %s37, 0
      %p491 = por %p489, %p490
      %p492 = scmp.ne.s32.totalorder %s480, %s481
      %p493 = scmp.eq.s32.totalorder %s38, 1
      %p494 = por %p492, %p493
      %p496 = scmp.ne.s32.totalorder %s481, %s495
      %p497 = scmp.eq.s32.totalorder %s38, 0
      %p498 = por %p496, %p497
      %s500 = sadd.s32 %s499, 1
      %p503 = scmp.eq.s32.totalorder %s32, 1
      %p504 = scmp.ne.s32.totalorder %s499, %s501
      %p505 = scmp.eq.s32.totalorder %s32, 0
      %p506 = por %p504, %p505
      %p507 = scmp.ne.s32.totalorder %s499, %s501
      %p508 = scmp.eq.s32.totalorder %s37, 1
      %p509 = por %p507, %p508
      %p510 = scmp.ne.s32.totalorder %s501, %s502
      %p511 = scmp.eq.s32.totalorder %s37, 0
      %p512 = por %p510, %p511
      %p513 = scmp.ne.s32.totalorder %s501, %s502
      %p514 = scmp.eq.s32.totalorder %s38, 1
      %p515 = por %p513, %p514
      %p517 = scmp.ne.s32.totalorder %s502, %s516
      %p518 = scmp.eq.s32.totalorder %s38, 0
      %p519 = por %p517, %p518
      %p520 = scmp.le.s32.totalorder 1, %s32
      %p521 = scmp.lt.s32.totalorder %s32, 3
      %p522 = pnand %p520, %p521
      %p523 = pneg %p522
      // Predicated region
      $region9: #{bert_forward.1} parent=5 // pred_check
        _
      $region10: #{bert_forward.1} parent=5 // pred_check_branch
        %525 = sbr.rel (%p522) target = $region12
      $region11: #{bert_forward.1} parent=5 // pred_region
        %s526 = ssub.s32 %s32, 1
        // Predicated region
        $region13: #{bert_forward.1} parent=11 // pred_check
          %p527 = pneg %p53
        $region14: #{bert_forward.1} parent=11 // pred_check_branch
          %529 = sbr.rel (%p527) target = $region16
        $region15: #{bert_forward.1} parent=11 // pred_region
          _
        $region16: #{bert_forward.1} parent=11 // pred_fallthru
          _
        // Predicated region
        $region17: #{bert_forward.1} parent=11 // pred_check
          %p530 = pneg %p74
        $region18: #{bert_forward.1} parent=11 // pred_check_branch
          %532 = sbr.rel (%p530) target = $region20
        $region19: #{bert_forward.1} parent=11 // pred_region
          _
        $region20: #{bert_forward.1} parent=11 // pred_fallthru
          _
        // Predicated region
        $region21: #{bert_forward.1} parent=11 // pred_check
          %p533 = pneg %p95
        $region22: #{bert_forward.1} parent=11 // pred_check_branch
          %535 = sbr.rel (%p533) target = $region24
        $region23: #{bert_forward.1} parent=11 // pred_region
          _
        $region24: #{bert_forward.1} parent=11 // pred_fallthru
          _
        // Predicated region
        $region25: #{bert_forward.1} parent=11 // pred_check
          %p536 = pneg %p116
        $region26: #{bert_forward.1} parent=11 // pred_check_branch
          %538 = sbr.rel (%p536) target = $region28
        $region27: #{bert_forward.1} parent=11 // pred_region
          _
        $region28: #{bert_forward.1} parent=11 // pred_fallthru
          _
        // Predicated region
        $region29: #{bert_forward.1} parent=11 // pred_check
          %p539 = pneg %p137
        $region30: #{bert_forward.1} parent=11 // pred_check_branch
          %541 = sbr.rel (%p539) target = $region32
        $region31: #{bert_forward.1} parent=11 // pred_region
          _
        $region32: #{bert_forward.1} parent=11 // pred_fallthru
          _
        // Predicated region
        $region33: #{bert_forward.1} parent=11 // pred_check
          %p542 = pneg %p470
        $region34: #{bert_forward.1} parent=11 // pred_check_branch
          %544 = sbr.rel (%p542) target = $region36
        $region35: #{bert_forward.1} parent=11 // pred_region
          _
        $region36: #{bert_forward.1} parent=11 // pred_fallthru
          _
        // Predicated region
        $region37: #{bert_forward.1} parent=11 // pred_check
          %p545 = pneg %p491
        $region38: #{bert_forward.1} parent=11 // pred_check_branch
          %547 = sbr.rel (%p545) target = $region40
        $region39: #{bert_forward.1} parent=11 // pred_region
          _
        $region40: #{bert_forward.1} parent=11 // pred_fallthru
          _
      $region12: #{bert_forward.1} parent=5 // pred_fallthru
        _
      %p548 = scmp.lt.s32.totalorder %s32, 2
      // Predicated region
      $region41: #{bert_forward.1} parent=5 // pred_check
        %p549 = pneg %p548
      $region42: #{bert_forward.1} parent=5 // pred_check_branch
        %551 = sbr.rel (%p549) target = $region44
      $region43: #{bert_forward.1} parent=5 // pred_region
        // Predicated region
        $region45: #{bert_forward.1} parent=43 // pred_check
          %p552 = pneg %p157
        $region46: #{bert_forward.1} parent=43 // pred_check_branch
          %554 = sbr.rel (%p552) target = $region48
        $region47: #{bert_forward.1} parent=43 // pred_region
          %s555 = sand.u32 %s147, 1
          %s556 = scalar_lea.sflag [#allocation4], %s555
          %s557 = sand.u32 %s147, 1
          %s558 = smul.addr %s557, 192
          %s559 = scalar_lea.vmem [#allocation3], %s558
          %s561 = ssub.s32 3072, 3072
          %562 = vsyncadd %s556, %s561
          %s563 = smul.addr %s32, 48
          %s564 = smul.addr %s563, 64
          %s565 = scalar_lea.hbm %s5, %s564
          %s566 = sshll.u32 %s559, 4
          %s567 = int_to_ptr.vmem [resolvable:$true] %s566
          %572 = dma.hbm_to_vmem [thread:$0]  %s565, 3072, %s567, %s556, 192, 192, 12
        $region48: #{bert_forward.1} parent=43 // pred_fallthru
          _
        // Predicated region
        $region49: #{bert_forward.1} parent=43 // pred_check
          %p573 = pneg %p183
        $region50: #{bert_forward.1} parent=43 // pred_check_branch
          %575 = sbr.rel (%p573) target = $region52
        $region51: #{bert_forward.1} parent=43 // pred_region
          %p576 = scmp.lt.s32.totalorder %s32, 1
          %s577 = scalar_select %p576, %s32, 1
          %s578 = smul.addr %s577, 3
          %s579 = scalar_lea.vmem %s6, %s578
        $region52: #{bert_forward.1} parent=43 // pred_fallthru
          _
        // Predicated region
        $region53: #{bert_forward.1} parent=43 // pred_check
          %p580 = pneg %p209
        $region54: #{bert_forward.1} parent=43 // pred_check_branch
          %582 = sbr.rel (%p580) target = $region56
        $region55: #{bert_forward.1} parent=43 // pred_region
          %p583 = scmp.lt.s32.totalorder %s32, 1
          %s584 = scalar_select %p583, %s32, 1
          %s585 = smul.addr %s584, 16
          %s586 = smul.addr %s585, 4
          %s587 = scalar_lea.vmem %s7, %s586
        $region56: #{bert_forward.1} parent=43 // pred_fallthru
          _
        // Predicated region
        $region57: #{bert_forward.1} parent=43 // pred_check
          %p588 = pneg %p235
        $region58: #{bert_forward.1} parent=43 // pred_check_branch
          %590 = sbr.rel (%p588) target = $region60
        $region59: #{bert_forward.1} parent=43 // pred_region
          %p591 = scmp.lt.s32.totalorder %s32, 1
          %s592 = scalar_select %p591, %s32, 1
          %s593 = scalar_lea.vmem %s8, %s592
        $region60: #{bert_forward.1} parent=43 // pred_fallthru
          _
        // Predicated region
        $region61: #{bert_forward.1} parent=43 // pred_check
          %p594 = pneg %p261
        $region62: #{bert_forward.1} parent=43 // pred_check_branch
          %596 = sbr.rel (%p594) target = $region64
        $region63: #{bert_forward.1} parent=43 // pred_region
          %p597 = scmp.lt.s32.totalorder %s32, 1
          %s598 = scalar_select %p597, %s32, 1
          %s599 = scalar_lea.vmem %s9, %s598
        $region64: #{bert_forward.1} parent=43 // pred_fallthru
          _
        // Predicated region
        $region65: #{bert_forward.1} parent=43 // pred_check
          %p600 = pneg %p287
        $region66: #{bert_forward.1} parent=43 // pred_check_branch
          %602 = sbr.rel (%p600) target = $region68
        $region67: #{bert_forward.1} parent=43 // pred_region
          %p603 = scmp.lt.s32.totalorder %s32, 1
          %s604 = scalar_select %p603, %s32, 1
          %s605 = scalar_lea.vmem %s10, %s604
        $region68: #{bert_forward.1} parent=43 // pred_fallthru
          _
        // Predicated region
        $region69: #{bert_forward.1} parent=43 // pred_check
          %p606 = pneg %p313
        $region70: #{bert_forward.1} parent=43 // pred_check_branch
          %608 = sbr.rel (%p606) target = $region72
        $region71: #{bert_forward.1} parent=43 // pred_region
          %s609 = sand.u32 %s32, 1
          %s610 = scalar_lea.sflag [#allocation7], %s609
          %s611 = sand.u32 %s303, 1
          %s612 = smul.addr %s611, 256
          %s613 = scalar_lea.vmem [#allocation6], %s612
          %s615 = ssub.s32 4096, 4096
          %616 = vsyncadd %s610, %s615
          %s617 = smul.addr %s32, 64
          %s618 = smul.addr %s617, 64
          %s619 = scalar_lea.hbm %s11, %s618
          %s620 = sshll.u32 %s613, 4
          %s621 = int_to_ptr.vmem [resolvable:$true] %s620
          %626 = dma.hbm_to_vmem [thread:$0]  %s619, 4096, %s621, %s610, 256, 256, 16
        $region72: #{bert_forward.1} parent=43 // pred_fallthru
          _
        // Predicated region
        $region73: #{bert_forward.1} parent=43 // pred_check
          %p627 = pneg %p339
        $region74: #{bert_forward.1} parent=43 // pred_check_branch
          %629 = sbr.rel (%p627) target = $region76
        $region75: #{bert_forward.1} parent=43 // pred_region
          %p630 = scmp.lt.s32.totalorder %s32, 1
          %s631 = scalar_select %p630, %s32, 1
          %s632 = smul.addr %s631, 4
          %s633 = scalar_lea.vmem %s12, %s632
        $region76: #{bert_forward.1} parent=43 // pred_fallthru
          _
        // Predicated region
        $region77: #{bert_forward.1} parent=43 // pred_check
          %p634 = pneg %p365
        $region78: #{bert_forward.1} parent=43 // pred_check_branch
          %636 = sbr.rel (%p634) target = $region80
        $region79: #{bert_forward.1} parent=43 // pred_region
          %s637 = sand.u32 %s32, 1
          %s638 = scalar_lea.sflag [#allocation7], %s637
          %s639 = sand.u32 %s355, 1
          %s640 = smul.addr %s639, 256
          %s641 = scalar_lea.vmem [#allocation8], %s640
          %s643 = ssub.s32 4096, 4096
          %644 = vsyncadd %s638, %s643
          %s645 = smul.addr %s32, 64
          %s646 = smul.addr %s645, 64
          %s647 = scalar_lea.hbm %s13, %s646
          %s648 = sshll.u32 %s641, 4
          %s649 = int_to_ptr.vmem [resolvable:$true] %s648
          %654 = dma.hbm_to_vmem [thread:$0]  %s647, 4096, %s649, %s638, 64, 64, 4
        $region80: #{bert_forward.1} parent=43 // pred_fallthru
          _
        // Predicated region
        $region81: #{bert_forward.1} parent=43 // pred_check
          %p655 = pneg %p391
        $region82: #{bert_forward.1} parent=43 // pred_check_branch
          %657 = sbr.rel (%p655) target = $region84
        $region83: #{bert_forward.1} parent=43 // pred_region
          %p658 = scmp.lt.s32.totalorder %s32, 1
          %s659 = scalar_select %p658, %s32, 1
          %s660 = scalar_lea.vmem %s14, %s659
        $region84: #{bert_forward.1} parent=43 // pred_fallthru
          _
        // Predicated region
        $region85: #{bert_forward.1} parent=43 // pred_check
          %p661 = pneg %p417
        $region86: #{bert_forward.1} parent=43 // pred_check_branch
          %663 = sbr.rel (%p661) target = $region88
        $region87: #{bert_forward.1} parent=43 // pred_region
          %p664 = scmp.lt.s32.totalorder %s32, 1
          %s665 = scalar_select %p664, %s32, 1
          %s666 = scalar_lea.vmem %s15, %s665
        $region88: #{bert_forward.1} parent=43 // pred_fallthru
          _
        // Predicated region
        $region89: #{bert_forward.1} parent=43 // pred_check
          %p667 = pneg %p443
        $region90: #{bert_forward.1} parent=43 // pred_check_branch
          %669 = sbr.rel (%p667) target = $region92
        $region91: #{bert_forward.1} parent=43 // pred_region
          %p670 = scmp.lt.s32.totalorder %s32, 1
          %s671 = scalar_select %p670, %s32, 1
          %s672 = scalar_lea.vmem %s16, %s671
        $region92: #{bert_forward.1} parent=43 // pred_fallthru
          _
      $region44: #{bert_forward.1} parent=5 // pred_fallthru
        _
      %p673 = scmp.le.s32.totalorder 1, %s32
      %p674 = scmp.lt.s32.totalorder %s32, 3
      %p675 = pnand %p673, %p674
      %p676 = pneg %p675
      // Predicated region
      $region93: #{bert_forward.1} parent=5 // pred_check
        _
      $region94: #{bert_forward.1} parent=5 // pred_check_branch
        %678 = sbr.rel (%p675) target = $region96
      $region95: #{bert_forward.1} parent=5 // pred_region
        %s679 = ssub.s32 %s32, 1
        %s680 = sand.u32 %s150, 1
        %s681 = scalar_lea.sflag [#allocation4], %s680
        %s682 = sand.u32 %s150, 1
        %s683 = smul.addr %s682, 192
        %s684 = scalar_lea.vmem [#allocation3], %s683
        // Predicated region
        $region97: #{bert_forward.1} parent=95 // pred_check
          %p685 = pneg %p163
        $region98: #{bert_forward.1} parent=95 // pred_check_branch
          %687 = sbr.rel (%p685) target = $region100
        $region99: #{bert_forward.1} parent=95 // pred_region
          %688 = dma.done %s681, 3072
        $region100: #{bert_forward.1} parent=95 // pred_fallthru
          _
        %s689 = sand.u32 %s37, 1
        %s690 = scalar_lea.sflag [#allocation7], %s689
        %s691 = sand.u32 %s306, 1
        %s692 = smul.addr %s691, 256
        %s693 = scalar_lea.vmem [#allocation6], %s692
        // Predicated region
        $region101: #{bert_forward.1} parent=95 // pred_check
          %p694 = pneg %p319
        $region102: #{bert_forward.1} parent=95 // pred_check_branch
          %696 = sbr.rel (%p694) target = $region104
        $region103: #{bert_forward.1} parent=95 // pred_region
          %697 = dma.done %s690, 4096
        $region104: #{bert_forward.1} parent=95 // pred_fallthru
          _
        %s698 = sand.u32 %s37, 1
        %s699 = scalar_lea.sflag [#allocation7], %s698
        %s700 = sand.u32 %s358, 1
        %s701 = smul.addr %s700, 256
        %s702 = scalar_lea.vmem [#allocation8], %s701
        // Predicated region
        $region105: #{bert_forward.1} parent=95 // pred_check
          %p703 = pneg %p371
        $region106: #{bert_forward.1} parent=95 // pred_check_branch
          %705 = sbr.rel (%p703) target = $region108
        $region107: #{bert_forward.1} parent=95 // pred_region
          %706 = dma.done %s699, 4096
        $region108: #{bert_forward.1} parent=95 // pred_fallthru
          _
        %p707 = pneg %p53
        %p708 = pneg %p50
        %p709 = pneg %p74
        %p710 = pneg %p71
        %p711 = pneg %p95
        %p712 = pneg %p92
        %p713 = pneg %p116
        %p714 = pneg %p113
        %p715 = pneg %p137
        %p716 = pneg %p134
        %s717 = sand.u32 %s150, 1
        %s718 = scalar_lea.sflag [#allocation4], %s717
        %s719 = sand.u32 %s150, 1
        %s720 = smul.addr %s719, 192
        %s721 = scalar_lea.vmem [#allocation3], %s720
        %p722 = pneg %p163
        %p723 = pneg %p160
        %p724 = scmp.lt.s32.totalorder %s37, 1
        %s725 = scalar_select %p724, %s37, 1
        %s726 = smul.addr %s725, 3
        %s727 = scalar_lea.vmem %s6, %s726
        %p728 = pneg %p189
        %p729 = pneg %p186
        %p730 = scmp.lt.s32.totalorder %s37, 1
        %s731 = scalar_select %p730, %s37, 1
        %s732 = smul.addr %s731, 16
        %s733 = smul.addr %s732, 4
        %s734 = scalar_lea.vmem %s7, %s733
        %p735 = pneg %p215
        %p736 = pneg %p212
        %p737 = scmp.lt.s32.totalorder %s37, 1
        %s738 = scalar_select %p737, %s37, 1
        %s739 = scalar_lea.vmem %s8, %s738
        %p740 = pneg %p241
        %p741 = pneg %p238
        %p742 = scmp.lt.s32.totalorder %s37, 1
        %s743 = scalar_select %p742, %s37, 1
        %s744 = scalar_lea.vmem %s9, %s743
        %p745 = pneg %p267
        %p746 = pneg %p264
        %p747 = scmp.lt.s32.totalorder %s37, 1
        %s748 = scalar_select %p747, %s37, 1
        %s749 = scalar_lea.vmem %s10, %s748
        %p750 = pneg %p293
        %p751 = pneg %p290
        %s752 = sand.u32 %s37, 1
        %s753 = scalar_lea.sflag [#allocation7], %s752
        %s754 = sand.u32 %s306, 1
        %s755 = smul.addr %s754, 256
        %s756 = scalar_lea.vmem [#allocation6], %s755
        %p757 = pneg %p319
        %p758 = pneg %p316
        %p759 = scmp.lt.s32.totalorder %s37, 1
        %s760 = scalar_select %p759, %s37, 1
        %s761 = smul.addr %s760, 4
        %s762 = scalar_lea.vmem %s12, %s761
        %p763 = pneg %p345
        %p764 = pneg %p342
        %s765 = sand.u32 %s37, 1
        %s766 = scalar_lea.sflag [#allocation7], %s765
        %s767 = sand.u32 %s358, 1
        %s768 = smul.addr %s767, 256
        %s769 = scalar_lea.vmem [#allocation8], %s768
        %p770 = pneg %p371
        %p771 = pneg %p368
        %p772 = scmp.lt.s32.totalorder %s37, 1
        %s773 = scalar_select %p772, %s37, 1
        %s774 = scalar_lea.vmem %s14, %s773
        %p775 = pneg %p397
        %p776 = pneg %p394
        %p777 = scmp.lt.s32.totalorder %s37, 1
        %s778 = scalar_select %p777, %s37, 1
        %s779 = scalar_lea.vmem %s15, %s778
        %p780 = pneg %p423
        %p781 = pneg %p420
        %p782 = scmp.lt.s32.totalorder %s37, 1
        %s783 = scalar_select %p782, %s37, 1
        %s784 = scalar_lea.vmem %s16, %s783
        %p785 = pneg %p449
        %p786 = pneg %p446
        %p787 = pneg %p470
        %p788 = pneg %p467
        %p789 = pneg %p491
        %p790 = pneg %p488
        %p791 = pneg %p512
        %p792 = pneg %p509
        %p793 = scmp.lt.s32.totalorder %s37, 1
        %s794 = scalar_select %p793, %s37, 1
        %s795 = smul.addr %s794, 3
        %s796 = scalar_lea.vmem %s6, %s795
        %p797 = scmp.lt.s32.totalorder %s37, 1
        %s798 = scalar_select %p797, %s37, 1
        %s799 = smul.addr %s798, 16
        %s800 = smul.addr %s799, 4
        %s801 = scalar_lea.vmem %s7, %s800
        %p802 = scmp.lt.s32.totalorder %s37, 1
        %s803 = scalar_select %p802, %s37, 1
        %s804 = scalar_lea.vmem %s8, %s803
        %p805 = scmp.lt.s32.totalorder %s37, 1
        %s806 = scalar_select %p805, %s37, 1
        %s807 = scalar_lea.vmem %s9, %s806
        %p808 = scmp.lt.s32.totalorder %s37, 1
        %s809 = scalar_select %p808, %s37, 1
        %s810 = scalar_lea.vmem %s10, %s809
        %p811 = scmp.lt.s32.totalorder %s37, 1
        %s812 = scalar_select %p811, %s37, 1
        %s813 = smul.addr %s812, 4
        %s814 = scalar_lea.vmem %s12, %s813
        %p815 = scmp.lt.s32.totalorder %s37, 1
        %s816 = scalar_select %p815, %s37, 1
        %s817 = scalar_lea.vmem %s14, %s816
        %p818 = scmp.lt.s32.totalorder %s37, 1
        %s819 = scalar_select %p818, %s37, 1
        %s820 = scalar_lea.vmem %s15, %s819
        %p821 = scmp.lt.s32.totalorder %s37, 1
        %s822 = scalar_select %p821, %s37, 1
        %s823 = scalar_lea.vmem %s16, %s822
        %p825 = scmp.eq.s32.totalorder %s37, 0
        // Predicated region
        $region109: #{bert_forward.1} parent=95 // pred_check
          %p826 = pneg %p825
        $region110: #{bert_forward.1} parent=95 // pred_check_branch
          %828 = sbr.rel (%p826) target = $region112
        $region111: #{bert_forward.1} parent=95 // pred_region
          %v829 = vld [vmem:[%s0] sm:$0xff]
          %v830 = vld [vmem:[%s0 + $0x8] sm:$0xff]
          %v831 = vld [vmem:[%s0 + $0x10] sm:$0xff]
          %v832 = vld [vmem:[%s0 + $0x18] sm:$0xff]
          %v833 = vlaneseq
          %v834 = vand.u32 %v833, 127
          %835 = vset.pattern.permute.xlu0 0
          %836 = vperm.xlu0 %835, %v829
          %v837 = vpop.permute.xlu0 %836
          %838 = vset.pattern.permute.xlu0 0
          %839 = vperm.xlu0 %838, %v830
          %v840 = vpop.permute.xlu0 %839
          %841 = vset.pattern.permute.xlu0 0
          %842 = vperm.xlu0 %841, %v831
          %v843 = vpop.permute.xlu0 %842
          %844 = vset.pattern.permute.xlu0 0
          %845 = vperm.xlu0 %844, %v832
          %v846 = vpop.permute.xlu0 %845
          %vm847 = vcmp.eq.s32.totalorder %v837, %v834
          %vm848 = vcmp.eq.s32.totalorder %v840, %v834
          %vm849 = vcmp.eq.s32.totalorder %v843, %v834
          %vm850 = vcmp.eq.s32.totalorder %v846, %v834
          %v851 = vsel %vm847, 1, 0
          %v852 = vsel %vm848, 1, 0
          %v853 = vsel %vm849, 1, 0
          %v854 = vsel %vm850, 1, 0
          %v855 = vcvt.s32.f32 %v851
          %v856 = vcvt.s32.f32 %v852
          %v857 = vcvt.s32.f32 %v853
          %v858 = vcvt.s32.f32 %v854
          %v859 = vpack.c.bf16 %v856, %v855
          %v860 = vpack.c.bf16 %v858, %v857
          %v861 = vld [vmem:[%s1] sm:$0xf]
          %v862 = vld [vmem:[%s1 + $0x4] sm:$0xf]
          %v863 = vld [vmem:[%s1 + $0x8] sm:$0xf]
          %v864 = vld [vmem:[%s1 + $0xc] sm:$0xf]
          %v865 = vld [vmem:[%s1 + $0x10] sm:$0xf]
          %v866 = vld [vmem:[%s1 + $0x14] sm:$0xf]
          %v867 = vld [vmem:[%s1 + $0x18] sm:$0xf]
          %v868 = vld [vmem:[%s1 + $0x1c] sm:$0xf]
          %v869 = vld [vmem:[%s2] sm:$0xff]
          %v870 = vld [vmem:[%s2 + $0x8] sm:$0xff]
          %v871 = vld [vmem:[%s2 + $0x10] sm:$0xff]
          %v872 = vld [vmem:[%s2 + $0x18] sm:$0xff]
          %v881 = vunpack.c.l.b16 %v861
          %v882 = vunpack.c.l.b16 %v862
          %v883 = vunpack.c.l.b16 %v863
          %v884 = vunpack.c.l.b16 %v864
          %v885 = vunpack.c.l.b16 %v865
          %v886 = vunpack.c.l.b16 %v866
          %v887 = vunpack.c.l.b16 %v867
          %v888 = vunpack.c.l.b16 %v868
          %v889 = vpack.c.b16 %v882, %v881
          %v890 = vpack.c.b16 %v884, %v883
          %v891 = vpack.c.b16 %v886, %v885
          %v892 = vpack.c.b16 %v888, %v887
          %vm897 = vcmask 523264
          %v899 = vsel %vm897, %v859, 0
          %v902 = vsel %vm897, %v860, 0
          %904 = vmatprep.subr.bf16.mxu0 0
          %905 = vmatpush1.bf16.msra.mxu0 %v889
          %906 = vmatprep.subr.bf16.mxu0 0
          %907 = vmatpush1.bf16.msra.mxu0 %v890
          %908 = vmatprep.subr.bf16.mxu0 0
          %909 = vmatpush1.bf16.msra.mxu0 %v891
          %910 = vmatprep.subr.bf16.mxu0 0
          %911 = vmatpush1.bf16.msra.mxu0 %v892
          %912 = vmatprep.subr.bf16.mxu0 0
          %913 = vmatpush1.bf16.msra.mxu0 0
          %914 = vmatprep.subr.bf16.mxu0 0
          %915 = vmatpush1.bf16.msra.mxu0 0
          %916 = vmatprep.subr.bf16.mxu0 0
          %917 = vmatpush1.bf16.msra.mxu0 0
          %918 = vmatprep.subr.bf16.mxu0 0
          %919 = vmatpush1.bf16.msra.mxu0 0
          %920 = vmatprep.subr.bf16.mxu0 0
          %921 = vmatpush1.bf16.msra.mxu0 0
          %922 = vmatprep.subr.bf16.mxu0 0
          %923 = vmatpush1.bf16.msra.mxu0 0
          %924 = vmatprep.subr.bf16.mxu0 0
          %925 = vmatpush1.bf16.msra.mxu0 0
          %926 = vmatprep.subr.bf16.mxu0 0
          %927 = vmatpush1.bf16.msra.mxu0 0
          %928 = vmatprep.subr.bf16.mxu0 0
          %929 = vmatpush1.bf16.msra.mxu0 0
          %930 = vmatprep.subr.bf16.mxu0 0
          %931 = vmatpush1.bf16.msra.mxu0 0
          %932 = vmatprep.subr.bf16.mxu0 0
          %933 = vmatpush1.bf16.msra.mxu0 0
          %934 = vmatprep.subr.bf16.mxu0 0
          %935 = vmatpush1.bf16.msra.mxu0 0
          %936 = vmatprep.mubr.bf16.mxu0 0
          %937 = vmatmul.mubr.bf16.gmra.mrb[0].mxu0 %v899
          %v938 = vpop.f32.mrb[0].mxu0
          %v939 = vadd.f32 %v869, %v938
          %v940 = vpop.f32.mrb[0].mxu0
          %v941 = vpop.f32.mrb[0].mxu0
          %v942 = vadd.f32 %v870, %v941
          %v943 = vpop.f32.mrb[0].mxu0
          %944 = vmatprep.mubr.bf16.mxu0 0
          %945 = vmatmul.mubr.bf16.gmra.mrb[0].mxu0 %v902
          %v946 = vpop.f32.mrb[0].mxu0
          %v947 = vadd.f32 %v871, %v946
          %v948 = vpop.f32.mrb[0].mxu0
          %v949 = vpop.f32.mrb[0].mxu0
          %v950 = vadd.f32 %v872, %v949
          %v951 = vpop.f32.mrb[0].mxu0
          %952 = vdwg.mxu0
          %v953 = vld [vmem:[%s3] sm:$0x1]
          %v954 = vld [vmem:[%s4] sm:$0x1]
          %955 = vadd.xlane.f32.xlu0 %v939
          %v956 = vpop.xlane.xlu0 %955
          %957 = vadd.xlane.f32.xlu0 %v942
          %v958 = vpop.xlane.xlu0 %957
          %959 = vadd.xlane.f32.xlu0 %v947
          %v960 = vpop.xlane.xlu0 %959
          %961 = vadd.xlane.f32.xlu0 %v950
          %v962 = vpop.xlane.xlu0 %961
          %v963 = vrcp.pop 128.0
          %v964 = vmul.f32 %v956, %v963
          %v965 = vmul.f32 %v958, %v963
          %v966 = vmul.f32 %v960, %v963
          %v967 = vmul.f32 %v962, %v963
          %v968 = vsub.f32 %v939, %v964
          %v969 = vsub.f32 %v942, %v965
          %v970 = vsub.f32 %v947, %v966
          %v971 = vsub.f32 %v950, %v967
          %v972 = vmul.f32 %v968, %v968
          %v973 = vmul.f32 %v969, %v969
          %v974 = vmul.f32 %v970, %v970
          %v975 = vmul.f32 %v971, %v971
          %976 = vadd.xlane.f32.xlu0 %v972
          %v977 = vpop.xlane.xlu0 %976
          %978 = vadd.xlane.f32.xlu0 %v973
          %v979 = vpop.xlane.xlu0 %978
          %980 = vadd.xlane.f32.xlu0 %v974
          %v981 = vpop.xlane.xlu0 %980
          %982 = vadd.xlane.f32.xlu0 %v975
          %v983 = vpop.xlane.xlu0 %982
          %v984 = vmul.f32 %v977, %v963
          %v985 = vmul.f32 %v979, %v963
          %v986 = vmul.f32 %v981, %v963
          %v987 = vmul.f32 %v983, %v963
          %v988 = vadd.f32 %v984, 1e-12
          %v989 = vadd.f32 %v985, 1e-12
          %v990 = vadd.f32 %v986, 1e-12
          %v991 = vadd.f32 %v987, 1e-12
          %v992 = vrsqrt.pop %v988
          %v993 = vrsqrt.pop %v989
          %v994 = vrsqrt.pop %v990
          %v995 = vrsqrt.pop %v991
          %v996 = vmul.f32 %v968, %v992
          %v997 = vmul.f32 %v969, %v993
          %v998 = vmul.f32 %v970, %v994
          %v999 = vmul.f32 %v971, %v995
          %v1001 = vlaneseq
          %v1002 = vshrl.u32 %v1001, 7
          %v1003 = vsub.s32 0, %v1002
          %v1004 = vrot.slane %v953, %v1003
          %v1006 = vmul.f32 %v996, %v1004
          %v1007 = vmul.f32 %v997, %v1004
          %v1008 = vmul.f32 %v998, %v1004
          %v1009 = vmul.f32 %v999, %v1004
          %v1011 = vlaneseq
          %v1012 = vshrl.u32 %v1011, 7
          %v1013 = vsub.s32 0, %v1012
          %v1014 = vrot.slane %v954, %v1013
          %v1016 = vadd.f32 %v1006, %v1014
          %v1017 = vadd.f32 %v1007, %v1014
          %v1018 = vadd.f32 %v1008, %v1014
          %v1019 = vadd.f32 %v1009, %v1014
          %1020 = vst [vmem:[#allocation2] sm:$0xff] %v1016
          %1021 = vst [vmem:[#allocation2 + $0x8] sm:$0xff] %v1017
          %1022 = vst [vmem:[#allocation2 + $0x10] sm:$0xff] %v1018
          %1023 = vst [vmem:[#allocation2 + $0x18] sm:$0xff] %v1019
        $region112: #{bert_forward.1} parent=95 // pred_fallthru
          _
        %v1024 = vld [vmem:[#allocation2] sm:$0xff]
        %v1025 = vld [vmem:[#allocation2 + $0x8] sm:$0xff]
        %v1026 = vld [vmem:[#allocation2 + $0x10] sm:$0xff]
        %v1027 = vld [vmem:[#allocation2 + $0x18] sm:$0xff]
        %v1028 = vpack.c.bf16 %v1025, %v1024
        %v1029 = vpack.c.bf16 %v1027, %v1026
        %v1030 = vld [vmem:[%s684] sm:$0xff]
        %v1031 = vld [vmem:[%s684 + $0x8] sm:$0xf]
        %v1032 = vld [vmem:[%s684 + $0xc] sm:$0xff]
        %v1033 = vld [vmem:[%s684 + $0x14] sm:$0xf]
        %v1034 = vld [vmem:[%s684 + $0x18] sm:$0xff]
        %v1035 = vld [vmem:[%s684 + $0x20] sm:$0xf]
        %v1036 = vld [vmem:[%s684 + $0x24] sm:$0xff]
        %v1037 = vld [vmem:[%s684 + $0x2c] sm:$0xf]
        %v1038 = vld [vmem:[%s684 + $0x30] sm:$0xff]
        %v1039 = vld [vmem:[%s684 + $0x38] sm:$0xf]
        %v1040 = vld [vmem:[%s684 + $0x3c] sm:$0xff]
        %v1041 = vld [vmem:[%s684 + $0x44] sm:$0xf]
        %v1042 = vld [vmem:[%s684 + $0x48] sm:$0xff]
        %v1043 = vld [vmem:[%s684 + $0x50] sm:$0xf]
        %v1044 = vld [vmem:[%s684 + $0x54] sm:$0xff]
        %v1045 = vld [vmem:[%s684 + $0x5c] sm:$0xf]
        %v1046 = vld [vmem:[%s684 + $0x60] sm:$0xff]
        %v1047 = vld [vmem:[%s684 + $0x68] sm:$0xf]
        %v1048 = vld [vmem:[%s684 + $0x6c] sm:$0xff]
        %v1049 = vld [vmem:[%s684 + $0x74] sm:$0xf]
        %v1050 = vld [vmem:[%s684 + $0x78] sm:$0xff]
        %v1051 = vld [vmem:[%s684 + $0x80] sm:$0xf]
        %v1052 = vld [vmem:[%s684 + $0x84] sm:$0xff]
        %v1053 = vld [vmem:[%s684 + $0x8c] sm:$0xf]
        %v1054 = vld [vmem:[%s684 + $0x90] sm:$0xff]
        %v1055 = vld [vmem:[%s684 + $0x98] sm:$0xf]
        %v1056 = vld [vmem:[%s684 + $0x9c] sm:$0xff]
        %v1057 = vld [vmem:[%s684 + $0xa4] sm:$0xf]
        %v1058 = vld [vmem:[%s684 + $0xa8] sm:$0xff]
        %v1059 = vld [vmem:[%s684 + $0xb0] sm:$0xf]
        %v1060 = vld [vmem:[%s684 + $0xb4] sm:$0xff]
        %v1061 = vld [vmem:[%s684 + $0xbc] sm:$0xf]
        %v1062 = vld [vmem:[%s796] sm:$0x7]
        %v1064 = vlaneseq
        %v1065 = vshrl.u32 %v1064, 7
        %v1066 = vsub.s32 0, %v1065
        %v1067 = vrot.slane %v1062, %v1066
        %v1068 = vlaneseq
        %v1069 = vshrl.u32 %v1068, 7
        %v1070 = vsub.s32 1, %v1069
        %v1071 = vrot.slane %v1062, %v1070
        %v1072 = vlaneseq
        %v1073 = vshrl.u32 %v1072, 7
        %v1074 = vsub.s32 2, %v1073
        %v1075 = vrot.slane %v1062, %v1074
        %v1111 = vunpack.c.l.b16 %v1030
        %v1112 = vunpack.c.h.b16 %v1030
        %v1113 = vunpack.c.l.b16 %v1031
        %v1114 = vunpack.c.l.b16 %v1032
        %v1115 = vunpack.c.h.b16 %v1032
        %v1116 = vunpack.c.l.b16 %v1033
        %v1117 = vunpack.c.l.b16 %v1034
        %v1118 = vunpack.c.h.b16 %v1034
        %v1119 = vunpack.c.l.b16 %v1035
        %v1120 = vunpack.c.l.b16 %v1036
        %v1121 = vunpack.c.h.b16 %v1036
        %v1122 = vunpack.c.l.b16 %v1037
        %v1123 = vunpack.c.l.b16 %v1038
        %v1124 = vunpack.c.h.b16 %v1038
        %v1125 = vunpack.c.l.b16 %v1039
        %v1126 = vunpack.c.l.b16 %v1040
        %v1127 = vunpack.c.h.b16 %v1040
        %v1128 = vunpack.c.l.b16 %v1041
        %v1129 = vunpack.c.l.b16 %v1042
        %v1130 = vunpack.c.h.b16 %v1042
        %v1131 = vunpack.c.l.b16 %v1043
        %v1132 = vunpack.c.l.b16 %v1044
        %v1133 = vunpack.c.h.b16 %v1044
        %v1134 = vunpack.c.l.b16 %v1045
        %v1135 = vunpack.c.l.b16 %v1046
        %v1136 = vunpack.c.h.b16 %v1046
        %v1137 = vunpack.c.l.b16 %v1047
        %v1138 = vunpack.c.l.b16 %v1048
        %v1139 = vunpack.c.h.b16 %v1048
        %v1140 = vunpack.c.l.b16 %v1049
        %v1141 = vunpack.c.l.b16 %v1050
        %v1142 = vunpack.c.h.b16 %v1050
        %v1143 = vunpack.c.l.b16 %v1051
        %v1144 = vunpack.c.l.b16 %v1052
        %v1145 = vunpack.c.h.b16 %v1052
        %v1146 = vunpack.c.l.b16 %v1053
        %v1147 = vunpack.c.l.b16 %v1054
        %v1148 = vunpack.c.h.b16 %v1054
        %v1149 = vunpack.c.l.b16 %v1055
        %v1150 = vunpack.c.l.b16 %v1056
        %v1151 = vunpack.c.h.b16 %v1056
        %v1152 = vunpack.c.l.b16 %v1057
        %v1153 = vunpack.c.l.b16 %v1058
        %v1154 = vunpack.c.h.b16 %v1058
        %v1155 = vunpack.c.l.b16 %v1059
        %v1156 = vunpack.c.l.b16 %v1060
        %v1157 = vunpack.c.h.b16 %v1060
        %v1158 = vunpack.c.l.b16 %v1061
        %v1159 = vpack.c.b16 %v1114, %v1111
        %v1160 = vpack.c.b16 %v1115, %v1112
        %v1161 = vpack.c.b16 %v1116, %v1113
        %v1162 = vpack.c.b16 %v1120, %v1117
        %v1163 = vpack.c.b16 %v1121, %v1118
        %v1164 = vpack.c.b16 %v1122, %v1119
        %v1165 = vpack.c.b16 %v1126, %v1123
        %v1166 = vpack.c.b16 %v1127, %v1124
        %v1167 = vpack.c.b16 %v1128, %v1125
        %v1168 = vpack.c.b16 %v1132, %v1129
        %v1169 = vpack.c.b16 %v1133, %v1130
        %v1170 = vpack.c.b16 %v1134, %v1131
        %v1171 = vpack.c.b16 %v1138, %v1135
        %v1172 = vpack.c.b16 %v1139, %v1136
        %v1173 = vpack.c.b16 %v1140, %v1137
        %v1174 = vpack.c.b16 %v1144, %v1141
        %v1175 = vpack.c.b16 %v1145, %v1142
        %v1176 = vpack.c.b16 %v1146, %v1143
        %v1177 = vpack.c.b16 %v1150, %v1147
        %v1178 = vpack.c.b16 %v1151, %v1148
        %v1179 = vpack.c.b16 %v1152, %v1149
        %v1180 = vpack.c.b16 %v1156, %v1153
        %v1181 = vpack.c.b16 %v1157, %v1154
        %v1182 = vpack.c.b16 %v1158, %v1155
        %1207 = vmatprep.subr.bf16.mxu0 %v1160
        %1208 = vmatpush1.bf16.msra.mxu0 %v1159
        %1209 = vmatprep.subr.bf16.mxu0 %v1163
        %1210 = vmatpush1.bf16.msra.mxu0 %v1162
        %1211 = vmatprep.subr.bf16.mxu0 %v1166
        %1212 = vmatpush1.bf16.msra.mxu0 %v1165
        %1213 = vmatprep.subr.bf16.mxu0 %v1169
        %1214 = vmatpush1.bf16.msra.mxu0 %v1168
        %1215 = vmatprep.subr.bf16.mxu0 %v1172
        %1216 = vmatpush1.bf16.msra.mxu0 %v1171
        %1217 = vmatprep.subr.bf16.mxu0 %v1175
        %1218 = vmatpush1.bf16.msra.mxu0 %v1174
        %1219 = vmatprep.subr.bf16.mxu0 %v1178
        %1220 = vmatpush1.bf16.msra.mxu0 %v1177
        %1221 = vmatprep.subr.bf16.mxu0 %v1181
        %1222 = vmatpush1.bf16.msra.mxu0 %v1180
        %1223 = vmatprep.subr.bf16.mxu0 0
        %1224 = vmatpush1.bf16.msra.mxu0 0
        %1225 = vmatprep.subr.bf16.mxu0 0
        %1226 = vmatpush1.bf16.msra.mxu0 0
        %1227 = vmatprep.subr.bf16.mxu0 0
        %1228 = vmatpush1.bf16.msra.mxu0 0
        %1229 = vmatprep.subr.bf16.mxu0 0
        %1230 = vmatpush1.bf16.msra.mxu0 0
        %1231 = vmatprep.subr.bf16.mxu0 0
        %1232 = vmatpush1.bf16.msra.mxu0 0
        %1233 = vmatprep.subr.bf16.mxu0 0
        %1234 = vmatpush1.bf16.msra.mxu0 0
        %1235 = vmatprep.subr.bf16.mxu0 0
        %1236 = vmatpush1.bf16.msra.mxu0 0
        %1237 = vmatprep.subr.bf16.mxu0 0
        %1238 = vmatpush1.bf16.msra.mxu0 0
        %1239 = vmatprep.mubr.bf16.mxu0 0
        %1240 = vmatmul.mubr.bf16.gmra.mrb[0].mxu0 %v1028
        %v1241 = vpop.f32.mrb[0].mxu0
        %v1242 = vadd.f32 %v1067, %v1241
        %v1243 = vpop.f32.mrb[0].mxu0
        %v1244 = vadd.f32 %v1071, %v1243
        %v1245 = vpop.f32.mrb[0].mxu0
        %v1246 = vadd.f32 %v1067, %v1245
        %v1247 = vpop.f32.mrb[0].mxu0
        %v1248 = vadd.f32 %v1071, %v1247
        %1249 = vmatprep.mubr.bf16.mxu0 0
        %1250 = vmatmul.mubr.bf16.gmra.mrb[0].mxu0 %v1029
        %v1251 = vpop.f32.mrb[0].mxu0
        %v1252 = vadd.f32 %v1067, %v1251
        %v1253 = vpop.f32.mrb[0].mxu0
        %v1254 = vadd.f32 %v1071, %v1253
        %v1255 = vpop.f32.mrb[0].mxu0
        %v1256 = vadd.f32 %v1067, %v1255
        %v1257 = vpop.f32.mrb[0].mxu0
        %v1258 = vadd.f32 %v1071, %v1257
        %1259 = vdwg.mxu0
        %1260 = vmatprep.subr.bf16.mxu0 0
        %1261 = vmatpush1.bf16.msra.mxu0 %v1161
        %1262 = vmatprep.subr.bf16.mxu0 0
        %1263 = vmatpush1.bf16.msra.mxu0 %v1164
        %1264 = vmatprep.subr.bf16.mxu0 0
        %1265 = vmatpush1.bf16.msra.mxu0 %v1167
        %1266 = vmatprep.subr.bf16.mxu0 0
        %1267 = vmatpush1.bf16.msra.mxu0 %v1170
        %1268 = vmatprep.subr.bf16.mxu0 0
        %1269 = vmatpush1.bf16.msra.mxu0 %v1173
        %1270 = vmatprep.subr.bf16.mxu0 0
        %1271 = vmatpush1.bf16.msra.mxu0 %v1176
        %1272 = vmatprep.subr.bf16.mxu0 0
        %1273 = vmatpush1.bf16.msra.mxu0 %v1179
        %1274 = vmatprep.subr.bf16.mxu0 0
        %1275 = vmatpush1.bf16.msra.mxu0 %v1182
        %1276 = vmatprep.subr.bf16.mxu0 0
        %1277 = vmatpush1.bf16.msra.mxu0 0
        %1278 = vmatprep.subr.bf16.mxu0 0
        %1279 = vmatpush1.bf16.msra.mxu0 0
        %1280 = vmatprep.subr.bf16.mxu0 0
        %1281 = vmatpush1.bf16.msra.mxu0 0
        %1282 = vmatprep.subr.bf16.mxu0 0
        %1283 = vmatpush1.bf16.msra.mxu0 0
        %1284 = vmatprep.subr.bf16.mxu0 0
        %1285 = vmatpush1.bf16.msra.mxu0 0
        %1286 = vmatprep.subr.bf16.mxu0 0
        %1287 = vmatpush1.bf16.msra.mxu0 0
        %1288 = vmatprep.subr.bf16.mxu0 0
        %1289 = vmatpush1.bf16.msra.mxu0 0
        %1290 = vmatprep.subr.bf16.mxu0 0
        %1291 = vmatpush1.bf16.msra.mxu0 0
        %1292 = vmatprep.mubr.bf16.mxu0 0
        %1293 = vmatmul.mubr.bf16.gmra.mrb[0].mxu0 %v1028
        %v1294 = vpop.f32.mrb[0].mxu0
        %v1295 = vadd.f32 %v1075, %v1294
        %v1296 = vpop.f32.mrb[0].mxu0
        %v1297 = vpop.f32.mrb[0].mxu0
        %v1298 = vadd.f32 %v1075, %v1297
        %v1299 = vpop.f32.mrb[0].mxu0
        %1300 = vmatprep.mubr.bf16.mxu0 0
        %1301 = vmatmul.mubr.bf16.gmra.mrb[0].mxu0 %v1029
        %v1302 = vpop.f32.mrb[0].mxu0
        %v1303 = vadd.f32 %v1075, %v1302
        %v1304 = vpop.f32.mrb[0].mxu0
        %v1305 = vpop.f32.mrb[0].mxu0
        %v1306 = vadd.f32 %v1075, %v1305
        %v1307 = vpop.f32.mrb[0].mxu0
        %1308 = vdwg.mxu0
        %v1309 = vmul.f32 %v1242, 0.17677669
        %v1310 = vmul.f32 %v1246, 0.17677669
        %v1311 = vmul.f32 %v1252, 0.17677669
        %v1312 = vmul.f32 %v1256, 0.17677669
        %v1313 = vpack.c.bf16 %v1310, %v1309
        %v1314 = vpack.c.bf16 %v1312, %v1311
        %v1315 = vpack.c.bf16 %v1248, %v1244
        %v1316 = vpack.c.bf16 %v1258, %v1254
        %v1317 = vpack.c.bf16 %v1298, %v1295
        %v1318 = vpack.c.bf16 %v1306, %v1303
        %vm1319 = vcmask 261120
        %v1321 = vsel %vm1319, %v1313, 0
        %v1324 = vsel %vm1319, %v1315, 0
        %1326 = vmatprep.subr.bf16.mxu0 0
        %1327 = vmatpush1.bf16.xpose.msra.mxu0 %v1324
        %1328 = vmatprep.subr.bf16.mxu0 0
        %1329 = vmatpush1.bf16.xpose.msra.mxu0 0
        %1330 = vmatprep.subr.bf16.mxu0 0
        %1331 = vmatpush1.bf16.xpose.msra.mxu0 0
        %1332 = vmatprep.subr.bf16.mxu0 0
        %1333 = vmatpush1.bf16.xpose.msra.mxu0 0
        %1334 = vmatprep.subr.bf16.mxu0 0
        %1335 = vmatpush1.bf16.xpose.msra.mxu0 0
        %1336 = vmatprep.subr.bf16.mxu0 0
        %1337 = vmatpush1.bf16.xpose.msra.mxu0 0
        %1338 = vmatprep.subr.bf16.mxu0 0
        %1339 = vmatpush1.bf16.xpose.msra.mxu0 0
        %1340 = vmatprep.subr.bf16.mxu0 0
        %1341 = vmatpush1.bf16.xpose.msra.mxu0 0
        %1342 = vmatprep.subr.bf16.mxu0 0
        %1343 = vmatpush1.bf16.xpose.msra.mxu0 0
        %1344 = vmatprep.subr.bf16.mxu0 0
        %1345 = vmatpush1.bf16.xpose.msra.mxu0 0
        %1346 = vmatprep.subr.bf16.mxu0 0
        %1347 = vmatpush1.bf16.xpose.msra.mxu0 0
        %1348 = vmatprep.subr.bf16.mxu0 0
        %1349 = vmatpush1.bf16.xpose.msra.mxu0 0
        %1350 = vmatprep.subr.bf16.mxu0 0
        %1351 = vmatpush1.bf16.xpose.msra.mxu0 0
        %1352 = vmatprep.subr.bf16.mxu0 0
        %1353 = vmatpush1.bf16.xpose.msra.mxu0 0
        %1354 = vmatprep.subr.bf16.mxu0 0
        %1355 = vmatpush1.bf16.xpose.msra.mxu0 0
        %1356 = vmatprep.subr.bf16.mxu0 0
        %1357 = vmatpush1.bf16.xpose.msra.mxu0 0
        %1358 = vmatprep.mubr.bf16.mxu0 0
        %1359 = vmatmul.mubr.bf16.gmra.mrb[0].mxu0 %v1321
        %v1360 = vpop.f32.mrb[0].mxu0
        %v1361 = vadd.f32 0.0, %v1360
        %v1362 = vpop.f32.mrb[0].mxu0
        %v1363 = vpop.f32.mrb[0].mxu0
        %v1364 = vadd.f32 0.0, %v1363
        %v1365 = vpop.f32.mrb[0].mxu0
        %1366 = vdwg.mxu0
        %v1368 = vsel %vm1319, %v1314, 0
        %v1371 = vsel %vm1319, %v1316, 0
        %1373 = vmatprep.subr.bf16.mxu0 0
        %1374 = vmatpush1.bf16.xpose.msra.mxu0 %v1371
        %1375 = vmatprep.subr.bf16.mxu0 0
        %1376 = vmatpush1.bf16.xpose.msra.mxu0 0
        %1377 = vmatprep.subr.bf16.mxu0 0
        %1378 = vmatpush1.bf16.xpose.msra.mxu0 0
        %1379 = vmatprep.subr.bf16.mxu0 0
        %1380 = vmatpush1.bf16.xpose.msra.mxu0 0
        %1381 = vmatprep.subr.bf16.mxu0 0
        %1382 = vmatpush1.bf16.xpose.msra.mxu0 0
        %1383 = vmatprep.subr.bf16.mxu0 0
        %1384 = vmatpush1.bf16.xpose.msra.mxu0 0
        %1385 = vmatprep.subr.bf16.mxu0 0
        %1386 = vmatpush1.bf16.xpose.msra.mxu0 0
        %1387 = vmatprep.subr.bf16.mxu0 0
        %1388 = vmatpush1.bf16.xpose.msra.mxu0 0
        %1389 = vmatprep.subr.bf16.mxu0 0
        %1390 = vmatpush1.bf16.xpose.msra.mxu0 0
        %1391 = vmatprep.subr.bf16.mxu0 0
        %1392 = vmatpush1.bf16.xpose.msra.mxu0 0
        %1393 = vmatprep.subr.bf16.mxu0 0
        %1394 = vmatpush1.bf16.xpose.msra.mxu0 0
        %1395 = vmatprep.subr.bf16.mxu0 0
        %1396 = vmatpush1.bf16.xpose.msra.mxu0 0
        %1397 = vmatprep.subr.bf16.mxu0 0
        %1398 = vmatpush1.bf16.xpose.msra.mxu0 0
        %1399 = vmatprep.subr.bf16.mxu0 0
        %1400 = vmatpush1.bf16.xpose.msra.mxu0 0
        %1401 = vmatprep.subr.bf16.mxu0 0
        %1402 = vmatpush1.bf16.xpose.msra.mxu0 0
        %1403 = vmatprep.subr.bf16.mxu0 0
        %1404 = vmatpush1.bf16.xpose.msra.mxu0 0
        %1405 = vmatprep.mubr.bf16.mxu0 0
        %1406 = vmatmul.mubr.bf16.gmra.mrb[0].mxu0 %v1368
        %v1407 = vpop.f32.mrb[0].mxu0
        %v1408 = vadd.f32 0.0, %v1407
        %v1409 = vpop.f32.mrb[0].mxu0
        %v1410 = vpop.f32.mrb[0].mxu0
        %v1411 = vadd.f32 0.0, %v1410
        %v1412 = vpop.f32.mrb[0].mxu0
        %1413 = vdwg.mxu0
        %vm1414 = vcmask 130048
        %v1415 = vsel %vm1414, %v1361, -inf
        %1416 = vmax.xlane.f32.xlu0 %v1415
        %v1417 = vpop.xlane.xlu0 %1416
        %v1418 = vsel %vm1414, %v1364, -inf
        %1419 = vmax.xlane.f32.xlu0 %v1418
        %v1420 = vpop.xlane.xlu0 %1419
        %v1421 = vsel %vm1414, %v1408, -inf
        %1422 = vmax.xlane.f32.xlu0 %v1421
        %v1423 = vpop.xlane.xlu0 %1422
        %v1424 = vsel %vm1414, %v1411, -inf
        %1425 = vmax.xlane.f32.xlu0 %v1424
        %v1426 = vpop.xlane.xlu0 %1425
        %v1427 = vsub.f32 %v1361, %v1417
        %v1428 = vsub.f32 %v1364, %v1420
        %v1429 = vsub.f32 %v1408, %v1423
        %v1430 = vsub.f32 %v1411, %v1426
        %v1431 = vmul.f32 %v1427, 1.442695
        %v1432 = vpow.pop %v1431
        %v1433 = vmul.f32 %v1428, 1.442695
        %v1434 = vpow.pop %v1433
        %v1435 = vmul.f32 %v1429, 1.442695
        %v1436 = vpow.pop %v1435
        %v1437 = vmul.f32 %v1430, 1.442695
        %v1438 = vpow.pop %v1437
        %v1439 = vsel %vm1414, %v1432, 0.0
        %1440 = vadd.xlane.f32.xlu0 %v1439
        %v1441 = vpop.xlane.xlu0 %1440
        %v1442 = vsel %vm1414, %v1434, 0.0
        %1443 = vadd.xlane.f32.xlu0 %v1442
        %v1444 = vpop.xlane.xlu0 %1443
        %v1445 = vsel %vm1414, %v1436, 0.0
        %1446 = vadd.xlane.f32.xlu0 %v1445
        %v1447 = vpop.xlane.xlu0 %1446
        %v1448 = vsel %vm1414, %v1438, 0.0
        %1449 = vadd.xlane.f32.xlu0 %v1448
        %v1450 = vpop.xlane.xlu0 %1449
        %v1451 = vrcp.pop %v1441
        %v1452 = vrcp.pop %v1444
        %v1453 = vrcp.pop %v1447
        %v1454 = vrcp.pop %v1450
        %v1455 = vmul.f32 %v1432, %v1451
        %v1456 = vmul.f32 %v1434, %v1452
        %v1457 = vmul.f32 %v1436, %v1453
        %v1458 = vmul.f32 %v1438, %v1454
        %v1459 = vpack.c.bf16 %v1456, %v1455
        %v1460 = vpack.c.bf16 %v1458, %v1457
        %v1462 = vsel %vm1414, %v1459, 0
        %1464 = vmatprep.subr.bf16.mxu0 0
        %1465 = vmatpush1.bf16.msra.mxu0 %v1317
        %1466 = vmatprep.subr.bf16.mxu0 0
        %1467 = vmatpush1.bf16.msra.mxu0 0
        %1468 = vmatprep.subr.bf16.mxu0 0
        %1469 = vmatpush1.bf16.msra.mxu0 0
        %1470 = vmatprep.subr.bf16.mxu0 0
        %1471 = vmatpush1.bf16.msra.mxu0 0
        %1472 = vmatprep.subr.bf16.mxu0 0
        %1473 = vmatpush1.bf16.msra.mxu0 0
        %1474 = vmatprep.subr.bf16.mxu0 0
        %1475 = vmatpush1.bf16.msra.mxu0 0
        %1476 = vmatprep.subr.bf16.mxu0 0
        %1477 = vmatpush1.bf16.msra.mxu0 0
        %1478 = vmatprep.subr.bf16.mxu0 0
        %1479 = vmatpush1.bf16.msra.mxu0 0
        %1480 = vmatprep.subr.bf16.mxu0 0
        %1481 = vmatpush1.bf16.msra.mxu0 0
        %1482 = vmatprep.subr.bf16.mxu0 0
        %1483 = vmatpush1.bf16.msra.mxu0 0
        %1484 = vmatprep.subr.bf16.mxu0 0
        %1485 = vmatpush1.bf16.msra.mxu0 0
        %1486 = vmatprep.subr.bf16.mxu0 0
        %1487 = vmatpush1.bf16.msra.mxu0 0
        %1488 = vmatprep.subr.bf16.mxu0 0
        %1489 = vmatpush1.bf16.msra.mxu0 0
        %1490 = vmatprep.subr.bf16.mxu0 0
        %1491 = vmatpush1.bf16.msra.mxu0 0
        %1492 = vmatprep.subr.bf16.mxu0 0
        %1493 = vmatpush1.bf16.msra.mxu0 0
        %1494 = vmatprep.subr.bf16.mxu0 0
        %1495 = vmatpush1.bf16.msra.mxu0 0
        %1496 = vmatprep.mubr.bf16.mxu0 0
        %1497 = vmatmul.mubr.bf16.gmra.mrb[0].mxu0 %v1462
        %v1498 = vpop.f32.mrb[0].mxu0
        %v1499 = vadd.f32 0.0, %v1498
        %v1500 = vpop.f32.mrb[0].mxu0
        %v1501 = vpop.f32.mrb[0].mxu0
        %v1502 = vadd.f32 0.0, %v1501
        %v1503 = vpop.f32.mrb[0].mxu0
        %1504 = vdwg.mxu0
        %v1506 = vsel %vm1414, %v1460, 0
        %1508 = vmatprep.subr.bf16.mxu0 0
        %1509 = vmatpush1.bf16.msra.mxu0 %v1318
        %1510 = vmatprep.subr.bf16.mxu0 0
        %1511 = vmatpush1.bf16.msra.mxu0 0
        %1512 = vmatprep.subr.bf16.mxu0 0
        %1513 = vmatpush1.bf16.msra.mxu0 0
        %1514 = vmatprep.subr.bf16.mxu0 0
        %1515 = vmatpush1.bf16.msra.mxu0 0
        %1516 = vmatprep.subr.bf16.mxu0 0
        %1517 = vmatpush1.bf16.msra.mxu0 0
        %1518 = vmatprep.subr.bf16.mxu0 0
        %1519 = vmatpush1.bf16.msra.mxu0 0
        %1520 = vmatprep.subr.bf16.mxu0 0
        %1521 = vmatpush1.bf16.msra.mxu0 0
        %1522 = vmatprep.subr.bf16.mxu0 0
        %1523 = vmatpush1.bf16.msra.mxu0 0
        %1524 = vmatprep.subr.bf16.mxu0 0
        %1525 = vmatpush1.bf16.msra.mxu0 0
        %1526 = vmatprep.subr.bf16.mxu0 0
        %1527 = vmatpush1.bf16.msra.mxu0 0
        %1528 = vmatprep.subr.bf16.mxu0 0
        %1529 = vmatpush1.bf16.msra.mxu0 0
        %1530 = vmatprep.subr.bf16.mxu0 0
        %1531 = vmatpush1.bf16.msra.mxu0 0
        %1532 = vmatprep.subr.bf16.mxu0 0
        %1533 = vmatpush1.bf16.msra.mxu0 0
        %1534 = vmatprep.subr.bf16.mxu0 0
        %1535 = vmatpush1.bf16.msra.mxu0 0
        %1536 = vmatprep.subr.bf16.mxu0 0
        %1537 = vmatpush1.bf16.msra.mxu0 0
        %1538 = vmatprep.subr.bf16.mxu0 0
        %1539 = vmatpush1.bf16.msra.mxu0 0
        %1540 = vmatprep.mubr.bf16.mxu0 0
        %1541 = vmatmul.mubr.bf16.gmra.mrb[0].mxu0 %v1506
        %v1542 = vpop.f32.mrb[0].mxu0
        %v1543 = vadd.f32 0.0, %v1542
        %v1544 = vpop.f32.mrb[0].mxu0
        %v1545 = vpop.f32.mrb[0].mxu0
        %v1546 = vadd.f32 0.0, %v1545
        %v1547 = vpop.f32.mrb[0].mxu0
        %1548 = vdwg.mxu0
        %1550 = vrot.lane.b32.xlu0 %v1313, 96
        %v1551 = vpop.permute.xlu0 %1550
        %1553 = vrot.lane.b32.xlu0 %v1315, 96
        %v1554 = vpop.permute.xlu0 %1553
        %v1556 = vsel %vm1319, %v1551, 0
        %v1559 = vsel %vm1319, %v1554, 0
        %1561 = vmatprep.subr.bf16.mxu0 0
        %1562 = vmatpush1.bf16.xpose.msra.mxu0 %v1559
        %1563 = vmatprep.subr.bf16.mxu0 0
        %1564 = vmatpush1.bf16.xpose.msra.mxu0 0
        %1565 = vmatprep.subr.bf16.mxu0 0
        %1566 = vmatpush1.bf16.xpose.msra.mxu0 0
        %1567 = vmatprep.subr.bf16.mxu0 0
        %1568 = vmatpush1.bf16.xpose.msra.mxu0 0
        %1569 = vmatprep.subr.bf16.mxu0 0
        %1570 = vmatpush1.bf16.xpose.msra.mxu0 0
        %1571 = vmatprep.subr.bf16.mxu0 0
        %1572 = vmatpush1.bf16.xpose.msra.mxu0 0
        %1573 = vmatprep.subr.bf16.mxu0 0
        %1574 = vmatpush1.bf16.xpose.msra.mxu0 0
        %1575 = vmatprep.subr.bf16.mxu0 0
        %1576 = vmatpush1.bf16.xpose.msra.mxu0 0
        %1577 = vmatprep.subr.bf16.mxu0 0
        %1578 = vmatpush1.bf16.xpose.msra.mxu0 0
        %1579 = vmatprep.subr.bf16.mxu0 0
        %1580 = vmatpush1.bf16.xpose.msra.mxu0 0
        %1581 = vmatprep.subr.bf16.mxu0 0
        %1582 = vmatpush1.bf16.xpose.msra.mxu0 0
        %1583 = vmatprep.subr.bf16.mxu0 0
        %1584 = vmatpush1.bf16.xpose.msra.mxu0 0
        %1585 = vmatprep.subr.bf16.mxu0 0
        %1586 = vmatpush1.bf16.xpose.msra.mxu0 0
        %1587 = vmatprep.subr.bf16.mxu0 0
        %1588 = vmatpush1.bf16.xpose.msra.mxu0 0
        %1589 = vmatprep.subr.bf16.mxu0 0
        %1590 = vmatpush1.bf16.xpose.msra.mxu0 0
        %1591 = vmatprep.subr.bf16.mxu0 0
        %1592 = vmatpush1.bf16.xpose.msra.mxu0 0
        %1593 = vmatprep.mubr.bf16.mxu0 0
        %1594 = vmatmul.mubr.bf16.gmra.mrb[0].mxu0 %v1556
        %v1595 = vpop.f32.mrb[0].mxu0
        %v1596 = vadd.f32 0.0, %v1595
        %v1597 = vpop.f32.mrb[0].mxu0
        %v1598 = vpop.f32.mrb[0].mxu0
        %v1599 = vadd.f32 0.0, %v1598
        %v1600 = vpop.f32.mrb[0].mxu0
        %1601 = vdwg.mxu0
        %1603 = vrot.lane.b32.xlu0 %v1314, 96
        %v1604 = vpop.permute.xlu0 %1603
        %1606 = vrot.lane.b32.xlu0 %v1316, 96
        %v1607 = vpop.permute.xlu0 %1606
        %v1609 = vsel %vm1319, %v1604, 0
        %v1612 = vsel %vm1319, %v1607, 0
        %1614 = vmatprep.subr.bf16.mxu0 0
        %1615 = vmatpush1.bf16.xpose.msra.mxu0 %v1612
        %1616 = vmatprep.subr.bf16.mxu0 0
        %1617 = vmatpush1.bf16.xpose.msra.mxu0 0
        %1618 = vmatprep.subr.bf16.mxu0 0
        %1619 = vmatpush1.bf16.xpose.msra.mxu0 0
        %1620 = vmatprep.subr.bf16.mxu0 0
        %1621 = vmatpush1.bf16.xpose.msra.mxu0 0
        %1622 = vmatprep.subr.bf16.mxu0 0
        %1623 = vmatpush1.bf16.xpose.msra.mxu0 0
        %1624 = vmatprep.subr.bf16.mxu0 0
        %1625 = vmatpush1.bf16.xpose.msra.mxu0 0
        %1626 = vmatprep.subr.bf16.mxu0 0
        %1627 = vmatpush1.bf16.xpose.msra.mxu0 0
        %1628 = vmatprep.subr.bf16.mxu0 0
        %1629 = vmatpush1.bf16.xpose.msra.mxu0 0
        %1630 = vmatprep.subr.bf16.mxu0 0
        %1631 = vmatpush1.bf16.xpose.msra.mxu0 0
        %1632 = vmatprep.subr.bf16.mxu0 0
        %1633 = vmatpush1.bf16.xpose.msra.mxu0 0
        %1634 = vmatprep.subr.bf16.mxu0 0
        %1635 = vmatpush1.bf16.xpose.msra.mxu0 0
        %1636 = vmatprep.subr.bf16.mxu0 0
        %1637 = vmatpush1.bf16.xpose.msra.mxu0 0
        %1638 = vmatprep.subr.bf16.mxu0 0
        %1639 = vmatpush1.bf16.xpose.msra.mxu0 0
        %1640 = vmatprep.subr.bf16.mxu0 0
        %1641 = vmatpush1.bf16.xpose.msra.mxu0 0
        %1642 = vmatprep.subr.bf16.mxu0 0
        %1643 = vmatpush1.bf16.xpose.msra.mxu0 0
        %1644 = vmatprep.subr.bf16.mxu0 0
        %1645 = vmatpush1.bf16.xpose.msra.mxu0 0
        %1646 = vmatprep.mubr.bf16.mxu0 0
        %1647 = vmatmul.mubr.bf16.gmra.mrb[0].mxu0 %v1609
        %v1648 = vpop.f32.mrb[0].mxu0
        %v1649 = vadd.f32 0.0, %v1648
        %v1650 = vpop.f32.mrb[0].mxu0
        %v1651 = vpop.f32.mrb[0].mxu0
        %v1652 = vadd.f32 0.0, %v1651
        %v1653 = vpop.f32.mrb[0].mxu0
        %1654 = vdwg.mxu0
        %v1655 = vsel %vm1414, %v1596, -inf
        %1656 = vmax.xlane.f32.xlu0 %v1655
        %v1657 = vpop.xlane.xlu0 %1656
        %v1658 = vsel %vm1414, %v1599, -inf
        %1659 = vmax.xlane.f32.xlu0 %v1658
        %v1660 = vpop.xlane.xlu0 %1659
        %v1661 = vsel %vm1414, %v1649, -inf
        %1662 = vmax.xlane.f32.xlu0 %v1661
        %v1663 = vpop.xlane.xlu0 %1662
        %v1664 = vsel %vm1414, %v1652, -inf
        %1665 = vmax.xlane.f32.xlu0 %v1664
        %v1666 = vpop.xlane.xlu0 %1665
        %v1667 = vsub.f32 %v1596, %v1657
        %v1668 = vsub.f32 %v1599, %v1660
        %v1669 = vsub.f32 %v1649, %v1663
        %v1670 = vsub.f32 %v1652, %v1666
        %v1671 = vmul.f32 %v1667, 1.442695
        %v1672 = vpow.pop %v1671
        %v1673 = vmul.f32 %v1668, 1.442695
        %v1674 = vpow.pop %v1673
        %v1675 = vmul.f32 %v1669, 1.442695
        %v1676 = vpow.pop %v1675
        %v1677 = vmul.f32 %v1670, 1.442695
        %v1678 = vpow.pop %v1677
        %v1679 = vsel %vm1414, %v1672, 0.0
        %1680 = vadd.xlane.f32.xlu0 %v1679
        %v1681 = vpop.xlane.xlu0 %1680
        %v1682 = vsel %vm1414, %v1674, 0.0
        %1683 = vadd.xlane.f32.xlu0 %v1682
        %v1684 = vpop.xlane.xlu0 %1683
        %v1685 = vsel %vm1414, %v1676, 0.0
        %1686 = vadd.xlane.f32.xlu0 %v1685
        %v1687 = vpop.xlane.xlu0 %1686
        %v1688 = vsel %vm1414, %v1678, 0.0
        %1689 = vadd.xlane.f32.xlu0 %v1688
        %v1690 = vpop.xlane.xlu0 %1689
        %v1691 = vrcp.pop %v1681
        %v1692 = vrcp.pop %v1684
        %v1693 = vrcp.pop %v1687
        %v1694 = vrcp.pop %v1690
        %v1695 = vmul.f32 %v1672, %v1691
        %v1696 = vmul.f32 %v1674, %v1692
        %v1697 = vmul.f32 %v1676, %v1693
        %v1698 = vmul.f32 %v1678, %v1694
        %v1699 = vpack.c.bf16 %v1696, %v1695
        %v1700 = vpack.c.bf16 %v1698, %v1697
        %1702 = vrot.lane.b32.xlu0 %v1317, 96
        %v1703 = vpop.permute.xlu0 %1702
        %v1706 = vsel %vm1414, %v1699, 0
        %1708 = vmatprep.subr.bf16.mxu0 0
        %1709 = vmatpush1.bf16.msra.mxu0 %v1703
        %1710 = vmatprep.subr.bf16.mxu0 0
        %1711 = vmatpush1.bf16.msra.mxu0 0
        %1712 = vmatprep.subr.bf16.mxu0 0
        %1713 = vmatpush1.bf16.msra.mxu0 0
        %1714 = vmatprep.subr.bf16.mxu0 0
        %1715 = vmatpush1.bf16.msra.mxu0 0
        %1716 = vmatprep.subr.bf16.mxu0 0
        %1717 = vmatpush1.bf16.msra.mxu0 0
        %1718 = vmatprep.subr.bf16.mxu0 0
        %1719 = vmatpush1.bf16.msra.mxu0 0
        %1720 = vmatprep.subr.bf16.mxu0 0
        %1721 = vmatpush1.bf16.msra.mxu0 0
        %1722 = vmatprep.subr.bf16.mxu0 0
        %1723 = vmatpush1.bf16.msra.mxu0 0
        %1724 = vmatprep.subr.bf16.mxu0 0
        %1725 = vmatpush1.bf16.msra.mxu0 0
        %1726 = vmatprep.subr.bf16.mxu0 0
        %1727 = vmatpush1.bf16.msra.mxu0 0
        %1728 = vmatprep.subr.bf16.mxu0 0
        %1729 = vmatpush1.bf16.msra.mxu0 0
        %1730 = vmatprep.subr.bf16.mxu0 0
        %1731 = vmatpush1.bf16.msra.mxu0 0
        %1732 = vmatprep.subr.bf16.mxu0 0
        %1733 = vmatpush1.bf16.msra.mxu0 0
        %1734 = vmatprep.subr.bf16.mxu0 0
        %1735 = vmatpush1.bf16.msra.mxu0 0
        %1736 = vmatprep.subr.bf16.mxu0 0
        %1737 = vmatpush1.bf16.msra.mxu0 0
        %1738 = vmatprep.subr.bf16.mxu0 0
        %1739 = vmatpush1.bf16.msra.mxu0 0
        %1740 = vmatprep.mubr.bf16.mxu0 0
        %1741 = vmatmul.mubr.bf16.gmra.mrb[0].mxu0 %v1706
        %v1742 = vpop.f32.mrb[0].mxu0
        %v1743 = vadd.f32 0.0, %v1742
        %v1744 = vpop.f32.mrb[0].mxu0
        %v1745 = vpop.f32.mrb[0].mxu0
        %v1746 = vadd.f32 0.0, %v1745
        %v1747 = vpop.f32.mrb[0].mxu0
        %1748 = vdwg.mxu0
        %1750 = vrot.lane.b32.xlu0 %v1318, 96
        %v1751 = vpop.permute.xlu0 %1750
        %v1754 = vsel %vm1414, %v1700, 0
        %1756 = vmatprep.subr.bf16.mxu0 0
        %1757 = vmatpush1.bf16.msra.mxu0 %v1751
        %1758 = vmatprep.subr.bf16.mxu0 0
        %1759 = vmatpush1.bf16.msra.mxu0 0
        %1760 = vmatprep.subr.bf16.mxu0 0
        %1761 = vmatpush1.bf16.msra.mxu0 0
        %1762 = vmatprep.subr.bf16.mxu0 0
        %1763 = vmatpush1.bf16.msra.mxu0 0
        %1764 = vmatprep.subr.bf16.mxu0 0
        %1765 = vmatpush1.bf16.msra.mxu0 0
        %1766 = vmatprep.subr.bf16.mxu0 0
        %1767 = vmatpush1.bf16.msra.mxu0 0
        %1768 = vmatprep.subr.bf16.mxu0 0
        %1769 = vmatpush1.bf16.msra.mxu0 0
        %1770 = vmatprep.subr.bf16.mxu0 0
        %1771 = vmatpush1.bf16.msra.mxu0 0
        %1772 = vmatprep.subr.bf16.mxu0 0
        %1773 = vmatpush1.bf16.msra.mxu0 0
        %1774 = vmatprep.subr.bf16.mxu0 0
        %1775 = vmatpush1.bf16.msra.mxu0 0
        %1776 = vmatprep.subr.bf16.mxu0 0
        %1777 = vmatpush1.bf16.msra.mxu0 0
        %1778 = vmatprep.subr.bf16.mxu0 0
        %1779 = vmatpush1.bf16.msra.mxu0 0
        %1780 = vmatprep.subr.bf16.mxu0 0
        %1781 = vmatpush1.bf16.msra.mxu0 0
        %1782 = vmatprep.subr.bf16.mxu0 0
        %1783 = vmatpush1.bf16.msra.mxu0 0
        %1784 = vmatprep.subr.bf16.mxu0 0
        %1785 = vmatpush1.bf16.msra.mxu0 0
        %1786 = vmatprep.subr.bf16.mxu0 0
        %1787 = vmatpush1.bf16.msra.mxu0 0
        %1788 = vmatprep.mubr.bf16.mxu0 0
        %1789 = vmatmul.mubr.bf16.gmra.mrb[0].mxu0 %v1754
        %v1790 = vpop.f32.mrb[0].mxu0
        %v1791 = vadd.f32 0.0, %v1790
        %v1792 = vpop.f32.mrb[0].mxu0
        %v1793 = vpop.f32.mrb[0].mxu0
        %v1794 = vadd.f32 0.0, %v1793
        %v1795 = vpop.f32.mrb[0].mxu0
        %1796 = vdwg.mxu0
        %1797 = vrot.lane.b32.xlu0 %v1313, 64
        %v1798 = vpop.permute.xlu0 %1797
        %1799 = vrot.lane.b32.xlu0 %v1315, 64
        %v1800 = vpop.permute.xlu0 %1799
        %v1802 = vsel %vm1319, %v1798, 0
        %v1805 = vsel %vm1319, %v1800, 0
        %1807 = vmatprep.subr.bf16.mxu0 0
        %1808 = vmatpush1.bf16.xpose.msra.mxu0 %v1805
        %1809 = vmatprep.subr.bf16.mxu0 0
        %1810 = vmatpush1.bf16.xpose.msra.mxu0 0
        %1811 = vmatprep.subr.bf16.mxu0 0
        %1812 = vmatpush1.bf16.xpose.msra.mxu0 0
        %1813 = vmatprep.subr.bf16.mxu0 0
        %1814 = vmatpush1.bf16.xpose.msra.mxu0 0
        %1815 = vmatprep.subr.bf16.mxu0 0
        %1816 = vmatpush1.bf16.xpose.msra.mxu0 0
        %1817 = vmatprep.subr.bf16.mxu0 0
        %1818 = vmatpush1.bf16.xpose.msra.mxu0 0
        %1819 = vmatprep.subr.bf16.mxu0 0
        %1820 = vmatpush1.bf16.xpose.msra.mxu0 0
        %1821 = vmatprep.subr.bf16.mxu0 0
        %1822 = vmatpush1.bf16.xpose.msra.mxu0 0
        %1823 = vmatprep.subr.bf16.mxu0 0
        %1824 = vmatpush1.bf16.xpose.msra.mxu0 0
        %1825 = vmatprep.subr.bf16.mxu0 0
        %1826 = vmatpush1.bf16.xpose.msra.mxu0 0
        %1827 = vmatprep.subr.bf16.mxu0 0
        %1828 = vmatpush1.bf16.xpose.msra.mxu0 0
        %1829 = vmatprep.subr.bf16.mxu0 0
        %1830 = vmatpush1.bf16.xpose.msra.mxu0 0
        %1831 = vmatprep.subr.bf16.mxu0 0
        %1832 = vmatpush1.bf16.xpose.msra.mxu0 0
        %1833 = vmatprep.subr.bf16.mxu0 0
        %1834 = vmatpush1.bf16.xpose.msra.mxu0 0
        %1835 = vmatprep.subr.bf16.mxu0 0
        %1836 = vmatpush1.bf16.xpose.msra.mxu0 0
        %1837 = vmatprep.subr.bf16.mxu0 0
        %1838 = vmatpush1.bf16.xpose.msra.mxu0 0
        %1839 = vmatprep.mubr.bf16.mxu0 0
        %1840 = vmatmul.mubr.bf16.gmra.mrb[0].mxu0 %v1802
        %v1841 = vpop.f32.mrb[0].mxu0
        %v1842 = vadd.f32 0.0, %v1841
        %v1843 = vpop.f32.mrb[0].mxu0
        %v1844 = vpop.f32.mrb[0].mxu0
        %v1845 = vadd.f32 0.0, %v1844
        %v1846 = vpop.f32.mrb[0].mxu0
        %1847 = vdwg.mxu0
        %1848 = vrot.lane.b32.xlu0 %v1314, 64
        %v1849 = vpop.permute.xlu0 %1848
        %1850 = vrot.lane.b32.xlu0 %v1316, 64
        %v1851 = vpop.permute.xlu0 %1850
        %v1853 = vsel %vm1319, %v1849, 0
        %v1856 = vsel %vm1319, %v1851, 0
        %1858 = vmatprep.subr.bf16.mxu0 0
        %1859 = vmatpush1.bf16.xpose.msra.mxu0 %v1856
        %1860 = vmatprep.subr.bf16.mxu0 0
        %1861 = vmatpush1.bf16.xpose.msra.mxu0 0
        %1862 = vmatprep.subr.bf16.mxu0 0
        %1863 = vmatpush1.bf16.xpose.msra.mxu0 0
        %1864 = vmatprep.subr.bf16.mxu0 0
        %1865 = vmatpush1.bf16.xpose.msra.mxu0 0
        %1866 = vmatprep.subr.bf16.mxu0 0
        %1867 = vmatpush1.bf16.xpose.msra.mxu0 0
        %1868 = vmatprep.subr.bf16.mxu0 0
        %1869 = vmatpush1.bf16.xpose.msra.mxu0 0
        %1870 = vmatprep.subr.bf16.mxu0 0
        %1871 = vmatpush1.bf16.xpose.msra.mxu0 0
        %1872 = vmatprep.subr.bf16.mxu0 0
        %1873 = vmatpush1.bf16.xpose.msra.mxu0 0
        %1874 = vmatprep.subr.bf16.mxu0 0
        %1875 = vmatpush1.bf16.xpose.msra.mxu0 0
        %1876 = vmatprep.subr.bf16.mxu0 0
        %1877 = vmatpush1.bf16.xpose.msra.mxu0 0
        %1878 = vmatprep.subr.bf16.mxu0 0
        %1879 = vmatpush1.bf16.xpose.msra.mxu0 0
        %1880 = vmatprep.subr.bf16.mxu0 0
        %1881 = vmatpush1.bf16.xpose.msra.mxu0 0
        %1882 = vmatprep.subr.bf16.mxu0 0
        %1883 = vmatpush1.bf16.xpose.msra.mxu0 0
        %1884 = vmatprep.subr.bf16.mxu0 0
        %1885 = vmatpush1.bf16.xpose.msra.mxu0 0
        %1886 = vmatprep.subr.bf16.mxu0 0
        %1887 = vmatpush1.bf16.xpose.msra.mxu0 0
        %1888 = vmatprep.subr.bf16.mxu0 0
        %1889 = vmatpush1.bf16.xpose.msra.mxu0 0
        %1890 = vmatprep.mubr.bf16.mxu0 0
        %1891 = vmatmul.mubr.bf16.gmra.mrb[0].mxu0 %v1853
        %v1892 = vpop.f32.mrb[0].mxu0
        %v1893 = vadd.f32 0.0, %v1892
        %v1894 = vpop.f32.mrb[0].mxu0
        %v1895 = vpop.f32.mrb[0].mxu0
        %v1896 = vadd.f32 0.0, %v1895
        %v1897 = vpop.f32.mrb[0].mxu0
        %1898 = vdwg.mxu0
        %v1899 = vsel %vm1414, %v1842, -inf
        %1900 = vmax.xlane.f32.xlu0 %v1899
        %v1901 = vpop.xlane.xlu0 %1900
        %v1902 = vsel %vm1414, %v1845, -inf
        %1903 = vmax.xlane.f32.xlu0 %v1902
        %v1904 = vpop.xlane.xlu0 %1903
        %v1905 = vsel %vm1414, %v1893, -inf
        %1906 = vmax.xlane.f32.xlu0 %v1905
        %v1907 = vpop.xlane.xlu0 %1906
        %v1908 = vsel %vm1414, %v1896, -inf
        %1909 = vmax.xlane.f32.xlu0 %v1908
        %v1910 = vpop.xlane.xlu0 %1909
        %v1911 = vsub.f32 %v1842, %v1901
        %v1912 = vsub.f32 %v1845, %v1904
        %v1913 = vsub.f32 %v1893, %v1907
        %v1914 = vsub.f32 %v1896, %v1910
        %v1915 = vmul.f32 %v1911, 1.442695
        %v1916 = vpow.pop %v1915
        %v1917 = vmul.f32 %v1912, 1.442695
        %v1918 = vpow.pop %v1917
        %v1919 = vmul.f32 %v1913, 1.442695
        %v1920 = vpow.pop %v1919
        %v1921 = vmul.f32 %v1914, 1.442695
        %v1922 = vpow.pop %v1921
        %v1923 = vsel %vm1414, %v1916, 0.0
        %1924 = vadd.xlane.f32.xlu0 %v1923
        %v1925 = vpop.xlane.xlu0 %1924
        %v1926 = vsel %vm1414, %v1918, 0.0
        %1927 = vadd.xlane.f32.xlu0 %v1926
        %v1928 = vpop.xlane.xlu0 %1927
        %v1929 = vsel %vm1414, %v1920, 0.0
        %1930 = vadd.xlane.f32.xlu0 %v1929
        %v1931 = vpop.xlane.xlu0 %1930
        %v1932 = vsel %vm1414, %v1922, 0.0
        %1933 = vadd.xlane.f32.xlu0 %v1932
        %v1934 = vpop.xlane.xlu0 %1933
        %v1935 = vrcp.pop %v1925
        %v1936 = vrcp.pop %v1928
        %v1937 = vrcp.pop %v1931
        %v1938 = vrcp.pop %v1934
        %v1939 = vmul.f32 %v1916, %v1935
        %v1940 = vmul.f32 %v1918, %v1936
        %v1941 = vmul.f32 %v1920, %v1937
        %v1942 = vmul.f32 %v1922, %v1938
        %v1943 = vpack.c.bf16 %v1940, %v1939
        %v1944 = vpack.c.bf16 %v1942, %v1941
        %1945 = vrot.lane.b32.xlu0 %v1317, 64
        %v1946 = vpop.permute.xlu0 %1945
        %v1949 = vsel %vm1414, %v1943, 0
        %1951 = vmatprep.subr.bf16.mxu0 0
        %1952 = vmatpush1.bf16.msra.mxu0 %v1946
        %1953 = vmatprep.subr.bf16.mxu0 0
        %1954 = vmatpush1.bf16.msra.mxu0 0
        %1955 = vmatprep.subr.bf16.mxu0 0
        %1956 = vmatpush1.bf16.msra.mxu0 0
        %1957 = vmatprep.subr.bf16.mxu0 0
        %1958 = vmatpush1.bf16.msra.mxu0 0
        %1959 = vmatprep.subr.bf16.mxu0 0
        %1960 = vmatpush1.bf16.msra.mxu0 0
        %1961 = vmatprep.subr.bf16.mxu0 0
        %1962 = vmatpush1.bf16.msra.mxu0 0
        %1963 = vmatprep.subr.bf16.mxu0 0
        %1964 = vmatpush1.bf16.msra.mxu0 0
        %1965 = vmatprep.subr.bf16.mxu0 0
        %1966 = vmatpush1.bf16.msra.mxu0 0
        %1967 = vmatprep.subr.bf16.mxu0 0
        %1968 = vmatpush1.bf16.msra.mxu0 0
        %1969 = vmatprep.subr.bf16.mxu0 0
        %1970 = vmatpush1.bf16.msra.mxu0 0
        %1971 = vmatprep.subr.bf16.mxu0 0
        %1972 = vmatpush1.bf16.msra.mxu0 0
        %1973 = vmatprep.subr.bf16.mxu0 0
        %1974 = vmatpush1.bf16.msra.mxu0 0
        %1975 = vmatprep.subr.bf16.mxu0 0
        %1976 = vmatpush1.bf16.msra.mxu0 0
        %1977 = vmatprep.subr.bf16.mxu0 0
        %1978 = vmatpush1.bf16.msra.mxu0 0
        %1979 = vmatprep.subr.bf16.mxu0 0
        %1980 = vmatpush1.bf16.msra.mxu0 0
        %1981 = vmatprep.subr.bf16.mxu0 0
        %1982 = vmatpush1.bf16.msra.mxu0 0
        %1983 = vmatprep.mubr.bf16.mxu0 0
        %1984 = vmatmul.mubr.bf16.gmra.mrb[0].mxu0 %v1949
        %v1985 = vpop.f32.mrb[0].mxu0
        %v1986 = vadd.f32 0.0, %v1985
        %v1987 = vpop.f32.mrb[0].mxu0
        %v1988 = vpop.f32.mrb[0].mxu0
        %v1989 = vadd.f32 0.0, %v1988
        %v1990 = vpop.f32.mrb[0].mxu0
        %1991 = vdwg.mxu0
        %1992 = vrot.lane.b32.xlu0 %v1318, 64
        %v1993 = vpop.permute.xlu0 %1992
        %v1996 = vsel %vm1414, %v1944, 0
        %1998 = vmatprep.subr.bf16.mxu0 0
        %1999 = vmatpush1.bf16.msra.mxu0 %v1993
        %2000 = vmatprep.subr.bf16.mxu0 0
        %2001 = vmatpush1.bf16.msra.mxu0 0
        %2002 = vmatprep.subr.bf16.mxu0 0
        %2003 = vmatpush1.bf16.msra.mxu0 0
        %2004 = vmatprep.subr.bf16.mxu0 0
        %2005 = vmatpush1.bf16.msra.mxu0 0
        %2006 = vmatprep.subr.bf16.mxu0 0
        %2007 = vmatpush1.bf16.msra.mxu0 0
        %2008 = vmatprep.subr.bf16.mxu0 0
        %2009 = vmatpush1.bf16.msra.mxu0 0
        %2010 = vmatprep.subr.bf16.mxu0 0
        %2011 = vmatpush1.bf16.msra.mxu0 0
        %2012 = vmatprep.subr.bf16.mxu0 0
        %2013 = vmatpush1.bf16.msra.mxu0 0
        %2014 = vmatprep.subr.bf16.mxu0 0
        %2015 = vmatpush1.bf16.msra.mxu0 0
        %2016 = vmatprep.subr.bf16.mxu0 0
        %2017 = vmatpush1.bf16.msra.mxu0 0
        %2018 = vmatprep.subr.bf16.mxu0 0
        %2019 = vmatpush1.bf16.msra.mxu0 0
        %2020 = vmatprep.subr.bf16.mxu0 0
        %2021 = vmatpush1.bf16.msra.mxu0 0
        %2022 = vmatprep.subr.bf16.mxu0 0
        %2023 = vmatpush1.bf16.msra.mxu0 0
        %2024 = vmatprep.subr.bf16.mxu0 0
        %2025 = vmatpush1.bf16.msra.mxu0 0
        %2026 = vmatprep.subr.bf16.mxu0 0
        %2027 = vmatpush1.bf16.msra.mxu0 0
        %2028 = vmatprep.subr.bf16.mxu0 0
        %2029 = vmatpush1.bf16.msra.mxu0 0
        %2030 = vmatprep.mubr.bf16.mxu0 0
        %2031 = vmatmul.mubr.bf16.gmra.mrb[0].mxu0 %v1996
        %v2032 = vpop.f32.mrb[0].mxu0
        %v2033 = vadd.f32 0.0, %v2032
        %v2034 = vpop.f32.mrb[0].mxu0
        %v2035 = vpop.f32.mrb[0].mxu0
        %v2036 = vadd.f32 0.0, %v2035
        %v2037 = vpop.f32.mrb[0].mxu0
        %2038 = vdwg.mxu0
        %2039 = vrot.lane.b32.xlu0 %v1313, 32
        %v2040 = vpop.permute.xlu0 %2039
        %2041 = vrot.lane.b32.xlu0 %v1315, 32
        %v2042 = vpop.permute.xlu0 %2041
        %v2044 = vsel %vm1319, %v2040, 0
        %v2047 = vsel %vm1319, %v2042, 0
        %2049 = vmatprep.subr.bf16.mxu0 0
        %2050 = vmatpush1.bf16.xpose.msra.mxu0 %v2047
        %2051 = vmatprep.subr.bf16.mxu0 0
        %2052 = vmatpush1.bf16.xpose.msra.mxu0 0
        %2053 = vmatprep.subr.bf16.mxu0 0
        %2054 = vmatpush1.bf16.xpose.msra.mxu0 0
        %2055 = vmatprep.subr.bf16.mxu0 0
        %2056 = vmatpush1.bf16.xpose.msra.mxu0 0
        %2057 = vmatprep.subr.bf16.mxu0 0
        %2058 = vmatpush1.bf16.xpose.msra.mxu0 0
        %2059 = vmatprep.subr.bf16.mxu0 0
        %2060 = vmatpush1.bf16.xpose.msra.mxu0 0
        %2061 = vmatprep.subr.bf16.mxu0 0
        %2062 = vmatpush1.bf16.xpose.msra.mxu0 0
        %2063 = vmatprep.subr.bf16.mxu0 0
        %2064 = vmatpush1.bf16.xpose.msra.mxu0 0
        %2065 = vmatprep.subr.bf16.mxu0 0
        %2066 = vmatpush1.bf16.xpose.msra.mxu0 0
        %2067 = vmatprep.subr.bf16.mxu0 0
        %2068 = vmatpush1.bf16.xpose.msra.mxu0 0
        %2069 = vmatprep.subr.bf16.mxu0 0
        %2070 = vmatpush1.bf16.xpose.msra.mxu0 0
        %2071 = vmatprep.subr.bf16.mxu0 0
        %2072 = vmatpush1.bf16.xpose.msra.mxu0 0
        %2073 = vmatprep.subr.bf16.mxu0 0
        %2074 = vmatpush1.bf16.xpose.msra.mxu0 0
        %2075 = vmatprep.subr.bf16.mxu0 0
        %2076 = vmatpush1.bf16.xpose.msra.mxu0 0
        %2077 = vmatprep.subr.bf16.mxu0 0
        %2078 = vmatpush1.bf16.xpose.msra.mxu0 0
        %2079 = vmatprep.subr.bf16.mxu0 0
        %2080 = vmatpush1.bf16.xpose.msra.mxu0 0
        %2081 = vmatprep.mubr.bf16.mxu0 0
        %2082 = vmatmul.mubr.bf16.gmra.mrb[0].mxu0 %v2044
        %v2083 = vpop.f32.mrb[0].mxu0
        %v2084 = vadd.f32 0.0, %v2083
        %v2085 = vpop.f32.mrb[0].mxu0
        %v2086 = vpop.f32.mrb[0].mxu0
        %v2087 = vadd.f32 0.0, %v2086
        %v2088 = vpop.f32.mrb[0].mxu0
        %2089 = vdwg.mxu0
        %2090 = vrot.lane.b32.xlu0 %v1314, 32
        %v2091 = vpop.permute.xlu0 %2090
        %2092 = vrot.lane.b32.xlu0 %v1316, 32
        %v2093 = vpop.permute.xlu0 %2092
        %v2095 = vsel %vm1319, %v2091, 0
        %v2098 = vsel %vm1319, %v2093, 0
        %2100 = vmatprep.subr.bf16.mxu0 0
        %2101 = vmatpush1.bf16.xpose.msra.mxu0 %v2098
        %2102 = vmatprep.subr.bf16.mxu0 0
        %2103 = vmatpush1.bf16.xpose.msra.mxu0 0
        %2104 = vmatprep.subr.bf16.mxu0 0
        %2105 = vmatpush1.bf16.xpose.msra.mxu0 0
        %2106 = vmatprep.subr.bf16.mxu0 0
        %2107 = vmatpush1.bf16.xpose.msra.mxu0 0
        %2108 = vmatprep.subr.bf16.mxu0 0
        %2109 = vmatpush1.bf16.xpose.msra.mxu0 0
        %2110 = vmatprep.subr.bf16.mxu0 0
        %2111 = vmatpush1.bf16.xpose.msra.mxu0 0
        %2112 = vmatprep.subr.bf16.mxu0 0
        %2113 = vmatpush1.bf16.xpose.msra.mxu0 0
        %2114 = vmatprep.subr.bf16.mxu0 0
        %2115 = vmatpush1.bf16.xpose.msra.mxu0 0
        %2116 = vmatprep.subr.bf16.mxu0 0
        %2117 = vmatpush1.bf16.xpose.msra.mxu0 0
        %2118 = vmatprep.subr.bf16.mxu0 0
        %2119 = vmatpush1.bf16.xpose.msra.mxu0 0
        %2120 = vmatprep.subr.bf16.mxu0 0
        %2121 = vmatpush1.bf16.xpose.msra.mxu0 0
        %2122 = vmatprep.subr.bf16.mxu0 0
        %2123 = vmatpush1.bf16.xpose.msra.mxu0 0
        %2124 = vmatprep.subr.bf16.mxu0 0
        %2125 = vmatpush1.bf16.xpose.msra.mxu0 0
        %2126 = vmatprep.subr.bf16.mxu0 0
        %2127 = vmatpush1.bf16.xpose.msra.mxu0 0
        %2128 = vmatprep.subr.bf16.mxu0 0
        %2129 = vmatpush1.bf16.xpose.msra.mxu0 0
        %2130 = vmatprep.subr.bf16.mxu0 0
        %2131 = vmatpush1.bf16.xpose.msra.mxu0 0
        %2132 = vmatprep.mubr.bf16.mxu0 0
        %2133 = vmatmul.mubr.bf16.gmra.mrb[0].mxu0 %v2095
        %v2134 = vpop.f32.mrb[0].mxu0
        %v2135 = vadd.f32 0.0, %v2134
        %v2136 = vpop.f32.mrb[0].mxu0
        %v2137 = vpop.f32.mrb[0].mxu0
        %v2138 = vadd.f32 0.0, %v2137
        %v2139 = vpop.f32.mrb[0].mxu0
        %2140 = vdwg.mxu0
        %v2141 = vsel %vm1414, %v2084, -inf
        %2142 = vmax.xlane.f32.xlu0 %v2141
        %v2143 = vpop.xlane.xlu0 %2142
        %v2144 = vsel %vm1414, %v2087, -inf
        %2145 = vmax.xlane.f32.xlu0 %v2144
        %v2146 = vpop.xlane.xlu0 %2145
        %v2147 = vsel %vm1414, %v2135, -inf
        %2148 = vmax.xlane.f32.xlu0 %v2147
        %v2149 = vpop.xlane.xlu0 %2148
        %v2150 = vsel %vm1414, %v2138, -inf
        %2151 = vmax.xlane.f32.xlu0 %v2150
        %v2152 = vpop.xlane.xlu0 %2151
        %v2153 = vsub.f32 %v2084, %v2143
        %v2154 = vsub.f32 %v2087, %v2146
        %v2155 = vsub.f32 %v2135, %v2149
        %v2156 = vsub.f32 %v2138, %v2152
        %v2157 = vmul.f32 %v2153, 1.442695
        %v2158 = vpow.pop %v2157
        %v2159 = vmul.f32 %v2154, 1.442695
        %v2160 = vpow.pop %v2159
        %v2161 = vmul.f32 %v2155, 1.442695
        %v2162 = vpow.pop %v2161
        %v2163 = vmul.f32 %v2156, 1.442695
        %v2164 = vpow.pop %v2163
        %v2165 = vsel %vm1414, %v2158, 0.0
        %2166 = vadd.xlane.f32.xlu0 %v2165
        %v2167 = vpop.xlane.xlu0 %2166
        %v2168 = vsel %vm1414, %v2160, 0.0
        %2169 = vadd.xlane.f32.xlu0 %v2168
        %v2170 = vpop.xlane.xlu0 %2169
        %v2171 = vsel %vm1414, %v2162, 0.0
        %2172 = vadd.xlane.f32.xlu0 %v2171
        %v2173 = vpop.xlane.xlu0 %2172
        %v2174 = vsel %vm1414, %v2164, 0.0
        %2175 = vadd.xlane.f32.xlu0 %v2174
        %v2176 = vpop.xlane.xlu0 %2175
        %v2177 = vrcp.pop %v2167
        %v2178 = vrcp.pop %v2170
        %v2179 = vrcp.pop %v2173
        %v2180 = vrcp.pop %v2176
        %v2181 = vmul.f32 %v2158, %v2177
        %v2182 = vmul.f32 %v2160, %v2178
        %v2183 = vmul.f32 %v2162, %v2179
        %v2184 = vmul.f32 %v2164, %v2180
        %v2185 = vpack.c.bf16 %v2182, %v2181
        %v2186 = vpack.c.bf16 %v2184, %v2183
        %2187 = vrot.lane.b32.xlu0 %v1317, 32
        %v2188 = vpop.permute.xlu0 %2187
        %v2191 = vsel %vm1414, %v2185, 0
        %2193 = vmatprep.subr.bf16.mxu0 0
        %2194 = vmatpush1.bf16.msra.mxu0 %v2188
        %2195 = vmatprep.subr.bf16.mxu0 0
        %2196 = vmatpush1.bf16.msra.mxu0 0
        %2197 = vmatprep.subr.bf16.mxu0 0
        %2198 = vmatpush1.bf16.msra.mxu0 0
        %2199 = vmatprep.subr.bf16.mxu0 0
        %2200 = vmatpush1.bf16.msra.mxu0 0
        %2201 = vmatprep.subr.bf16.mxu0 0
        %2202 = vmatpush1.bf16.msra.mxu0 0
        %2203 = vmatprep.subr.bf16.mxu0 0
        %2204 = vmatpush1.bf16.msra.mxu0 0
        %2205 = vmatprep.subr.bf16.mxu0 0
        %2206 = vmatpush1.bf16.msra.mxu0 0
        %2207 = vmatprep.subr.bf16.mxu0 0
        %2208 = vmatpush1.bf16.msra.mxu0 0
        %2209 = vmatprep.subr.bf16.mxu0 0
        %2210 = vmatpush1.bf16.msra.mxu0 0
        %2211 = vmatprep.subr.bf16.mxu0 0
        %2212 = vmatpush1.bf16.msra.mxu0 0
        %2213 = vmatprep.subr.bf16.mxu0 0
        %2214 = vmatpush1.bf16.msra.mxu0 0
        %2215 = vmatprep.subr.bf16.mxu0 0
        %2216 = vmatpush1.bf16.msra.mxu0 0
        %2217 = vmatprep.subr.bf16.mxu0 0
        %2218 = vmatpush1.bf16.msra.mxu0 0
        %2219 = vmatprep.subr.bf16.mxu0 0
        %2220 = vmatpush1.bf16.msra.mxu0 0
        %2221 = vmatprep.subr.bf16.mxu0 0
        %2222 = vmatpush1.bf16.msra.mxu0 0
        %2223 = vmatprep.subr.bf16.mxu0 0
        %2224 = vmatpush1.bf16.msra.mxu0 0
        %2225 = vmatprep.mubr.bf16.mxu0 0
        %2226 = vmatmul.mubr.bf16.gmra.mrb[0].mxu0 %v2191
        %v2227 = vpop.f32.mrb[0].mxu0
        %v2228 = vadd.f32 0.0, %v2227
        %v2229 = vpop.f32.mrb[0].mxu0
        %v2230 = vpop.f32.mrb[0].mxu0
        %v2231 = vadd.f32 0.0, %v2230
        %v2232 = vpop.f32.mrb[0].mxu0
        %2233 = vdwg.mxu0
        %2234 = vrot.lane.b32.xlu0 %v1318, 32
        %v2235 = vpop.permute.xlu0 %2234
        %v2238 = vsel %vm1414, %v2186, 0
        %2240 = vmatprep.subr.bf16.mxu0 0
        %2241 = vmatpush1.bf16.msra.mxu0 %v2235
        %2242 = vmatprep.subr.bf16.mxu0 0
        %2243 = vmatpush1.bf16.msra.mxu0 0
        %2244 = vmatprep.subr.bf16.mxu0 0
        %2245 = vmatpush1.bf16.msra.mxu0 0
        %2246 = vmatprep.subr.bf16.mxu0 0
        %2247 = vmatpush1.bf16.msra.mxu0 0
        %2248 = vmatprep.subr.bf16.mxu0 0
        %2249 = vmatpush1.bf16.msra.mxu0 0
        %2250 = vmatprep.subr.bf16.mxu0 0
        %2251 = vmatpush1.bf16.msra.mxu0 0
        %2252 = vmatprep.subr.bf16.mxu0 0
        %2253 = vmatpush1.bf16.msra.mxu0 0
        %2254 = vmatprep.subr.bf16.mxu0 0
        %2255 = vmatpush1.bf16.msra.mxu0 0
        %2256 = vmatprep.subr.bf16.mxu0 0
        %2257 = vmatpush1.bf16.msra.mxu0 0
        %2258 = vmatprep.subr.bf16.mxu0 0
        %2259 = vmatpush1.bf16.msra.mxu0 0
        %2260 = vmatprep.subr.bf16.mxu0 0
        %2261 = vmatpush1.bf16.msra.mxu0 0
        %2262 = vmatprep.subr.bf16.mxu0 0
        %2263 = vmatpush1.bf16.msra.mxu0 0
        %2264 = vmatprep.subr.bf16.mxu0 0
        %2265 = vmatpush1.bf16.msra.mxu0 0
        %2266 = vmatprep.subr.bf16.mxu0 0
        %2267 = vmatpush1.bf16.msra.mxu0 0
        %2268 = vmatprep.subr.bf16.mxu0 0
        %2269 = vmatpush1.bf16.msra.mxu0 0
        %2270 = vmatprep.subr.bf16.mxu0 0
        %2271 = vmatpush1.bf16.msra.mxu0 0
        %2272 = vmatprep.mubr.bf16.mxu0 0
        %2273 = vmatmul.mubr.bf16.gmra.mrb[0].mxu0 %v2238
        %v2274 = vpop.f32.mrb[0].mxu0
        %v2275 = vadd.f32 0.0, %v2274
        %v2276 = vpop.f32.mrb[0].mxu0
        %v2277 = vpop.f32.mrb[0].mxu0
        %v2278 = vadd.f32 0.0, %v2277
        %v2279 = vpop.f32.mrb[0].mxu0
        %2280 = vdwg.mxu0
        %2285 = vrot.lane.b32.xlu0 %v1743, 32
        %v2286 = vpop.permute.xlu0 %2285
        %2287 = vrot.lane.b32.xlu0 %v1746, 32
        %v2288 = vpop.permute.xlu0 %2287
        %2289 = vrot.lane.b32.xlu0 %v1791, 32
        %v2290 = vpop.permute.xlu0 %2289
        %2291 = vrot.lane.b32.xlu0 %v1794, 32
        %v2292 = vpop.permute.xlu0 %2291
        %2301 = vrot.lane.b32.xlu0 %v1986, 64
        %v2302 = vpop.permute.xlu0 %2301
        %2303 = vrot.lane.b32.xlu0 %v1989, 64
        %v2304 = vpop.permute.xlu0 %2303
        %2305 = vrot.lane.b32.xlu0 %v2033, 64
        %v2306 = vpop.permute.xlu0 %2305
        %2307 = vrot.lane.b32.xlu0 %v2036, 64
        %v2308 = vpop.permute.xlu0 %2307
        %2317 = vrot.lane.b32.xlu0 %v2228, 96
        %v2318 = vpop.permute.xlu0 %2317
        %2319 = vrot.lane.b32.xlu0 %v2231, 96
        %v2320 = vpop.permute.xlu0 %2319
        %2321 = vrot.lane.b32.xlu0 %v2275, 96
        %v2322 = vpop.permute.xlu0 %2321
        %2323 = vrot.lane.b32.xlu0 %v2278, 96
        %v2324 = vpop.permute.xlu0 %2323
        %v2329 = vsel %vm1319, %v1499, %v2286
        %v2330 = vsel %vm1319, %v1502, %v2288
        %v2331 = vsel %vm1319, %v1543, %v2290
        %v2332 = vsel %vm1319, %v1546, %v2292
        %vm2333 = vcmask 523264
        %v2334 = vsel %vm2333, %v2329, %v2302
        %v2335 = vsel %vm2333, %v2330, %v2304
        %v2336 = vsel %vm2333, %v2331, %v2306
        %v2337 = vsel %vm2333, %v2332, %v2308
        %vm2338 = vcmask 785408
        %v2339 = vsel %vm2338, %v2334, %v2318
        %v2340 = vsel %vm2338, %v2335, %v2320
        %v2341 = vsel %vm2338, %v2336, %v2322
        %v2342 = vsel %vm2338, %v2337, %v2324
        %v2343 = vpack.c.bf16 %v2340, %v2339
        %v2344 = vpack.c.bf16 %v2342, %v2341
        %v2345 = vld [vmem:[%s801] sm:$0xf]
        %v2346 = vld [vmem:[%s801 + $0x4] sm:$0xf]
        %v2347 = vld [vmem:[%s801 + $0x8] sm:$0xf]
        %v2348 = vld [vmem:[%s801 + $0xc] sm:$0xf]
        %v2349 = vld [vmem:[%s801 + $0x10] sm:$0xf]
        %v2350 = vld [vmem:[%s801 + $0x14] sm:$0xf]
        %v2351 = vld [vmem:[%s801 + $0x18] sm:$0xf]
        %v2352 = vld [vmem:[%s801 + $0x1c] sm:$0xf]
        %v2353 = vld [vmem:[%s801 + $0x20] sm:$0xf]
        %v2354 = vld [vmem:[%s801 + $0x24] sm:$0xf]
        %v2355 = vld [vmem:[%s801 + $0x28] sm:$0xf]
        %v2356 = vld [vmem:[%s801 + $0x2c] sm:$0xf]
        %v2357 = vld [vmem:[%s801 + $0x30] sm:$0xf]
        %v2358 = vld [vmem:[%s801 + $0x34] sm:$0xf]
        %v2359 = vld [vmem:[%s801 + $0x38] sm:$0xf]
        %v2360 = vld [vmem:[%s801 + $0x3c] sm:$0xf]
        %v2361 = vld [vmem:[%s804] sm:$0x1]
        %v2363 = vlaneseq
        %v2364 = vshrl.u32 %v2363, 7
        %v2365 = vsub.s32 0, %v2364
        %v2366 = vrot.slane %v2361, %v2365
        %v2384 = vunpack.c.l.b16 %v2345
        %v2385 = vunpack.c.l.b16 %v2346
        %v2386 = vunpack.c.l.b16 %v2347
        %v2387 = vunpack.c.l.b16 %v2348
        %v2388 = vunpack.c.l.b16 %v2349
        %v2389 = vunpack.c.l.b16 %v2350
        %v2390 = vunpack.c.l.b16 %v2351
        %v2391 = vunpack.c.l.b16 %v2352
        %v2392 = vunpack.c.l.b16 %v2353
        %v2393 = vunpack.c.l.b16 %v2354
        %v2394 = vunpack.c.l.b16 %v2355
        %v2395 = vunpack.c.l.b16 %v2356
        %v2396 = vunpack.c.l.b16 %v2357
        %v2397 = vunpack.c.l.b16 %v2358
        %v2398 = vunpack.c.l.b16 %v2359
        %v2399 = vunpack.c.l.b16 %v2360
        %v2400 = vpack.c.b16 %v2385, %v2384
        %v2401 = vpack.c.b16 %v2387, %v2386
        %v2402 = vpack.c.b16 %v2389, %v2388
        %v2403 = vpack.c.b16 %v2391, %v2390
        %v2404 = vpack.c.b16 %v2393, %v2392
        %v2405 = vpack.c.b16 %v2395, %v2394
        %v2406 = vpack.c.b16 %v2397, %v2396
        %v2407 = vpack.c.b16 %v2399, %v2398
        %2416 = vmatprep.subr.bf16.mxu0 0
        %2417 = vmatpush1.bf16.msra.mxu0 %v2400
        %2418 = vmatprep.subr.bf16.mxu0 0
        %2419 = vmatpush1.bf16.msra.mxu0 %v2401
        %2420 = vmatprep.subr.bf16.mxu0 0
        %2421 = vmatpush1.bf16.msra.mxu0 %v2402
        %2422 = vmatprep.subr.bf16.mxu0 0
        %2423 = vmatpush1.bf16.msra.mxu0 %v2403
        %2424 = vmatprep.subr.bf16.mxu0 0
        %2425 = vmatpush1.bf16.msra.mxu0 %v2404
        %2426 = vmatprep.subr.bf16.mxu0 0
        %2427 = vmatpush1.bf16.msra.mxu0 %v2405
        %2428 = vmatprep.subr.bf16.mxu0 0
        %2429 = vmatpush1.bf16.msra.mxu0 %v2406
        %2430 = vmatprep.subr.bf16.mxu0 0
        %2431 = vmatpush1.bf16.msra.mxu0 %v2407
        %2432 = vmatprep.subr.bf16.mxu0 0
        %2433 = vmatpush1.bf16.msra.mxu0 0
        %2434 = vmatprep.subr.bf16.mxu0 0
        %2435 = vmatpush1.bf16.msra.mxu0 0
        %2436 = vmatprep.subr.bf16.mxu0 0
        %2437 = vmatpush1.bf16.msra.mxu0 0
        %2438 = vmatprep.subr.bf16.mxu0 0
        %2439 = vmatpush1.bf16.msra.mxu0 0
        %2440 = vmatprep.subr.bf16.mxu0 0
        %2441 = vmatpush1.bf16.msra.mxu0 0
        %2442 = vmatprep.subr.bf16.mxu0 0
        %2443 = vmatpush1.bf16.msra.mxu0 0
        %2444 = vmatprep.subr.bf16.mxu0 0
        %2445 = vmatpush1.bf16.msra.mxu0 0
        %2446 = vmatprep.subr.bf16.mxu0 0
        %2447 = vmatpush1.bf16.msra.mxu0 0
        %2448 = vmatprep.mubr.bf16.mxu0 0
        %2449 = vmatmul.mubr.bf16.gmra.mrb[0].mxu0 %v2343
        %v2450 = vpop.f32.mrb[0].mxu0
        %v2451 = vadd.f32 %v2366, %v2450
        %v2452 = vpop.f32.mrb[0].mxu0
        %v2453 = vpop.f32.mrb[0].mxu0
        %v2454 = vadd.f32 %v2366, %v2453
        %v2455 = vpop.f32.mrb[0].mxu0
        %2456 = vmatprep.mubr.bf16.mxu0 0
        %2457 = vmatmul.mubr.bf16.gmra.mrb[0].mxu0 %v2344
        %v2458 = vpop.f32.mrb[0].mxu0
        %v2459 = vadd.f32 %v2366, %v2458
        %v2460 = vpop.f32.mrb[0].mxu0
        %v2461 = vpop.f32.mrb[0].mxu0
        %v2462 = vadd.f32 %v2366, %v2461
        %v2463 = vpop.f32.mrb[0].mxu0
        %2464 = vdwg.mxu0
        %v2465 = vadd.f32 %v1024, %v2451
        %v2466 = vadd.f32 %v1025, %v2454
        %v2467 = vadd.f32 %v1026, %v2459
        %v2468 = vadd.f32 %v1027, %v2462
        %v2469 = vld [vmem:[%s807] sm:$0x1]
        %v2470 = vld [vmem:[%s810] sm:$0x1]
        %2471 = vadd.xlane.f32.xlu0 %v2465
        %v2472 = vpop.xlane.xlu0 %2471
        %2473 = vadd.xlane.f32.xlu0 %v2466
        %v2474 = vpop.xlane.xlu0 %2473
        %2475 = vadd.xlane.f32.xlu0 %v2467
        %v2476 = vpop.xlane.xlu0 %2475
        %2477 = vadd.xlane.f32.xlu0 %v2468
        %v2478 = vpop.xlane.xlu0 %2477
        %v2479 = vrcp.pop 128.0
        %v2480 = vmul.f32 %v2472, %v2479
        %v2481 = vmul.f32 %v2474, %v2479
        %v2482 = vmul.f32 %v2476, %v2479
        %v2483 = vmul.f32 %v2478, %v2479
        %v2484 = vsub.f32 %v2465, %v2480
        %v2485 = vsub.f32 %v2466, %v2481
        %v2486 = vsub.f32 %v2467, %v2482
        %v2487 = vsub.f32 %v2468, %v2483
        %v2488 = vmul.f32 %v2484, %v2484
        %v2489 = vmul.f32 %v2485, %v2485
        %v2490 = vmul.f32 %v2486, %v2486
        %v2491 = vmul.f32 %v2487, %v2487
        %2492 = vadd.xlane.f32.xlu0 %v2488
        %v2493 = vpop.xlane.xlu0 %2492
        %2494 = vadd.xlane.f32.xlu0 %v2489
        %v2495 = vpop.xlane.xlu0 %2494
        %2496 = vadd.xlane.f32.xlu0 %v2490
        %v2497 = vpop.xlane.xlu0 %2496
        %2498 = vadd.xlane.f32.xlu0 %v2491
        %v2499 = vpop.xlane.xlu0 %2498
        %v2500 = vmul.f32 %v2493, %v2479
        %v2501 = vmul.f32 %v2495, %v2479
        %v2502 = vmul.f32 %v2497, %v2479
        %v2503 = vmul.f32 %v2499, %v2479
        %v2504 = vadd.f32 %v2500, 1e-12
        %v2505 = vadd.f32 %v2501, 1e-12
        %v2506 = vadd.f32 %v2502, 1e-12
        %v2507 = vadd.f32 %v2503, 1e-12
        %v2508 = vrsqrt.pop %v2504
        %v2509 = vrsqrt.pop %v2505
        %v2510 = vrsqrt.pop %v2506
        %v2511 = vrsqrt.pop %v2507
        %v2512 = vmul.f32 %v2484, %v2508
        %v2513 = vmul.f32 %v2485, %v2509
        %v2514 = vmul.f32 %v2486, %v2510
        %v2515 = vmul.f32 %v2487, %v2511
        %v2517 = vlaneseq
        %v2518 = vshrl.u32 %v2517, 7
        %v2519 = vsub.s32 0, %v2518
        %v2520 = vrot.slane %v2469, %v2519
        %v2522 = vmul.f32 %v2512, %v2520
        %v2523 = vmul.f32 %v2513, %v2520
        %v2524 = vmul.f32 %v2514, %v2520
        %v2525 = vmul.f32 %v2515, %v2520
        %v2527 = vlaneseq
        %v2528 = vshrl.u32 %v2527, 7
        %v2529 = vsub.s32 0, %v2528
        %v2530 = vrot.slane %v2470, %v2529
        %v2532 = vadd.f32 %v2522, %v2530
        %v2533 = vadd.f32 %v2523, %v2530
        %v2534 = vadd.f32 %v2524, %v2530
        %v2535 = vadd.f32 %v2525, %v2530
        %v2536 = vpack.c.bf16 %v2533, %v2532
        %v2537 = vpack.c.bf16 %v2535, %v2534
        %v2538 = vld [vmem:[%s693] sm:$0xff]
        %v2539 = vld [vmem:[%s693 + $0x8] sm:$0xff]
        %v2540 = vld [vmem:[%s693 + $0x10] sm:$0xff]
        %v2541 = vld [vmem:[%s693 + $0x18] sm:$0xff]
        %v2542 = vld [vmem:[%s693 + $0x20] sm:$0xff]
        %v2543 = vld [vmem:[%s693 + $0x28] sm:$0xff]
        %v2544 = vld [vmem:[%s693 + $0x30] sm:$0xff]
        %v2545 = vld [vmem:[%s693 + $0x38] sm:$0xff]
        %v2546 = vld [vmem:[%s693 + $0x40] sm:$0xff]
        %v2547 = vld [vmem:[%s693 + $0x48] sm:$0xff]
        %v2548 = vld [vmem:[%s693 + $0x50] sm:$0xff]
        %v2549 = vld [vmem:[%s693 + $0x58] sm:$0xff]
        %v2550 = vld [vmem:[%s693 + $0x60] sm:$0xff]
        %v2551 = vld [vmem:[%s693 + $0x68] sm:$0xff]
        %v2552 = vld [vmem:[%s693 + $0x70] sm:$0xff]
        %v2553 = vld [vmem:[%s693 + $0x78] sm:$0xff]
        %v2554 = vld [vmem:[%s693 + $0x80] sm:$0xff]
        %v2555 = vld [vmem:[%s693 + $0x88] sm:$0xff]
        %v2556 = vld [vmem:[%s693 + $0x90] sm:$0xff]
        %v2557 = vld [vmem:[%s693 + $0x98] sm:$0xff]
        %v2558 = vld [vmem:[%s693 + $0xa0] sm:$0xff]
        %v2559 = vld [vmem:[%s693 + $0xa8] sm:$0xff]
        %v2560 = vld [vmem:[%s693 + $0xb0] sm:$0xff]
        %v2561 = vld [vmem:[%s693 + $0xb8] sm:$0xff]
        %v2562 = vld [vmem:[%s693 + $0xc0] sm:$0xff]
        %v2563 = vld [vmem:[%s693 + $0xc8] sm:$0xff]
        %v2564 = vld [vmem:[%s693 + $0xd0] sm:$0xff]
        %v2565 = vld [vmem:[%s693 + $0xd8] sm:$0xff]
        %v2566 = vld [vmem:[%s693 + $0xe0] sm:$0xff]
        %v2567 = vld [vmem:[%s693 + $0xe8] sm:$0xff]
        %v2568 = vld [vmem:[%s693 + $0xf0] sm:$0xff]
        %v2569 = vld [vmem:[%s693 + $0xf8] sm:$0xff]
        %v2570 = vld [vmem:[%s814] sm:$0xf]
        %v2572 = vlaneseq
        %v2573 = vshrl.u32 %v2572, 7
        %v2574 = vsub.s32 0, %v2573
        %v2575 = vrot.slane %v2570, %v2574
        %v2576 = vlaneseq
        %v2577 = vshrl.u32 %v2576, 7
        %v2578 = vsub.s32 1, %v2577
        %v2579 = vrot.slane %v2570, %v2578
        %v2580 = vlaneseq
        %v2581 = vshrl.u32 %v2580, 7
        %v2582 = vsub.s32 2, %v2581
        %v2583 = vrot.slane %v2570, %v2582
        %v2584 = vlaneseq
        %v2585 = vshrl.u32 %v2584, 7
        %v2586 = vsub.s32 3, %v2585
        %v2587 = vrot.slane %v2570, %v2586
        %v2624 = vunpack.c.l.b16 %v2538
        %v2625 = vunpack.c.h.b16 %v2538
        %v2626 = vunpack.c.l.b16 %v2539
        %v2627 = vunpack.c.h.b16 %v2539
        %v2628 = vunpack.c.l.b16 %v2540
        %v2629 = vunpack.c.h.b16 %v2540
        %v2630 = vunpack.c.l.b16 %v2541
        %v2631 = vunpack.c.h.b16 %v2541
        %v2632 = vunpack.c.l.b16 %v2542
        %v2633 = vunpack.c.h.b16 %v2542
        %v2634 = vunpack.c.l.b16 %v2543
        %v2635 = vunpack.c.h.b16 %v2543
        %v2636 = vunpack.c.l.b16 %v2544
        %v2637 = vunpack.c.h.b16 %v2544
        %v2638 = vunpack.c.l.b16 %v2545
        %v2639 = vunpack.c.h.b16 %v2545
        %v2640 = vunpack.c.l.b16 %v2546
        %v2641 = vunpack.c.h.b16 %v2546
        %v2642 = vunpack.c.l.b16 %v2547
        %v2643 = vunpack.c.h.b16 %v2547
        %v2644 = vunpack.c.l.b16 %v2548
        %v2645 = vunpack.c.h.b16 %v2548
        %v2646 = vunpack.c.l.b16 %v2549
        %v2647 = vunpack.c.h.b16 %v2549
        %v2648 = vunpack.c.l.b16 %v2550
        %v2649 = vunpack.c.h.b16 %v2550
        %v2650 = vunpack.c.l.b16 %v2551
        %v2651 = vunpack.c.h.b16 %v2551
        %v2652 = vunpack.c.l.b16 %v2552
        %v2653 = vunpack.c.h.b16 %v2552
        %v2654 = vunpack.c.l.b16 %v2553
        %v2655 = vunpack.c.h.b16 %v2553
        %v2656 = vunpack.c.l.b16 %v2554
        %v2657 = vunpack.c.h.b16 %v2554
        %v2658 = vunpack.c.l.b16 %v2555
        %v2659 = vunpack.c.h.b16 %v2555
        %v2660 = vunpack.c.l.b16 %v2556
        %v2661 = vunpack.c.h.b16 %v2556
        %v2662 = vunpack.c.l.b16 %v2557
        %v2663 = vunpack.c.h.b16 %v2557
        %v2664 = vunpack.c.l.b16 %v2558
        %v2665 = vunpack.c.h.b16 %v2558
        %v2666 = vunpack.c.l.b16 %v2559
        %v2667 = vunpack.c.h.b16 %v2559
        %v2668 = vunpack.c.l.b16 %v2560
        %v2669 = vunpack.c.h.b16 %v2560
        %v2670 = vunpack.c.l.b16 %v2561
        %v2671 = vunpack.c.h.b16 %v2561
        %v2672 = vunpack.c.l.b16 %v2562
        %v2673 = vunpack.c.h.b16 %v2562
        %v2674 = vunpack.c.l.b16 %v2563
        %v2675 = vunpack.c.h.b16 %v2563
        %v2676 = vunpack.c.l.b16 %v2564
        %v2677 = vunpack.c.h.b16 %v2564
        %v2678 = vunpack.c.l.b16 %v2565
        %v2679 = vunpack.c.h.b16 %v2565
        %v2680 = vunpack.c.l.b16 %v2566
        %v2681 = vunpack.c.h.b16 %v2566
        %v2682 = vunpack.c.l.b16 %v2567
        %v2683 = vunpack.c.h.b16 %v2567
        %v2684 = vunpack.c.l.b16 %v2568
        %v2685 = vunpack.c.h.b16 %v2568
        %v2686 = vunpack.c.l.b16 %v2569
        %v2687 = vunpack.c.h.b16 %v2569
        %v2688 = vpack.c.b16 %v2628, %v2624
        %v2689 = vpack.c.b16 %v2629, %v2625
        %v2690 = vpack.c.b16 %v2630, %v2626
        %v2691 = vpack.c.b16 %v2631, %v2627
        %v2692 = vpack.c.b16 %v2636, %v2632
        %v2693 = vpack.c.b16 %v2637, %v2633
        %v2694 = vpack.c.b16 %v2638, %v2634
        %v2695 = vpack.c.b16 %v2639, %v2635
        %v2696 = vpack.c.b16 %v2644, %v2640
        %v2697 = vpack.c.b16 %v2645, %v2641
        %v2698 = vpack.c.b16 %v2646, %v2642
        %v2699 = vpack.c.b16 %v2647, %v2643
        %v2700 = vpack.c.b16 %v2652, %v2648
        %v2701 = vpack.c.b16 %v2653, %v2649
        %v2702 = vpack.c.b16 %v2654, %v2650
        %v2703 = vpack.c.b16 %v2655, %v2651
        %v2704 = vpack.c.b16 %v2660, %v2656
        %v2705 = vpack.c.b16 %v2661, %v2657
        %v2706 = vpack.c.b16 %v2662, %v2658
        %v2707 = vpack.c.b16 %v2663, %v2659
        %v2708 = vpack.c.b16 %v2668, %v2664
        %v2709 = vpack.c.b16 %v2669, %v2665
        %v2710 = vpack.c.b16 %v2670, %v2666
        %v2711 = vpack.c.b16 %v2671, %v2667
        %v2712 = vpack.c.b16 %v2676, %v2672
        %v2713 = vpack.c.b16 %v2677, %v2673
        %v2714 = vpack.c.b16 %v2678, %v2674
        %v2715 = vpack.c.b16 %v2679, %v2675
        %v2716 = vpack.c.b16 %v2684, %v2680
        %v2717 = vpack.c.b16 %v2685, %v2681
        %v2718 = vpack.c.b16 %v2686, %v2682
        %v2719 = vpack.c.b16 %v2687, %v2683
        %2752 = vmatprep.subr.bf16.mxu0 %v2689
        %2753 = vmatpush1.bf16.msra.mxu0 %v2688
        %2754 = vmatprep.subr.bf16.mxu0 %v2693
        %2755 = vmatpush1.bf16.msra.mxu0 %v2692
        %2756 = vmatprep.subr.bf16.mxu0 %v2697
        %2757 = vmatpush1.bf16.msra.mxu0 %v2696
        %2758 = vmatprep.subr.bf16.mxu0 %v2701
        %2759 = vmatpush1.bf16.msra.mxu0 %v2700
        %2760 = vmatprep.subr.bf16.mxu0 %v2705
        %2761 = vmatpush1.bf16.msra.mxu0 %v2704
        %2762 = vmatprep.subr.bf16.mxu0 %v2709
        %2763 = vmatpush1.bf16.msra.mxu0 %v2708
        %2764 = vmatprep.subr.bf16.mxu0 %v2713
        %2765 = vmatpush1.bf16.msra.mxu0 %v2712
        %2766 = vmatprep.subr.bf16.mxu0 %v2717
        %2767 = vmatpush1.bf16.msra.mxu0 %v2716
        %2768 = vmatprep.subr.bf16.mxu0 0
        %2769 = vmatpush1.bf16.msra.mxu0 0
        %2770 = vmatprep.subr.bf16.mxu0 0
        %2771 = vmatpush1.bf16.msra.mxu0 0
        %2772 = vmatprep.subr.bf16.mxu0 0
        %2773 = vmatpush1.bf16.msra.mxu0 0
        %2774 = vmatprep.subr.bf16.mxu0 0
        %2775 = vmatpush1.bf16.msra.mxu0 0
        %2776 = vmatprep.subr.bf16.mxu0 0
        %2777 = vmatpush1.bf16.msra.mxu0 0
        %2778 = vmatprep.subr.bf16.mxu0 0
        %2779 = vmatpush1.bf16.msra.mxu0 0
        %2780 = vmatprep.subr.bf16.mxu0 0
        %2781 = vmatpush1.bf16.msra.mxu0 0
        %2782 = vmatprep.subr.bf16.mxu0 0
        %2783 = vmatpush1.bf16.msra.mxu0 0
        %2784 = vmatprep.mubr.bf16.mxu0 0
        %2785 = vmatmul.mubr.bf16.gmra.mrb[0].mxu0 %v2536
        %v2786 = vpop.f32.mrb[0].mxu0
        %v2787 = vadd.f32 %v2575, %v2786
        %v2788 = vpop.f32.mrb[0].mxu0
        %v2789 = vadd.f32 %v2579, %v2788
        %v2790 = vpop.f32.mrb[0].mxu0
        %v2791 = vadd.f32 %v2575, %v2790
        %v2792 = vpop.f32.mrb[0].mxu0
        %v2793 = vadd.f32 %v2579, %v2792
        %2794 = vmatprep.mubr.bf16.mxu0 0
        %2795 = vmatmul.mubr.bf16.gmra.mrb[0].mxu0 %v2537
        %v2796 = vpop.f32.mrb[0].mxu0
        %v2797 = vadd.f32 %v2575, %v2796
        %v2798 = vpop.f32.mrb[0].mxu0
        %v2799 = vadd.f32 %v2579, %v2798
        %v2800 = vpop.f32.mrb[0].mxu0
        %v2801 = vadd.f32 %v2575, %v2800
        %v2802 = vpop.f32.mrb[0].mxu0
        %v2803 = vadd.f32 %v2579, %v2802
        %2804 = vdwg.mxu0
        %2805 = vmatprep.subr.bf16.mxu0 %v2691
        %2806 = vmatpush1.bf16.msra.mxu0 %v2690
        %2807 = vmatprep.subr.bf16.mxu0 %v2695
        %2808 = vmatpush1.bf16.msra.mxu0 %v2694
        %2809 = vmatprep.subr.bf16.mxu0 %v2699
        %2810 = vmatpush1.bf16.msra.mxu0 %v2698
        %2811 = vmatprep.subr.bf16.mxu0 %v2703
        %2812 = vmatpush1.bf16.msra.mxu0 %v2702
        %2813 = vmatprep.subr.bf16.mxu0 %v2707
        %2814 = vmatpush1.bf16.msra.mxu0 %v2706
        %2815 = vmatprep.subr.bf16.mxu0 %v2711
        %2816 = vmatpush1.bf16.msra.mxu0 %v2710
        %2817 = vmatprep.subr.bf16.mxu0 %v2715
        %2818 = vmatpush1.bf16.msra.mxu0 %v2714
        %2819 = vmatprep.subr.bf16.mxu0 %v2719
        %2820 = vmatpush1.bf16.msra.mxu0 %v2718
        %2821 = vmatprep.subr.bf16.mxu0 0
        %2822 = vmatpush1.bf16.msra.mxu0 0
        %2823 = vmatprep.subr.bf16.mxu0 0
        %2824 = vmatpush1.bf16.msra.mxu0 0
        %2825 = vmatprep.subr.bf16.mxu0 0
        %2826 = vmatpush1.bf16.msra.mxu0 0
        %2827 = vmatprep.subr.bf16.mxu0 0
        %2828 = vmatpush1.bf16.msra.mxu0 0
        %2829 = vmatprep.subr.bf16.mxu0 0
        %2830 = vmatpush1.bf16.msra.mxu0 0
        %2831 = vmatprep.subr.bf16.mxu0 0
        %2832 = vmatpush1.bf16.msra.mxu0 0
        %2833 = vmatprep.subr.bf16.mxu0 0
        %2834 = vmatpush1.bf16.msra.mxu0 0
        %2835 = vmatprep.subr.bf16.mxu0 0
        %2836 = vmatpush1.bf16.msra.mxu0 0
        %2837 = vmatprep.mubr.bf16.mxu0 0
        %2838 = vmatmul.mubr.bf16.gmra.mrb[0].mxu0 %v2536
        %v2839 = vpop.f32.mrb[0].mxu0
        %v2840 = vadd.f32 %v2583, %v2839
        %v2841 = vpop.f32.mrb[0].mxu0
        %v2842 = vadd.f32 %v2587, %v2841
        %v2843 = vpop.f32.mrb[0].mxu0
        %v2844 = vadd.f32 %v2583, %v2843
        %v2845 = vpop.f32.mrb[0].mxu0
        %v2846 = vadd.f32 %v2587, %v2845
        %2847 = vmatprep.mubr.bf16.mxu0 0
        %2848 = vmatmul.mubr.bf16.gmra.mrb[0].mxu0 %v2537
        %v2849 = vpop.f32.mrb[0].mxu0
        %v2850 = vadd.f32 %v2583, %v2849
        %v2851 = vpop.f32.mrb[0].mxu0
        %v2852 = vadd.f32 %v2587, %v2851
        %v2853 = vpop.f32.mrb[0].mxu0
        %v2854 = vadd.f32 %v2583, %v2853
        %v2855 = vpop.f32.mrb[0].mxu0
        %v2856 = vadd.f32 %v2587, %v2855
        %2857 = vdwg.mxu0
        %v2858 = vmul.f32 %v2787, 0.5
        %v2859 = vmul.f32 %v2789, 0.5
        %v2860 = vmul.f32 %v2840, 0.5
        %v2861 = vmul.f32 %v2842, 0.5
        %v2862 = vmul.f32 %v2791, 0.5
        %v2863 = vmul.f32 %v2793, 0.5
        %v2864 = vmul.f32 %v2844, 0.5
        %v2865 = vmul.f32 %v2846, 0.5
        %v2866 = vmul.f32 %v2797, 0.5
        %v2867 = vmul.f32 %v2799, 0.5
        %v2868 = vmul.f32 %v2850, 0.5
        %v2869 = vmul.f32 %v2852, 0.5
        %v2870 = vmul.f32 %v2801, 0.5
        %v2871 = vmul.f32 %v2803, 0.5
        %v2872 = vmul.f32 %v2854, 0.5
        %v2873 = vmul.f32 %v2856, 0.5
        %v2874 = vmul.f32 %v2787, 0.044715
        %v2875 = vmul.f32 %v2789, 0.044715
        %v2876 = vmul.f32 %v2840, 0.044715
        %v2877 = vmul.f32 %v2842, 0.044715
        %v2878 = vmul.f32 %v2791, 0.044715
        %v2879 = vmul.f32 %v2793, 0.044715
        %v2880 = vmul.f32 %v2844, 0.044715
        %v2881 = vmul.f32 %v2846, 0.044715
        %v2882 = vmul.f32 %v2797, 0.044715
        %v2883 = vmul.f32 %v2799, 0.044715
        %v2884 = vmul.f32 %v2850, 0.044715
        %v2885 = vmul.f32 %v2852, 0.044715
        %v2886 = vmul.f32 %v2801, 0.044715
        %v2887 = vmul.f32 %v2803, 0.044715
        %v2888 = vmul.f32 %v2854, 0.044715
        %v2889 = vmul.f32 %v2856, 0.044715
        %v2890 = vmul.f32 %v2874, %v2787
        %v2891 = vmul.f32 %v2875, %v2789
        %v2892 = vmul.f32 %v2876, %v2840
        %v2893 = vmul.f32 %v2877, %v2842
        %v2894 = vmul.f32 %v2878, %v2791
        %v2895 = vmul.f32 %v2879, %v2793
        %v2896 = vmul.f32 %v2880, %v2844
        %v2897 = vmul.f32 %v2881, %v2846
        %v2898 = vmul.f32 %v2882, %v2797
        %v2899 = vmul.f32 %v2883, %v2799
        %v2900 = vmul.f32 %v2884, %v2850
        %v2901 = vmul.f32 %v2885, %v2852
        %v2902 = vmul.f32 %v2886, %v2801
        %v2903 = vmul.f32 %v2887, %v2803
        %v2904 = vmul.f32 %v2888, %v2854
        %v2905 = vmul.f32 %v2889, %v2856
        %v2906 = vmul.f32 %v2890, %v2787
        %v2907 = vmul.f32 %v2891, %v2789
        %v2908 = vmul.f32 %v2892, %v2840
        %v2909 = vmul.f32 %v2893, %v2842
        %v2910 = vmul.f32 %v2894, %v2791
        %v2911 = vmul.f32 %v2895, %v2793
        %v2912 = vmul.f32 %v2896, %v2844
        %v2913 = vmul.f32 %v2897, %v2846
        %v2914 = vmul.f32 %v2898, %v2797
        %v2915 = vmul.f32 %v2899, %v2799
        %v2916 = vmul.f32 %v2900, %v2850
        %v2917 = vmul.f32 %v2901, %v2852
        %v2918 = vmul.f32 %v2902, %v2801
        %v2919 = vmul.f32 %v2903, %v2803
        %v2920 = vmul.f32 %v2904, %v2854
        %v2921 = vmul.f32 %v2905, %v2856
        %v2922 = vadd.f32 %v2787, %v2906
        %v2923 = vadd.f32 %v2789, %v2907
        %v2924 = vadd.f32 %v2840, %v2908
        %v2925 = vadd.f32 %v2842, %v2909
        %v2926 = vadd.f32 %v2791, %v2910
        %v2927 = vadd.f32 %v2793, %v2911
        %v2928 = vadd.f32 %v2844, %v2912
        %v2929 = vadd.f32 %v2846, %v2913
        %v2930 = vadd.f32 %v2797, %v2914
        %v2931 = vadd.f32 %v2799, %v2915
        %v2932 = vadd.f32 %v2850, %v2916
        %v2933 = vadd.f32 %v2852, %v2917
        %v2934 = vadd.f32 %v2801, %v2918
        %v2935 = vadd.f32 %v2803, %v2919
        %v2936 = vadd.f32 %v2854, %v2920
        %v2937 = vadd.f32 %v2856, %v2921
        %v2938 = vmul.f32 %v2922, 0.7978846
        %v2939 = vmul.f32 %v2923, 0.7978846
        %v2940 = vmul.f32 %v2924, 0.7978846
        %v2941 = vmul.f32 %v2925, 0.7978846
        %v2942 = vmul.f32 %v2926, 0.7978846
        %v2943 = vmul.f32 %v2927, 0.7978846
        %v2944 = vmul.f32 %v2928, 0.7978846
        %v2945 = vmul.f32 %v2929, 0.7978846
        %v2946 = vmul.f32 %v2930, 0.7978846
        %v2947 = vmul.f32 %v2931, 0.7978846
        %v2948 = vmul.f32 %v2932, 0.7978846
        %v2949 = vmul.f32 %v2933, 0.7978846
        %v2950 = vmul.f32 %v2934, 0.7978846
        %v2951 = vmul.f32 %v2935, 0.7978846
        %v2952 = vmul.f32 %v2936, 0.7978846
        %v2953 = vmul.f32 %v2937, 0.7978846
        %v2954 = vtanh.pop %v2938
        %v2955 = vtanh.pop %v2939
        %v2956 = vtanh.pop %v2940
        %v2957 = vtanh.pop %v2941
        %v2958 = vtanh.pop %v2942
        %v2959 = vtanh.pop %v2943
        %v2960 = vtanh.pop %v2944
        %v2961 = vtanh.pop %v2945
        %v2962 = vtanh.pop %v2946
        %v2963 = vtanh.pop %v2947
        %v2964 = vtanh.pop %v2948
        %v2965 = vtanh.pop %v2949
        %v2966 = vtanh.pop %v2950
        %v2967 = vtanh.pop %v2951
        %v2968 = vtanh.pop %v2952
        %v2969 = vtanh.pop %v2953
        %v2970 = vadd.f32 %v2954, 1.0
        %v2971 = vadd.f32 %v2955, 1.0
        %v2972 = vadd.f32 %v2956, 1.0
        %v2973 = vadd.f32 %v2957, 1.0
        %v2974 = vadd.f32 %v2958, 1.0
        %v2975 = vadd.f32 %v2959, 1.0
        %v2976 = vadd.f32 %v2960, 1.0
        %v2977 = vadd.f32 %v2961, 1.0
        %v2978 = vadd.f32 %v2962, 1.0
        %v2979 = vadd.f32 %v2963, 1.0
        %v2980 = vadd.f32 %v2964, 1.0
        %v2981 = vadd.f32 %v2965, 1.0
        %v2982 = vadd.f32 %v2966, 1.0
        %v2983 = vadd.f32 %v2967, 1.0
        %v2984 = vadd.f32 %v2968, 1.0
        %v2985 = vadd.f32 %v2969, 1.0
        %v2986 = vmul.f32 %v2858, %v2970
        %v2987 = vmul.f32 %v2859, %v2971
        %v2988 = vmul.f32 %v2860, %v2972
        %v2989 = vmul.f32 %v2861, %v2973
        %v2990 = vmul.f32 %v2862, %v2974
        %v2991 = vmul.f32 %v2863, %v2975
        %v2992 = vmul.f32 %v2864, %v2976
        %v2993 = vmul.f32 %v2865, %v2977
        %v2994 = vmul.f32 %v2866, %v2978
        %v2995 = vmul.f32 %v2867, %v2979
        %v2996 = vmul.f32 %v2868, %v2980
        %v2997 = vmul.f32 %v2869, %v2981
        %v2998 = vmul.f32 %v2870, %v2982
        %v2999 = vmul.f32 %v2871, %v2983
        %v3000 = vmul.f32 %v2872, %v2984
        %v3001 = vmul.f32 %v2873, %v2985
        %v3002 = vpack.c.bf16 %v2990, %v2986
        %v3003 = vpack.c.bf16 %v2991, %v2987
        %v3004 = vpack.c.bf16 %v2992, %v2988
        %v3005 = vpack.c.bf16 %v2993, %v2989
        %v3006 = vpack.c.bf16 %v2998, %v2994
        %v3007 = vpack.c.bf16 %v2999, %v2995
        %v3008 = vpack.c.bf16 %v3000, %v2996
        %v3009 = vpack.c.bf16 %v3001, %v2997
        %v3010 = vld [vmem:[%s702] sm:$0xf]
        %v3011 = vld [vmem:[%s702 + $0x4] sm:$0xf]
        %v3012 = vld [vmem:[%s702 + $0x8] sm:$0xf]
        %v3013 = vld [vmem:[%s702 + $0xc] sm:$0xf]
        %v3014 = vld [vmem:[%s702 + $0x10] sm:$0xf]
        %v3015 = vld [vmem:[%s702 + $0x14] sm:$0xf]
        %v3016 = vld [vmem:[%s702 + $0x18] sm:$0xf]
        %v3017 = vld [vmem:[%s702 + $0x1c] sm:$0xf]
        %v3018 = vld [vmem:[%s702 + $0x20] sm:$0xf]
        %v3019 = vld [vmem:[%s702 + $0x24] sm:$0xf]
        %v3020 = vld [vmem:[%s702 + $0x28] sm:$0xf]
        %v3021 = vld [vmem:[%s702 + $0x2c] sm:$0xf]
        %v3022 = vld [vmem:[%s702 + $0x30] sm:$0xf]
        %v3023 = vld [vmem:[%s702 + $0x34] sm:$0xf]
        %v3024 = vld [vmem:[%s702 + $0x38] sm:$0xf]
        %v3025 = vld [vmem:[%s702 + $0x3c] sm:$0xf]
        %v3026 = vld [vmem:[%s702 + $0x40] sm:$0xf]
        %v3027 = vld [vmem:[%s702 + $0x44] sm:$0xf]
        %v3028 = vld [vmem:[%s702 + $0x48] sm:$0xf]
        %v3029 = vld [vmem:[%s702 + $0x4c] sm:$0xf]
        %v3030 = vld [vmem:[%s702 + $0x50] sm:$0xf]
        %v3031 = vld [vmem:[%s702 + $0x54] sm:$0xf]
        %v3032 = vld [vmem:[%s702 + $0x58] sm:$0xf]
        %v3033 = vld [vmem:[%s702 + $0x5c] sm:$0xf]
        %v3034 = vld [vmem:[%s702 + $0x60] sm:$0xf]
        %v3035 = vld [vmem:[%s702 + $0x64] sm:$0xf]
        %v3036 = vld [vmem:[%s702 + $0x68] sm:$0xf]
        %v3037 = vld [vmem:[%s702 + $0x6c] sm:$0xf]
        %v3038 = vld [vmem:[%s702 + $0x70] sm:$0xf]
        %v3039 = vld [vmem:[%s702 + $0x74] sm:$0xf]
        %v3040 = vld [vmem:[%s702 + $0x78] sm:$0xf]
        %v3041 = vld [vmem:[%s702 + $0x7c] sm:$0xf]
        %v3042 = vld [vmem:[%s702 + $0x80] sm:$0xf]
        %v3043 = vld [vmem:[%s702 + $0x84] sm:$0xf]
        %v3044 = vld [vmem:[%s702 + $0x88] sm:$0xf]
        %v3045 = vld [vmem:[%s702 + $0x8c] sm:$0xf]
        %v3046 = vld [vmem:[%s702 + $0x90] sm:$0xf]
        %v3047 = vld [vmem:[%s702 + $0x94] sm:$0xf]
        %v3048 = vld [vmem:[%s702 + $0x98] sm:$0xf]
        %v3049 = vld [vmem:[%s702 + $0x9c] sm:$0xf]
        %v3050 = vld [vmem:[%s702 + $0xa0] sm:$0xf]
        %v3051 = vld [vmem:[%s702 + $0xa4] sm:$0xf]
        %v3052 = vld [vmem:[%s702 + $0xa8] sm:$0xf]
        %v3053 = vld [vmem:[%s702 + $0xac] sm:$0xf]
        %v3054 = vld [vmem:[%s702 + $0xb0] sm:$0xf]
        %v3055 = vld [vmem:[%s702 + $0xb4] sm:$0xf]
        %v3056 = vld [vmem:[%s702 + $0xb8] sm:$0xf]
        %v3057 = vld [vmem:[%s702 + $0xbc] sm:$0xf]
        %v3058 = vld [vmem:[%s702 + $0xc0] sm:$0xf]
        %v3059 = vld [vmem:[%s702 + $0xc4] sm:$0xf]
        %v3060 = vld [vmem:[%s702 + $0xc8] sm:$0xf]
        %v3061 = vld [vmem:[%s702 + $0xcc] sm:$0xf]
        %v3062 = vld [vmem:[%s702 + $0xd0] sm:$0xf]
        %v3063 = vld [vmem:[%s702 + $0xd4] sm:$0xf]
        %v3064 = vld [vmem:[%s702 + $0xd8] sm:$0xf]
        %v3065 = vld [vmem:[%s702 + $0xdc] sm:$0xf]
        %v3066 = vld [vmem:[%s702 + $0xe0] sm:$0xf]
        %v3067 = vld [vmem:[%s702 + $0xe4] sm:$0xf]
        %v3068 = vld [vmem:[%s702 + $0xe8] sm:$0xf]
        %v3069 = vld [vmem:[%s702 + $0xec] sm:$0xf]
        %v3070 = vld [vmem:[%s702 + $0xf0] sm:$0xf]
        %v3071 = vld [vmem:[%s702 + $0xf4] sm:$0xf]
        %v3072 = vld [vmem:[%s702 + $0xf8] sm:$0xf]
        %v3073 = vld [vmem:[%s702 + $0xfc] sm:$0xf]
        %v3074 = vld [vmem:[%s817] sm:$0x1]
        %v3076 = vlaneseq
        %v3077 = vshrl.u32 %v3076, 7
        %v3078 = vsub.s32 0, %v3077
        %v3079 = vrot.slane %v3074, %v3078
        %v3145 = vunpack.c.l.b16 %v3010
        %v3146 = vunpack.c.l.b16 %v3011
        %v3147 = vunpack.c.l.b16 %v3012
        %v3148 = vunpack.c.l.b16 %v3013
        %v3149 = vunpack.c.l.b16 %v3014
        %v3150 = vunpack.c.l.b16 %v3015
        %v3151 = vunpack.c.l.b16 %v3016
        %v3152 = vunpack.c.l.b16 %v3017
        %v3153 = vunpack.c.l.b16 %v3018
        %v3154 = vunpack.c.l.b16 %v3019
        %v3155 = vunpack.c.l.b16 %v3020
        %v3156 = vunpack.c.l.b16 %v3021
        %v3157 = vunpack.c.l.b16 %v3022
        %v3158 = vunpack.c.l.b16 %v3023
        %v3159 = vunpack.c.l.b16 %v3024
        %v3160 = vunpack.c.l.b16 %v3025
        %v3161 = vunpack.c.l.b16 %v3026
        %v3162 = vunpack.c.l.b16 %v3027
        %v3163 = vunpack.c.l.b16 %v3028
        %v3164 = vunpack.c.l.b16 %v3029
        %v3165 = vunpack.c.l.b16 %v3030
        %v3166 = vunpack.c.l.b16 %v3031
        %v3167 = vunpack.c.l.b16 %v3032
        %v3168 = vunpack.c.l.b16 %v3033
        %v3169 = vunpack.c.l.b16 %v3034
        %v3170 = vunpack.c.l.b16 %v3035
        %v3171 = vunpack.c.l.b16 %v3036
        %v3172 = vunpack.c.l.b16 %v3037
        %v3173 = vunpack.c.l.b16 %v3038
        %v3174 = vunpack.c.l.b16 %v3039
        %v3175 = vunpack.c.l.b16 %v3040
        %v3176 = vunpack.c.l.b16 %v3041
        %v3177 = vunpack.c.l.b16 %v3042
        %v3178 = vunpack.c.l.b16 %v3043
        %v3179 = vunpack.c.l.b16 %v3044
        %v3180 = vunpack.c.l.b16 %v3045
        %v3181 = vunpack.c.l.b16 %v3046
        %v3182 = vunpack.c.l.b16 %v3047
        %v3183 = vunpack.c.l.b16 %v3048
        %v3184 = vunpack.c.l.b16 %v3049
        %v3185 = vunpack.c.l.b16 %v3050
        %v3186 = vunpack.c.l.b16 %v3051
        %v3187 = vunpack.c.l.b16 %v3052
        %v3188 = vunpack.c.l.b16 %v3053
        %v3189 = vunpack.c.l.b16 %v3054
        %v3190 = vunpack.c.l.b16 %v3055
        %v3191 = vunpack.c.l.b16 %v3056
        %v3192 = vunpack.c.l.b16 %v3057
        %v3193 = vunpack.c.l.b16 %v3058
        %v3194 = vunpack.c.l.b16 %v3059
        %v3195 = vunpack.c.l.b16 %v3060
        %v3196 = vunpack.c.l.b16 %v3061
        %v3197 = vunpack.c.l.b16 %v3062
        %v3198 = vunpack.c.l.b16 %v3063
        %v3199 = vunpack.c.l.b16 %v3064
        %v3200 = vunpack.c.l.b16 %v3065
        %v3201 = vunpack.c.l.b16 %v3066
        %v3202 = vunpack.c.l.b16 %v3067
        %v3203 = vunpack.c.l.b16 %v3068
        %v3204 = vunpack.c.l.b16 %v3069
        %v3205 = vunpack.c.l.b16 %v3070
        %v3206 = vunpack.c.l.b16 %v3071
        %v3207 = vunpack.c.l.b16 %v3072
        %v3208 = vunpack.c.l.b16 %v3073
        %v3209 = vpack.c.b16 %v3146, %v3145
        %v3210 = vpack.c.b16 %v3148, %v3147
        %v3211 = vpack.c.b16 %v3150, %v3149
        %v3212 = vpack.c.b16 %v3152, %v3151
        %v3213 = vpack.c.b16 %v3154, %v3153
        %v3214 = vpack.c.b16 %v3156, %v3155
        %v3215 = vpack.c.b16 %v3158, %v3157
        %v3216 = vpack.c.b16 %v3160, %v3159
        %v3217 = vpack.c.b16 %v3162, %v3161
        %v3218 = vpack.c.b16 %v3164, %v3163
        %v3219 = vpack.c.b16 %v3166, %v3165
        %v3220 = vpack.c.b16 %v3168, %v3167
        %v3221 = vpack.c.b16 %v3170, %v3169
        %v3222 = vpack.c.b16 %v3172, %v3171
        %v3223 = vpack.c.b16 %v3174, %v3173
        %v3224 = vpack.c.b16 %v3176, %v3175
        %v3225 = vpack.c.b16 %v3178, %v3177
        %v3226 = vpack.c.b16 %v3180, %v3179
        %v3227 = vpack.c.b16 %v3182, %v3181
        %v3228 = vpack.c.b16 %v3184, %v3183
        %v3229 = vpack.c.b16 %v3186, %v3185
        %v3230 = vpack.c.b16 %v3188, %v3187
        %v3231 = vpack.c.b16 %v3190, %v3189
        %v3232 = vpack.c.b16 %v3192, %v3191
        %v3233 = vpack.c.b16 %v3194, %v3193
        %v3234 = vpack.c.b16 %v3196, %v3195
        %v3235 = vpack.c.b16 %v3198, %v3197
        %v3236 = vpack.c.b16 %v3200, %v3199
        %v3237 = vpack.c.b16 %v3202, %v3201
        %v3238 = vpack.c.b16 %v3204, %v3203
        %v3239 = vpack.c.b16 %v3206, %v3205
        %v3240 = vpack.c.b16 %v3208, %v3207
        %3273 = vmatprep.subr.bf16.mxu0 0
        %3274 = vmatpush1.bf16.msra.mxu0 %v3209
        %3275 = vmatprep.subr.bf16.mxu0 0
        %3276 = vmatpush1.bf16.msra.mxu0 %v3210
        %3277 = vmatprep.subr.bf16.mxu0 0
        %3278 = vmatpush1.bf16.msra.mxu0 %v3211
        %3279 = vmatprep.subr.bf16.mxu0 0
        %3280 = vmatpush1.bf16.msra.mxu0 %v3212
        %3281 = vmatprep.subr.bf16.mxu0 0
        %3282 = vmatpush1.bf16.msra.mxu0 %v3213
        %3283 = vmatprep.subr.bf16.mxu0 0
        %3284 = vmatpush1.bf16.msra.mxu0 %v3214
        %3285 = vmatprep.subr.bf16.mxu0 0
        %3286 = vmatpush1.bf16.msra.mxu0 %v3215
        %3287 = vmatprep.subr.bf16.mxu0 0
        %3288 = vmatpush1.bf16.msra.mxu0 %v3216
        %3289 = vmatprep.subr.bf16.mxu0 0
        %3290 = vmatpush1.bf16.msra.mxu0 %v3217
        %3291 = vmatprep.subr.bf16.mxu0 0
        %3292 = vmatpush1.bf16.msra.mxu0 %v3218
        %3293 = vmatprep.subr.bf16.mxu0 0
        %3294 = vmatpush1.bf16.msra.mxu0 %v3219
        %3295 = vmatprep.subr.bf16.mxu0 0
        %3296 = vmatpush1.bf16.msra.mxu0 %v3220
        %3297 = vmatprep.subr.bf16.mxu0 0
        %3298 = vmatpush1.bf16.msra.mxu0 %v3221
        %3299 = vmatprep.subr.bf16.mxu0 0
        %3300 = vmatpush1.bf16.msra.mxu0 %v3222
        %3301 = vmatprep.subr.bf16.mxu0 0
        %3302 = vmatpush1.bf16.msra.mxu0 %v3223
        %3303 = vmatprep.subr.bf16.mxu0 0
        %3304 = vmatpush1.bf16.msra.mxu0 %v3224
        %3305 = vmatprep.mubr.bf16.mxu0 %v3003
        %3306 = vmatmul.mubr.bf16.gmra.mrb[0].mxu0 %v3002
        %v3307 = vpop.f32.mrb[0].mxu0
        %v3308 = vadd.f32 %v3079, %v3307
        %v3309 = vpop.f32.mrb[0].mxu0
        %v3310 = vpop.f32.mrb[0].mxu0
        %v3311 = vadd.f32 %v3079, %v3310
        %v3312 = vpop.f32.mrb[0].mxu0
        %3313 = vmatprep.mubr.bf16.mxu0 %v3007
        %3314 = vmatmul.mubr.bf16.gmra.mrb[0].mxu0 %v3006
        %v3315 = vpop.f32.mrb[0].mxu0
        %v3316 = vadd.f32 %v3079, %v3315
        %v3317 = vpop.f32.mrb[0].mxu0
        %v3318 = vpop.f32.mrb[0].mxu0
        %v3319 = vadd.f32 %v3079, %v3318
        %v3320 = vpop.f32.mrb[0].mxu0
        %3321 = vdwg.mxu0
        %3322 = vmatprep.subr.bf16.mxu0 0
        %3323 = vmatpush1.bf16.msra.mxu0 %v3225
        %3324 = vmatprep.subr.bf16.mxu0 0
        %3325 = vmatpush1.bf16.msra.mxu0 %v3226
        %3326 = vmatprep.subr.bf16.mxu0 0
        %3327 = vmatpush1.bf16.msra.mxu0 %v3227
        %3328 = vmatprep.subr.bf16.mxu0 0
        %3329 = vmatpush1.bf16.msra.mxu0 %v3228
        %3330 = vmatprep.subr.bf16.mxu0 0
        %3331 = vmatpush1.bf16.msra.mxu0 %v3229
        %3332 = vmatprep.subr.bf16.mxu0 0
        %3333 = vmatpush1.bf16.msra.mxu0 %v3230
        %3334 = vmatprep.subr.bf16.mxu0 0
        %3335 = vmatpush1.bf16.msra.mxu0 %v3231
        %3336 = vmatprep.subr.bf16.mxu0 0
        %3337 = vmatpush1.bf16.msra.mxu0 %v3232
        %3338 = vmatprep.subr.bf16.mxu0 0
        %3339 = vmatpush1.bf16.msra.mxu0 %v3233
        %3340 = vmatprep.subr.bf16.mxu0 0
        %3341 = vmatpush1.bf16.msra.mxu0 %v3234
        %3342 = vmatprep.subr.bf16.mxu0 0
        %3343 = vmatpush1.bf16.msra.mxu0 %v3235
        %3344 = vmatprep.subr.bf16.mxu0 0
        %3345 = vmatpush1.bf16.msra.mxu0 %v3236
        %3346 = vmatprep.subr.bf16.mxu0 0
        %3347 = vmatpush1.bf16.msra.mxu0 %v3237
        %3348 = vmatprep.subr.bf16.mxu0 0
        %3349 = vmatpush1.bf16.msra.mxu0 %v3238
        %3350 = vmatprep.subr.bf16.mxu0 0
        %3351 = vmatpush1.bf16.msra.mxu0 %v3239
        %3352 = vmatprep.subr.bf16.mxu0 0
        %3353 = vmatpush1.bf16.msra.mxu0 %v3240
        %3354 = vmatprep.mubr.bf16.mxu0 %v3005
        %3355 = vmatmul.mubr.bf16.gmra.mrb[0].mxu0 %v3004
        %v3356 = vpop.f32.mrb[0].mxu0
        %v3357 = vadd.f32 %v3308, %v3356
        %v3358 = vpop.f32.mrb[0].mxu0
        %v3359 = vpop.f32.mrb[0].mxu0
        %v3360 = vadd.f32 %v3311, %v3359
        %v3361 = vpop.f32.mrb[0].mxu0
        %3362 = vmatprep.mubr.bf16.mxu0 %v3009
        %3363 = vmatmul.mubr.bf16.gmra.mrb[0].mxu0 %v3008
        %v3364 = vpop.f32.mrb[0].mxu0
        %v3365 = vadd.f32 %v3316, %v3364
        %v3366 = vpop.f32.mrb[0].mxu0
        %v3367 = vpop.f32.mrb[0].mxu0
        %v3368 = vadd.f32 %v3319, %v3367
        %v3369 = vpop.f32.mrb[0].mxu0
        %3370 = vdwg.mxu0
        %v3371 = vadd.f32 %v2532, %v3357
        %v3372 = vadd.f32 %v2533, %v3360
        %v3373 = vadd.f32 %v2534, %v3365
        %v3374 = vadd.f32 %v2535, %v3368
        %v3375 = vld [vmem:[%s820] sm:$0x1]
        %v3376 = vld [vmem:[%s823] sm:$0x1]
        %3377 = vadd.xlane.f32.xlu0 %v3371
        %v3378 = vpop.xlane.xlu0 %3377
        %3379 = vadd.xlane.f32.xlu0 %v3372
        %v3380 = vpop.xlane.xlu0 %3379
        %3381 = vadd.xlane.f32.xlu0 %v3373
        %v3382 = vpop.xlane.xlu0 %3381
        %3383 = vadd.xlane.f32.xlu0 %v3374
        %v3384 = vpop.xlane.xlu0 %3383
        %v3385 = vmul.f32 %v3378, %v2479
        %v3386 = vmul.f32 %v3380, %v2479
        %v3387 = vmul.f32 %v3382, %v2479
        %v3388 = vmul.f32 %v3384, %v2479
        %v3389 = vsub.f32 %v3371, %v3385
        %v3390 = vsub.f32 %v3372, %v3386
        %v3391 = vsub.f32 %v3373, %v3387
        %v3392 = vsub.f32 %v3374, %v3388
        %v3393 = vmul.f32 %v3389, %v3389
        %v3394 = vmul.f32 %v3390, %v3390
        %v3395 = vmul.f32 %v3391, %v3391
        %v3396 = vmul.f32 %v3392, %v3392
        %3397 = vadd.xlane.f32.xlu0 %v3393
        %v3398 = vpop.xlane.xlu0 %3397
        %3399 = vadd.xlane.f32.xlu0 %v3394
        %v3400 = vpop.xlane.xlu0 %3399
        %3401 = vadd.xlane.f32.xlu0 %v3395
        %v3402 = vpop.xlane.xlu0 %3401
        %3403 = vadd.xlane.f32.xlu0 %v3396
        %v3404 = vpop.xlane.xlu0 %3403
        %v3405 = vmul.f32 %v3398, %v2479
        %v3406 = vmul.f32 %v3400, %v2479
        %v3407 = vmul.f32 %v3402, %v2479
        %v3408 = vmul.f32 %v3404, %v2479
        %v3409 = vadd.f32 %v3405, 1e-12
        %v3410 = vadd.f32 %v3406, 1e-12
        %v3411 = vadd.f32 %v3407, 1e-12
        %v3412 = vadd.f32 %v3408, 1e-12
        %v3413 = vrsqrt.pop %v3409
        %v3414 = vrsqrt.pop %v3410
        %v3415 = vrsqrt.pop %v3411
        %v3416 = vrsqrt.pop %v3412
        %v3417 = vmul.f32 %v3389, %v3413
        %v3418 = vmul.f32 %v3390, %v3414
        %v3419 = vmul.f32 %v3391, %v3415
        %v3420 = vmul.f32 %v3392, %v3416
        %v3422 = vlaneseq
        %v3423 = vshrl.u32 %v3422, 7
        %v3424 = vsub.s32 0, %v3423
        %v3425 = vrot.slane %v3375, %v3424
        %v3427 = vmul.f32 %v3417, %v3425
        %v3428 = vmul.f32 %v3418, %v3425
        %v3429 = vmul.f32 %v3419, %v3425
        %v3430 = vmul.f32 %v3420, %v3425
        %v3432 = vlaneseq
        %v3433 = vshrl.u32 %v3432, 7
        %v3434 = vsub.s32 0, %v3433
        %v3435 = vrot.slane %v3376, %v3434
        %v3437 = vadd.f32 %v3427, %v3435
        %v3438 = vadd.f32 %v3428, %v3435
        %v3439 = vadd.f32 %v3429, %v3435
        %v3440 = vadd.f32 %v3430, %v3435
        %3441 = vst [vmem:[#allocation2] sm:$0xff] %v3437
        %3442 = vst [vmem:[#allocation2 + $0x8] sm:$0xff] %v3438
        %3443 = vst [vmem:[#allocation2 + $0x10] sm:$0xff] %v3439
        %3444 = vst [vmem:[#allocation2 + $0x18] sm:$0xff] %v3440
        %p3445 = scmp.eq.s32.totalorder %s37, 1
        // Predicated region
        $region113: #{bert_forward.1} parent=95 // pred_check
          %p3446 = pneg %p3445
        $region114: #{bert_forward.1} parent=95 // pred_check_branch
          %3448 = sbr.rel (%p3446) target = $region116
        $region115: #{bert_forward.1} parent=95 // pred_region
          %v3449 = vpack.c.bf16 %v3437, %v3437
          %v3450 = vpack.c.bf16 %v3439, %v3439
          %v3451 = vld [vmem:[%s17] sm:$0xf]
          %v3452 = vld [vmem:[%s17 + $0x4] sm:$0xf]
          %v3453 = vld [vmem:[%s17 + $0x8] sm:$0xf]
          %v3454 = vld [vmem:[%s17 + $0xc] sm:$0xf]
          %v3455 = vld [vmem:[%s17 + $0x10] sm:$0xf]
          %v3456 = vld [vmem:[%s17 + $0x14] sm:$0xf]
          %v3457 = vld [vmem:[%s17 + $0x18] sm:$0xf]
          %v3458 = vld [vmem:[%s17 + $0x1c] sm:$0xf]
          %v3459 = vld [vmem:[%s17 + $0x20] sm:$0xf]
          %v3460 = vld [vmem:[%s17 + $0x24] sm:$0xf]
          %v3461 = vld [vmem:[%s17 + $0x28] sm:$0xf]
          %v3462 = vld [vmem:[%s17 + $0x2c] sm:$0xf]
          %v3463 = vld [vmem:[%s17 + $0x30] sm:$0xf]
          %v3464 = vld [vmem:[%s17 + $0x34] sm:$0xf]
          %v3465 = vld [vmem:[%s17 + $0x38] sm:$0xf]
          %v3466 = vld [vmem:[%s17 + $0x3c] sm:$0xf]
          %v3467 = vld [vmem:[%s18] sm:$0x1]
          %v3469 = vlaneseq
          %v3470 = vshrl.u32 %v3469, 7
          %v3471 = vsub.s32 0, %v3470
          %v3472 = vrot.slane %v3467, %v3471
          %v3476 = vunpack.c.l.b16 %v3449
          %v3477 = vunpack.c.l.b16 %v3450
          %v3478 = vrot.slane %v3477, 7
          %vm3479 = vcmask 1041409
          %v3480 = vsel %vm3479, %v3478, %v3476
          %v3481 = vpack.c.b16 %v3480, %v3480
          %v3499 = vunpack.c.l.b16 %v3451
          %v3500 = vunpack.c.l.b16 %v3452
          %v3501 = vunpack.c.l.b16 %v3453
          %v3502 = vunpack.c.l.b16 %v3454
          %v3503 = vunpack.c.l.b16 %v3455
          %v3504 = vunpack.c.l.b16 %v3456
          %v3505 = vunpack.c.l.b16 %v3457
          %v3506 = vunpack.c.l.b16 %v3458
          %v3507 = vunpack.c.l.b16 %v3459
          %v3508 = vunpack.c.l.b16 %v3460
          %v3509 = vunpack.c.l.b16 %v3461
          %v3510 = vunpack.c.l.b16 %v3462
          %v3511 = vunpack.c.l.b16 %v3463
          %v3512 = vunpack.c.l.b16 %v3464
          %v3513 = vunpack.c.l.b16 %v3465
          %v3514 = vunpack.c.l.b16 %v3466
          %v3515 = vpack.c.b16 %v3500, %v3499
          %v3516 = vpack.c.b16 %v3502, %v3501
          %v3517 = vpack.c.b16 %v3504, %v3503
          %v3518 = vpack.c.b16 %v3506, %v3505
          %v3519 = vpack.c.b16 %v3508, %v3507
          %v3520 = vpack.c.b16 %v3510, %v3509
          %v3521 = vpack.c.b16 %v3512, %v3511
          %v3522 = vpack.c.b16 %v3514, %v3513
          %3531 = vmatprep.subr.bf16.mxu0 0
          %3532 = vmatpush1.bf16.msra.mxu0 %v3515
          %3533 = vmatprep.subr.bf16.mxu0 0
          %3534 = vmatpush1.bf16.msra.mxu0 %v3516
          %3535 = vmatprep.subr.bf16.mxu0 0
          %3536 = vmatpush1.bf16.msra.mxu0 %v3517
          %3537 = vmatprep.subr.bf16.mxu0 0
          %3538 = vmatpush1.bf16.msra.mxu0 %v3518
          %3539 = vmatprep.subr.bf16.mxu0 0
          %3540 = vmatpush1.bf16.msra.mxu0 %v3519
          %3541 = vmatprep.subr.bf16.mxu0 0
          %3542 = vmatpush1.bf16.msra.mxu0 %v3520
          %3543 = vmatprep.subr.bf16.mxu0 0
          %3544 = vmatpush1.bf16.msra.mxu0 %v3521
          %3545 = vmatprep.subr.bf16.mxu0 0
          %3546 = vmatpush1.bf16.msra.mxu0 %v3522
          %3547 = vmatprep.subr.bf16.mxu0 0
          %3548 = vmatpush1.bf16.msra.mxu0 0
          %3549 = vmatprep.subr.bf16.mxu0 0
          %3550 = vmatpush1.bf16.msra.mxu0 0
          %3551 = vmatprep.subr.bf16.mxu0 0
          %3552 = vmatpush1.bf16.msra.mxu0 0
          %3553 = vmatprep.subr.bf16.mxu0 0
          %3554 = vmatpush1.bf16.msra.mxu0 0
          %3555 = vmatprep.subr.bf16.mxu0 0
          %3556 = vmatpush1.bf16.msra.mxu0 0
          %3557 = vmatprep.subr.bf16.mxu0 0
          %3558 = vmatpush1.bf16.msra.mxu0 0
          %3559 = vmatprep.subr.bf16.mxu0 0
          %3560 = vmatpush1.bf16.msra.mxu0 0
          %3561 = vmatprep.subr.bf16.mxu0 0
          %3562 = vmatpush1.bf16.msra.mxu0 0
          %3563 = vmatprep.mubr.bf16.mxu0 0
          %3564 = vmatmul.mubr.bf16.gmra.mrb[0].mxu0 %v3481
          %v3565 = vpop.f32.mrb[0].mxu0
          %v3566 = vadd.f32 %v3472, %v3565
          %v3567 = vpop.f32.mrb[0].mxu0
          %v3568 = vpop.f32.mrb[0].mxu0
          %v3569 = vpop.f32.mrb[0].mxu0
          %3570 = vdwg.mxu0
          %vm3571 = vcmask 9216
          %3572 = vst.msk [vmem:[#allocation9] sm:$0x3] %vm3571, %v3566
        $region116: #{bert_forward.1} parent=95 // pred_fallthru
          _
        // Predicated region
        $region117: #{bert_forward.1} parent=95 // pred_check
          %p3573 = pneg %p509
        $region118: #{bert_forward.1} parent=95 // pred_check_branch
          %3575 = sbr.rel (%p3573) target = $region120
        $region119: #{bert_forward.1} parent=95 // pred_region
          %s3577 = ssub.s32 32, 32
          %3578 = vsyncadd [#allocation5], %s3577
          %s3580 = sshll.u32 [#allocation9], 4
          %s3581 = int_to_ptr.vmem [resolvable:$true] %s3580
          %3583 = dma.vmem_to_hbm [thread:$0]  %s3581, 32, %s19, [#allocation5]
        $region120: #{bert_forward.1} parent=95 // pred_fallthru
          _
        // Predicated region
        $region121: #{bert_forward.1} parent=95 // pred_check
          %p3584 = pneg %p509
        $region122: #{bert_forward.1} parent=95 // pred_check_branch
          %3586 = sbr.rel (%p3584) target = $region124
        $region123: #{bert_forward.1} parent=95 // pred_region
          %3587 = dma.done [#allocation5], 32
        $region124: #{bert_forward.1} parent=95 // pred_fallthru
          _
      $region96: #{bert_forward.1} parent=5 // pred_fallthru
        _
      %p3588 = scmp.le.s32.totalorder 2, %s32
      // Predicated region
      $region125: #{bert_forward.1} parent=5 // pred_check
        %p3589 = pneg %p3588
      $region126: #{bert_forward.1} parent=5 // pred_check_branch
        %3591 = sbr.rel (%p3589) target = $region128
      $region127: #{bert_forward.1} parent=5 // pred_region
        %s3592 = ssub.s32 %s32, 2
      $region128: #{bert_forward.1} parent=5 // pred_fallthru
        _
    $region6: #{bert_forward.1} parent=1 // loop_footer
      %s36 = sadd.s32 1, %s32
    $region7: #{bert_forward.1} parent=1 // loop_footer_branch
      %31 = sbr.rel target = $region3
    $region8: #{bert_forward.1} parent=1 // loop_exit
      _
    %3593 = vsyncpa [#allocation4], 1
    %s3594 = scalar_lea.sflag [#allocation4], 1
    %3595 = vsyncpa %s3594, 1
    %3596 = vsyncpa [#allocation7], 1
    %s3597 = scalar_lea.sflag [#allocation7], 1
    %3598 = vsyncpa %s3597, 1
    %3599 = vsyncpa [#allocation5], 1
    %s3600 = scalar_lea.sflag [#allocation5], 1
    %3601 = vsyncpa %s3600, 1

</llo_original>
